<compile_context>
chip_gen: v6e
topology: v6e:2x2x1
jax: 0.10.0
libtpu: 0.0.40
codegen_flags: <defaults>
</compile_context>

<pallas_src>
import functools

import jax
import jax.numpy as jnp
import numpy as np
from jax.experimental import pallas as pl
from jax.experimental.pallas import tpu as pltpu


# ---------------------------------------------------------------------------
# 1-D bilinear (align_corners=True) upsample as an interpolation matrix.
# ---------------------------------------------------------------------------
def _upsample_matrix(n_in: int, n_out: int) -> jnp.ndarray:
    """(n_out, n_in) matrix s.t. out = A @ in == 1-D bilinear, align_corners=True."""
    if n_in == 1:
        return jnp.ones((n_out, 1), dtype=jnp.float32)
    src = jnp.arange(n_out, dtype=jnp.float32) * (n_in - 1) / (n_out - 1)
    i0 = jnp.clip(jnp.floor(src).astype(jnp.int32), 0, n_in - 1)
    i1 = jnp.clip(i0 + 1, 0, n_in - 1)
    frac = src - i0.astype(jnp.float32)
    rows = jnp.arange(n_out)
    A = jnp.zeros((n_out, n_in), dtype=jnp.float32)
    A = A.at[rows, i0].add(1.0 - frac)
    A = A.at[rows, i1].add(frac)
    return A


def _pick_row_tile(h2: int, max_rows: int = 256) -> int:
    """Largest multiple of 8 that divides h2 and is <= max_rows (else full h2)."""
    t = min(h2, max_rows)
    t -= t % 8
    while t >= 8:
        if h2 % t == 0:
            return t
        t -= 8
    return h2


# ---------------------------------------------------------------------------
# Shared per-tile compute: n_out relu'd (row_tile, W2) planes for the current
# (batch element, H2 row block).
# ---------------------------------------------------------------------------
def _compute_y_planes(up_ref, x_ref, ah_ref, awt_ref,
                      w1_ref, b1_ref, wx_ref, bx_ref,
                      *, up_in, x_in, up_out, x_out):
    ah = ah_ref[...]     # (row_tile, H)   row block of the H-upsample matrix
    awt = awt_ref[...]   # (W, W2)         transposed W-upsample matrix
    planes = []

    # --- up branch: 1x1 conv at LOW resolution, then separable bilinear x2 ---
    # TODO(synk): for large channel counts replace the unrolled scalar-FMA conv
    # with an MXU dot over a (C_in, H*W) view; channels here are 4-8 (VPU wins).
    for co in range(up_out):
        lo = w1_ref[co, 0] * up_ref[0, 0]
        for ci in range(1, up_in):
            lo = lo + w1_ref[co, ci] * up_ref[0, ci]
        lo = lo + b1_ref[co]                                        # (H, W)
        mid = jnp.dot(ah, lo, preferred_element_type=jnp.float32)   # (row_tile, W)
        hi = jnp.dot(mid, awt, preferred_element_type=jnp.float32)  # (row_tile, W2)
        planes.append(jnp.maximum(hi, 0.0))

    # --- skip branch: 1x1 conv at high resolution (VPU broadcast-FMA) ---
    for co in range(x_out):
        acc = wx_ref[co, 0] * x_ref[0, 0]
        for ci in range(1, x_in):
            acc = acc + wx_ref[co, ci] * x_ref[0, ci]
        acc = acc + bx_ref[co]                                      # (row_tile, W2)
        planes.append(jnp.maximum(acc, 0.0))

    return planes


# ---------------------------------------------------------------------------
# Pass 1: per-(batch, row-tile) partial batch-norm statistics.
# ---------------------------------------------------------------------------
def _stats_kernel(up_ref, x_ref, ah_ref, awt_ref, w1_ref, b1_ref, wx_ref, bx_ref,
                  sum_ref, ssq_ref, *, up_in, x_in, up_out, x_out, n_out):
    planes = _compute_y_planes(up_ref, x_ref, ah_ref, awt_ref,
                               w1_ref, b1_ref, wx_ref, bx_ref,
                               up_in=up_in, x_in=x_in, up_out=up_out, x_out=x_out)
    # Build one (1, n_out) row per statistic -> a single store each (instead of
    # many sub-lane-width read-modify-writes).
    lane = jax.lax.broadcasted_iota(jnp.int32, (1, n_out), 1)
    sum_row = jnp.zeros((1, n_out), jnp.float32)
    ssq_row = jnp.zeros((1, n_out), jnp.float32)
    for c, p in enumerate(planes):
        m = lane == c
        sum_row = sum_row + jnp.where(m, jnp.sum(p), 0.0)
        ssq_row = ssq_row + jnp.where(m, jnp.sum(p * p), 0.0)
    sum_ref[0, 0] = sum_row
    ssq_ref[0, 0] = ssq_row


# ---------------------------------------------------------------------------
# Pass 2: recompute y for the tile and apply the folded BN affine, writing the
# final NCHW output tile once (no intermediate y round trip through HBM).
# ---------------------------------------------------------------------------
def _apply_kernel(up_ref, x_ref, ah_ref, awt_ref, w1_ref, b1_ref, wx_ref, bx_ref,
                  scale_ref, shift_ref, out_ref, *, up_in, x_in, up_out, x_out):
    planes = _compute_y_planes(up_ref, x_ref, ah_ref, awt_ref,
                               w1_ref, b1_ref, wx_ref, bx_ref,
                               up_in=up_in, x_in=x_in, up_out=up_out, x_out=x_out)
    for c, p in enumerate(planes):
        out_ref[0, c] = (p * scale_ref[c] + shift_ref[c]).astype(out_ref.dtype)


# ---------------------------------------------------------------------------
# Wrapper
# ---------------------------------------------------------------------------
@functools.partial(jax.jit, static_argnames=("n_out", "row_tile"))
def unet_block0_forward(up_p, x_p, params, *, n_out, row_tile=None):
    """up_p: (N, up_in, H, W) NCHW;  x_p: (N, x_in, 2H, 2W) NCHW.
    Returns (N, n_out, 2H, 2W) NCHW, matching the PyTorch module."""
    N, up_in, H, W = up_p.shape
    Nx, x_in, H2, W2 = x_p.shape
    assert Nx == N and H2 == 2 * H and W2 == 2 * W
    up_out = x_out = n_out // 2

    th2 = _pick_row_tile(H2) if row_tile is None else row_tile
    assert H2 % th2 == 0 and (th2 % 8 == 0 or th2 == H2)
    n_h = H2 // th2

    A_h = _upsample_matrix(H, H2)          # (H2, H)
    A_wT = _upsample_matrix(W, W2).T       # (W, W2)

    w1 = params["w1"].astype(jnp.float32)  # (up_out, up_in) torch conv1x1 weight
    b1 = params["b1"].astype(jnp.float32)  # (up_out,)
    wx = params["wx"].astype(jnp.float32)  # (x_out, x_in)
    bx = params["bx"].astype(jnp.float32)  # (x_out,)

    smem = pl.BlockSpec(memory_space=pltpu.MemorySpace.SMEM)
    common_in_specs = [
        pl.BlockSpec((1, up_in, H, W), lambda n, h: (n, 0, 0, 0)),   # low-res up
        pl.BlockSpec((1, x_in, th2, W2), lambda n, h: (n, 0, h, 0)),  # skip rows
        pl.BlockSpec((th2, H), lambda n, h: (h, 0)),                  # A_h row blk
        pl.BlockSpec((W, W2), lambda n, h: (0, 0)),                   # A_w^T
        smem, smem, smem, smem,                                       # w1,b1,wx,bx
    ]
    cparams = pltpu.CompilerParams(
        dimension_semantics=("parallel", "parallel"))
    static = dict(up_in=up_in, x_in=x_in, up_out=up_out, x_out=x_out)

    # ---- pass 1: partial statistics (tiny outputs, parallel grid) ----
    ssum, ssq = pl.pallas_call(
        functools.partial(_stats_kernel, n_out=n_out, **static),
        out_shape=(
            jax.ShapeDtypeStruct((N, n_h, 1, n_out), jnp.float32),
            jax.ShapeDtypeStruct((N, n_h, 1, n_out), jnp.float32),
        ),
        grid=(N, n_h),
        in_specs=common_in_specs,
        out_specs=(
            pl.BlockSpec((1, 1, 1, n_out), lambda n, h: (n, h, 0, 0)),
            pl.BlockSpec((1, 1, 1, n_out), lambda n, h: (n, h, 0, 0)),
        ),
        compiler_params=cparams,
    )(up_p, x_p, A_h, A_wT, w1, b1, wx, bx)

    # ---- fold stats into per-channel affine (tiny vectors, wrapper math) ----
    # Chan/Welford-style combine of per-tile moments (better conditioned than a
    # single global E[y^2] - E[y]^2).
    eps = 1e-5
    cnt = jnp.float32(th2 * W2)                       # elements per tile/channel
    t_sum = ssum.reshape(N * n_h, n_out)
    t_ssq = ssq.reshape(N * n_h, n_out)
    t_mean = t_sum / cnt
    t_m2 = jnp.maximum(t_ssq - cnt * t_mean * t_mean, 0.0)
    mean = jnp.mean(t_mean, axis=0)
    m2 = jnp.sum(t_m2, axis=0) + cnt * jnp.sum((t_mean - mean) ** 2, axis=0)
    var = m2 / (cnt * jnp.float32(N * n_h))           # biased var (BN training)
    scale = params["gamma"].astype(jnp.float32) / jnp.sqrt(var + eps)
    shift = params["beta"].astype(jnp.float32) - mean * scale

    # ---- pass 2: recompute y per tile, normalize, write NCHW output once ----
    out = pl.pallas_call(
        functools.partial(_apply_kernel, **static),
        out_shape=jax.ShapeDtypeStruct((N, n_out, H2, W2), jnp.float32),
        grid=(N, n_h),
        in_specs=common_in_specs + [smem, smem],      # + scale, shift
        out_specs=pl.BlockSpec((1, n_out, th2, W2), lambda n, h: (n, 0, h, 0)),
        compiler_params=cparams,
    )(up_p, x_p, A_h, A_wT, w1, b1, wx, bx, scale, shift)

    return out  # already NCHW


# ---------------------------------------------------------------------------
# Pure-JAX reference (same math as the PyTorch module) for a correctness check.
# ---------------------------------------------------------------------------
def _reference(up_p, x_p, params, n_out):
    N, c_up, H, W = up_p.shape
    _, c_x, H2, W2 = x_p.shape
    K = jnp.kron(_upsample_matrix(H, H2), _upsample_matrix(W, W2))
    up_flat = jnp.transpose(up_p, (0, 2, 3, 1)).reshape(N, H * W, c_up)
    x_flat = jnp.transpose(x_p, (0, 2, 3, 1)).reshape(N, H2 * W2, c_x)
    up2 = jnp.einsum("oi,nic->noc", K, up_flat)
    a = up2 @ params["w1"].T + params["b1"]
    b = x_flat @ params["wx"].T + params["bx"]
    y = jnp.maximum(jnp.concatenate([a, b], axis=-1), 0.0)
    mean = y.mean(axis=(0, 1))
    var = ((y - mean) ** 2).mean(axis=(0, 1))
    out = (y - mean) / jnp.sqrt(var + 1e-5) * params["gamma"] + params["beta"]
    return jnp.transpose(out.reshape(N, H2, W2, n_out), (0, 3, 1, 2))


if __name__ == "__main__":
    # Module-consistent small shapes: up_in=4, x_in=4, n_out=8,
    # up_p spatial 8x8 (-> 16x16), x_p spatial 16x16.
    N, up_in, x_in, n_out = 2, 4, 4, 8
    H = W = 8

    key = jax.random.PRNGKey(0)
    k_up, k_x, k_w1, k_b1, k_wx, k_bx, k_g, k_beta = jax.random.split(key, 8)

    up_p = jax.random.normal(k_up, (N, up_in, H, W), dtype=jnp.float32)
    x_p = jax.random.normal(k_x, (N, x_in, 2 * H, 2 * W), dtype=jnp.float32)

    up_out = x_out = n_out // 2
    params = {
        # conv1x1 (up branch): torch weight (up_out, up_in, 1, 1) -> (up_out, up_in)
        "w1": 0.3 * jax.random.normal(k_w1, (up_out, up_in), dtype=jnp.float32),
        "b1": 0.1 * jax.random.normal(k_b1, (up_out,), dtype=jnp.float32),
        # x_conv 1x1: (x_out, x_in)
        "wx": 0.3 * jax.random.normal(k_wx, (x_out, x_in), dtype=jnp.float32),
        "bx": 0.1 * jax.random.normal(k_bx, (x_out,), dtype=jnp.float32),
        # BatchNorm2d affine params
        "gamma": 1.0 + 0.1 * jax.random.normal(k_g, (n_out,), dtype=jnp.float32),
        "beta": 0.1 * jax.random.normal(k_beta, (n_out,), dtype=jnp.float32),
    }

    # row_tile=8 -> two H2 row blocks, exercising the pixel-tiled grid path.
    out = unet_block0_forward(up_p, x_p, params, n_out=n_out, row_tile=8)
    out = jax.block_until_ready(out)

    ref = _reference(up_p, x_p, params, n_out)
    np.testing.assert_allclose(np.asarray(out), np.asarray(ref), rtol=1e-4, atol=1e-4)
    assert out.shape == (N, n_out, 2 * H, 2 * W)

    print("KERNEL_OK")
</pallas_src>

<mosaic_0001>
module attributes {stable_mosaic.version = 11 : i64} {
  func.func private @main(%arg0: i32) attributes {dimension_semantics = [#tpu.dimension_semantics<core_parallel>], iteration_bounds = array<i64: 2>, tpu.core_type = #tpu.core_type<sc_scalar_subcore>, window_params = []} {
    return
  }
}

module attributes {stable_mosaic.version = 11 : i64} {
  func.func private @main(%arg0: i32) attributes {dimension_semantics = [#tpu.dimension_semantics<core_parallel>], iteration_bounds = array<i64: 2>, tpu.core_type = #tpu.core_type<sc_scalar_subcore>, window_params = []} {
    return
  }
}

module attributes {stable_mosaic.version = 11 : i64} {
  func.func @_stats_kernel(%arg0: i32, %arg1: i32, %arg2: memref<1x4x8x8xf32, #tpu.memory_space<vmem>>, %arg3: memref<1x4x8x16xf32, #tpu.memory_space<vmem>>, %arg4: memref<8x8xf32, #tpu.memory_space<vmem>>, %arg5: memref<8x16xf32, #tpu.memory_space<vmem>>, %arg6: memref<4x4xf32, #tpu.memory_space<smem>>, %arg7: memref<4xf32, #tpu.memory_space<smem>>, %arg8: memref<4x4xf32, #tpu.memory_space<smem>>, %arg9: memref<4xf32, #tpu.memory_space<smem>>, %arg10: memref<1x1x1x8xf32, #tpu.memory_space<vmem>>, %arg11: memref<1x1x1x8xf32, #tpu.memory_space<vmem>>) attributes {dimension_semantics = [#tpu.dimension_semantics<parallel>, #tpu.dimension_semantics<parallel>], iteration_bounds = array<i64: 2, 2>, scalar_prefetch = 0 : i64, scratch_operands = 0 : i64, tpu.core_type = #tpu.core_type<tc>, window_params = [{transform_indices = @transform_0, window_bounds = array<i64: 1, 4, 8, 8>}, {transform_indices = @transform_1, window_bounds = array<i64: 1, 4, 8, 16>}, {transform_indices = @transform_2, window_bounds = array<i64: 8, 8>}, {pipeline_mode = #tpu.pipeline_mode<synchronous>, transform_indices = @transform_3, window_bounds = array<i64: 8, 16>}, {transform_indices = @transform_4, window_bounds = array<i64: 4, 4>}, {transform_indices = @transform_5, window_bounds = array<i64: 4>}, {transform_indices = @transform_6, window_bounds = array<i64: 4, 4>}, {transform_indices = @transform_7, window_bounds = array<i64: 4>}, {transform_indices = @transform_8, window_bounds = array<i64: 1, 1, 1, 8>}, {transform_indices = @transform_9, window_bounds = array<i64: 1, 1, 1, 8>}]} {
    %c0 = arith.constant 0 : index
    %c0_0 = arith.constant 0 : index
    %0 = vector.load %arg4[%c0, %c0_0] : memref<8x8xf32, #tpu.memory_space<vmem>>, vector<8x8xf32>
    %c0_1 = arith.constant 0 : index
    %c0_2 = arith.constant 0 : index
    %1 = vector.load %arg5[%c0_1, %c0_2] : memref<8x16xf32, #tpu.memory_space<vmem>>, vector<8x16xf32>
    %c0_3 = arith.constant 0 : index
    %c0_4 = arith.constant 0 : index
    %2 = memref.load %arg6[%c0_3, %c0_4] : memref<4x4xf32, #tpu.memory_space<smem>>
    %c0_5 = arith.constant 0 : index
    %c0_6 = arith.constant 0 : index
    %c0_7 = arith.constant 0 : index
    %c0_8 = arith.constant 0 : index
    %3 = vector.load %arg2[%c0_5, %c0_6, %c0_7, %c0_8] : memref<1x4x8x8xf32, #tpu.memory_space<vmem>>, vector<1x1x8x8xf32>
    %4 = vector.shape_cast %3 : vector<1x1x8x8xf32> to vector<8x8xf32>
    %5 = vector.broadcast %2 : f32 to vector<8x8xf32>
    %6 = arith.mulf %5, %4 : vector<8x8xf32>
    %c0_9 = arith.constant 0 : index
    %c1 = arith.constant 1 : index
    %7 = memref.load %arg6[%c0_9, %c1] : memref<4x4xf32, #tpu.memory_space<smem>>
    %c0_10 = arith.constant 0 : index
    %c1_11 = arith.constant 1 : index
    %c0_12 = arith.constant 0 : index
    %c0_13 = arith.constant 0 : index
    %8 = vector.load %arg2[%c0_10, %c1_11, %c0_12, %c0_13] : memref<1x4x8x8xf32, #tpu.memory_space<vmem>>, vector<1x1x8x8xf32>
    %9 = vector.shape_cast %8 : vector<1x1x8x8xf32> to vector<8x8xf32>
    %10 = vector.broadcast %7 : f32 to vector<8x8xf32>
    %11 = arith.mulf %10, %9 : vector<8x8xf32>
    %12 = arith.addf %6, %11 : vector<8x8xf32>
    %c0_14 = arith.constant 0 : index
    %c2 = arith.constant 2 : index
    %13 = memref.load %arg6[%c0_14, %c2] : memref<4x4xf32, #tpu.memory_space<smem>>
    %c0_15 = arith.constant 0 : index
    %c2_16 = arith.constant 2 : index
    %c0_17 = arith.constant 0 : index
    %c0_18 = arith.constant 0 : index
    %14 = vector.load %arg2[%c0_15, %c2_16, %c0_17, %c0_18] : memref<1x4x8x8xf32, #tpu.memory_space<vmem>>, vector<1x1x8x8xf32>
    %15 = vector.shape_cast %14 : vector<1x1x8x8xf32> to vector<8x8xf32>
    %16 = vector.broadcast %13 : f32 to vector<8x8xf32>
    %17 = arith.mulf %16, %15 : vector<8x8xf32>
    %18 = arith.addf %12, %17 : vector<8x8xf32>
    %c0_19 = arith.constant 0 : index
    %c3 = arith.constant 3 : index
    %19 = memref.load %arg6[%c0_19, %c3] : memref<4x4xf32, #tpu.memory_space<smem>>
    %c0_20 = arith.constant 0 : index
    %c3_21 = arith.constant 3 : index
    %c0_22 = arith.constant 0 : index
    %c0_23 = arith.constant 0 : index
    %20 = vector.load %arg2[%c0_20, %c3_21, %c0_22, %c0_23] : memref<1x4x8x8xf32, #tpu.memory_space<vmem>>, vector<1x1x8x8xf32>
    %21 = vector.shape_cast %20 : vector<1x1x8x8xf32> to vector<8x8xf32>
    %22 = vector.broadcast %19 : f32 to vector<8x8xf32>
    %23 = arith.mulf %22, %21 : vector<8x8xf32>
    %24 = arith.addf %18, %23 : vector<8x8xf32>
    %c0_24 = arith.constant 0 : index
    %25 = memref.load %arg7[%c0_24] : memref<4xf32, #tpu.memory_space<smem>>
    %26 = vector.broadcast %25 : f32 to vector<8x8xf32>
    %27 = arith.addf %24, %26 : vector<8x8xf32>
    %cst = arith.constant dense<0.000000e+00> : vector<8x8xf32>
    %28 = tpu.matmul %0, %27, %cst {dimension_numbers = #tpu.dot_dimension_numbers<[1], [0], [0], [1], [0, 0, 1, 1], [], []>} : vector<8x8xf32>, vector<8x8xf32>, vector<8x8xf32> -> vector<8x8xf32>
    %cst_25 = arith.constant dense<0.000000e+00> : vector<8x16xf32>
    %29 = tpu.matmul %28, %1, %cst_25 {dimension_numbers = #tpu.dot_dimension_numbers<[1], [0], [0], [1], [0, 0, 1, 1], [], []>} : vector<8x8xf32>, vector<8x16xf32>, vector<8x16xf32> -> vector<8x16xf32>
    %cst_26 = arith.constant 0.000000e+00 : f32
    %30 = vector.broadcast %cst_26 : f32 to vector<8x16xf32>
    %31 = arith.maximumf %29, %30 : vector<8x16xf32>
    %c1_27 = arith.constant 1 : index
    %c0_28 = arith.constant 0 : index
    %32 = memref.load %arg6[%c1_27, %c0_28] : memref<4x4xf32, #tpu.memory_space<smem>>
    %c0_29 = arith.constant 0 : index
    %c0_30 = arith.constant 0 : index
    %c0_31 = arith.constant 0 : index
    %c0_32 = arith.constant 0 : index
    %33 = vector.load %arg2[%c0_29, %c0_30, %c0_31, %c0_32] : memref<1x4x8x8xf32, #tpu.memory_space<vmem>>, vector<1x1x8x8xf32>
    %34 = vector.shape_cast %33 : vector<1x1x8x8xf32> to vector<8x8xf32>
    %35 = vector.broadcast %32 : f32 to vector<8x8xf32>
    %36 = arith.mulf %35, %34 : vector<8x8xf32>
    %c1_33 = arith.constant 1 : index
    %c1_34 = arith.constant 1 : index
    %37 = memref.load %arg6[%c1_33, %c1_34] : memref<4x4xf32, #tpu.memory_space<smem>>
    %c0_35 = arith.constant 0 : index
    %c1_36 = arith.constant 1 : index
    %c0_37 = arith.constant 0 : index
    %c0_38 = arith.constant 0 : index
    %38 = vector.load %arg2[%c0_35, %c1_36, %c0_37, %c0_38] : memref<1x4x8x8xf32, #tpu.memory_space<vmem>>, vector<1x1x8x8xf32>
    %39 = vector.shape_cast %38 : vector<1x1x8x8xf32> to vector<8x8xf32>
    %40 = vector.broadcast %37 : f32 to vector<8x8xf32>
    %41 = arith.mulf %40, %39 : vector<8x8xf32>
    %42 = arith.addf %36, %41 : vector<8x8xf32>
    %c1_39 = arith.constant 1 : index
    %c2_40 = arith.constant 2 : index
    %43 = memref.load %arg6[%c1_39, %c2_40] : memref<4x4xf32, #tpu.memory_space<smem>>
    %c0_41 = arith.constant 0 : index
    %c2_42 = arith.constant 2 : index
    %c0_43 = arith.constant 0 : index
    %c0_44 = arith.constant 0 : index
    %44 = vector.load %arg2[%c0_41, %c2_42, %c0_43, %c0_44] : memref<1x4x8x8xf32, #tpu.memory_space<vmem>>, vector<1x1x8x8xf32>
    %45 = vector.shape_cast %44 : vector<1x1x8x8xf32> to vector<8x8xf32>
    %46 = vector.broadcast %43 : f32 to vector<8x8xf32>
    %47 = arith.mulf %46, %45 : vector<8x8xf32>
    %48 = arith.addf %42, %47 : vector<8x8xf32>
    %c1_45 = arith.constant 1 : index
    %c3_46 = arith.constant 3 : index
    %49 = memref.load %arg6[%c1_45, %c3_46] : memref<4x4xf32, #tpu.memory_space<smem>>
    %c0_47 = arith.constant 0 : index
    %c3_48 = arith.constant 3 : index
    %c0_49 = arith.constant 0 : index
    %c0_50 = arith.constant 0 : index
    %50 = vector.load %arg2[%c0_47, %c3_48, %c0_49, %c0_50] : memref<1x4x8x8xf32, #tpu.memory_space<vmem>>, vector<1x1x8x8xf32>
    %51 = vector.shape_cast %50 : vector<1x1x8x8xf32> to vector<8x8xf32>
    %52 = vector.broadcast %49 : f32 to vector<8x8xf32>
    %53 = arith.mulf %52, %51 : vector<8x8xf32>
    %54 = arith.addf %48, %53 : vector<8x8xf32>
    %c1_51 = arith.constant 1 : index
    %55 = memref.load %arg7[%c1_51] : memref<4xf32, #tpu.memory_space<smem>>
    %56 = vector.broadcast %55 : f32 to vector<8x8xf32>
    %57 = arith.addf %54, %56 : vector<8x8xf32>
    %cst_52 = arith.constant dense<0.000000e+00> : vector<8x8xf32>
    %58 = tpu.matmul %0, %57, %cst_52 {dimension_numbers = #tpu.dot_dimension_numbers<[1], [0], [0], [1], [0, 0, 1, 1], [], []>} : vector<8x8xf32>, vector<8x8xf32>, vector<8x8xf32> -> vector<8x8xf32>
    %cst_53 = arith.constant dense<0.000000e+00> : vector<8x16xf32>
    %59 = tpu.matmul %58, %1, %cst_53 {dimension_numbers = #tpu.dot_dimension_numbers<[1], [0], [0], [1], [0, 0, 1, 1], [], []>} : vector<8x8xf32>, vector<8x16xf32>, vector<8x16xf32> -> vector<8x16xf32>
    %cst_54 = arith.constant 0.000000e+00 : f32
    %60 = vector.broadcast %cst_54 : f32 to vector<8x16xf32>
    %61 = arith.maximumf %59, %60 : vector<8x16xf32>
    %c2_55 = arith.constant 2 : index
    %c0_56 = arith.constant 0 : index
    %62 = memref.load %arg6[%c2_55, %c0_56] : memref<4x4xf32, #tpu.memory_space<smem>>
    %c0_57 = arith.constant 0 : index
    %c0_58 = arith.constant 0 : index
    %c0_59 = arith.constant 0 : index
    %c0_60 = arith.constant 0 : index
    %63 = vector.load %arg2[%c0_57, %c0_58, %c0_59, %c0_60] : memref<1x4x8x8xf32, #tpu.memory_space<vmem>>, vector<1x1x8x8xf32>
    %64 = vector.shape_cast %63 : vector<1x1x8x8xf32> to vector<8x8xf32>
    %65 = vector.broadcast %62 : f32 to vector<8x8xf32>
    %66 = arith.mulf %65, %64 : vector<8x8xf32>
    %c2_61 = arith.constant 2 : index
    %c1_62 = arith.constant 1 : index
    %67 = memref.load %arg6[%c2_61, %c1_62] : memref<4x4xf32, #tpu.memory_space<smem>>
    %c0_63 = arith.constant 0 : index
    %c1_64 = arith.constant 1 : index
    %c0_65 = arith.constant 0 : index
    %c0_66 = arith.constant 0 : index
    %68 = vector.load %arg2[%c0_63, %c1_64, %c0_65, %c0_66] : memref<1x4x8x8xf32, #tpu.memory_space<vmem>>, vector<1x1x8x8xf32>
    %69 = vector.shape_cast %68 : vector<1x1x8x8xf32> to vector<8x8xf32>
    %70 = vector.broadcast %67 : f32 to vector<8x8xf32>
    %71 = arith.mulf %70, %69 : vector<8x8xf32>
    %72 = arith.addf %66, %71 : vector<8x8xf32>
    %c2_67 = arith.constant 2 : index
    %c2_68 = arith.constant 2 : index
    %73 = memref.load %arg6[%c2_67, %c2_68] : memref<4x4xf32, #tpu.memory_space<smem>>
    %c0_69 = arith.constant 0 : index
    %c2_70 = arith.constant 2 : index
    %c0_71 = arith.constant 0 : index
    %c0_72 = arith.constant 0 : index
    %74 = vector.load %arg2[%c0_69, %c2_70, %c0_71, %c0_72] : memref<1x4x8x8xf32, #tpu.memory_space<vmem>>, vector<1x1x8x8xf32>
    %75 = vector.shape_cast %74 : vector<1x1x8x8xf32> to vector<8x8xf32>
    %76 = vector.broadcast %73 : f32 to vector<8x8xf32>
    %77 = arith.mulf %76, %75 : vector<8x8xf32>
    %78 = arith.addf %72, %77 : vector<8x8xf32>
    %c2_73 = arith.constant 2 : index
    %c3_74 = arith.constant 3 : index
    %79 = memref.load %arg6[%c2_73, %c3_74] : memref<4x4xf32, #tpu.memory_space<smem>>
    %c0_75 = arith.constant 0 : index
    %c3_76 = arith.constant 3 : index
    %c0_77 = arith.constant 0 : index
    %c0_78 = arith.constant 0 : index
    %80 = vector.load %arg2[%c0_75, %c3_76, %c0_77, %c0_78] : memref<1x4x8x8xf32, #tpu.memory_space<vmem>>, vector<1x1x8x8xf32>
    %81 = vector.shape_cast %80 : vector<1x1x8x8xf32> to vector<8x8xf32>
    %82 = vector.broadcast %79 : f32 to vector<8x8xf32>
    %83 = arith.mulf %82, %81 : vector<8x8xf32>
    %84 = arith.addf %78, %83 : vector<8x8xf32>
    %c2_79 = arith.constant 2 : index
    %85 = memref.load %arg7[%c2_79] : memref<4xf32, #tpu.memory_space<smem>>
    %86 = vector.broadcast %85 : f32 to vector<8x8xf32>
    %87 = arith.addf %84, %86 : vector<8x8xf32>
    %cst_80 = arith.constant dense<0.000000e+00> : vector<8x8xf32>
    %88 = tpu.matmul %0, %87, %cst_80 {dimension_numbers = #tpu.dot_dimension_numbers<[1], [0], [0], [1], [0, 0, 1, 1], [], []>} : vector<8x8xf32>, vector<8x8xf32>, vector<8x8xf32> -> vector<8x8xf32>
    %cst_81 = arith.constant dense<0.000000e+00> : vector<8x16xf32>
    %89 = tpu.matmul %88, %1, %cst_81 {dimension_numbers = #tpu.dot_dimension_numbers<[1], [0], [0], [1], [0, 0, 1, 1], [], []>} : vector<8x8xf32>, vector<8x16xf32>, vector<8x16xf32> -> vector<8x16xf32>
    %cst_82 = arith.constant 0.000000e+00 : f32
    %90 = vector.broadcast %cst_82 : f32 to vector<8x16xf32>
    %91 = arith.maximumf %89, %90 : vector<8x16xf32>
    %c3_83 = arith.constant 3 : index
    %c0_84 = arith.constant 0 : index
    %92 = memref.load %arg6[%c3_83, %c0_84] : memref<4x4xf32, #tpu.memory_space<smem>>
    %c0_85 = arith.constant 0 : index
    %c0_86 = arith.constant 0 : index
    %c0_87 = arith.constant 0 : index
    %c0_88 = arith.constant 0 : index
    %93 = vector.load %arg2[%c0_85, %c0_86, %c0_87, %c0_88] : memref<1x4x8x8xf32, #tpu.memory_space<vmem>>, vector<1x1x8x8xf32>
    %94 = vector.shape_cast %93 : vector<1x1x8x8xf32> to vector<8x8xf32>
    %95 = vector.broadcast %92 : f32 to vector<8x8xf32>
    %96 = arith.mulf %95, %94 : vector<8x8xf32>
    %c3_89 = arith.constant 3 : index
    %c1_90 = arith.constant 1 : index
    %97 = memref.load %arg6[%c3_89, %c1_90] : memref<4x4xf32, #tpu.memory_space<smem>>
    %c0_91 = arith.constant 0 : index
    %c1_92 = arith.constant 1 : index
    %c0_93 = arith.constant 0 : index
    %c0_94 = arith.constant 0 : index
    %98 = vector.load %arg2[%c0_91, %c1_92, %c0_93, %c0_94] : memref<1x4x8x8xf32, #tpu.memory_space<vmem>>, vector<1x1x8x8xf32>
    %99 = vector.shape_cast %98 : vector<1x1x8x8xf32> to vector<8x8xf32>
    %100 = vector.broadcast %97 : f32 to vector<8x8xf32>
    %101 = arith.mulf %100, %99 : vector<8x8xf32>
    %102 = arith.addf %96, %101 : vector<8x8xf32>
    %c3_95 = arith.constant 3 : index
    %c2_96 = arith.constant 2 : index
    %103 = memref.load %arg6[%c3_95, %c2_96] : memref<4x4xf32, #tpu.memory_space<smem>>
    %c0_97 = arith.constant 0 : index
    %c2_98 = arith.constant 2 : index
    %c0_99 = arith.constant 0 : index
    %c0_100 = arith.constant 0 : index
    %104 = vector.load %arg2[%c0_97, %c2_98, %c0_99, %c0_100] : memref<1x4x8x8xf32, #tpu.memory_space<vmem>>, vector<1x1x8x8xf32>
    %105 = vector.shape_cast %104 : vector<1x1x8x8xf32> to vector<8x8xf32>
    %106 = vector.broadcast %103 : f32 to vector<8x8xf32>
    %107 = arith.mulf %106, %105 : vector<8x8xf32>
    %108 = arith.addf %102, %107 : vector<8x8xf32>
    %c3_101 = arith.constant 3 : index
    %c3_102 = arith.constant 3 : index
    %109 = memref.load %arg6[%c3_101, %c3_102] : memref<4x4xf32, #tpu.memory_space<smem>>
    %c0_103 = arith.constant 0 : index
    %c3_104 = arith.constant 3 : index
    %c0_105 = arith.constant 0 : index
    %c0_106 = arith.constant 0 : index
    %110 = vector.load %arg2[%c0_103, %c3_104, %c0_105, %c0_106] : memref<1x4x8x8xf32, #tpu.memory_space<vmem>>, vector<1x1x8x8xf32>
    %111 = vector.shape_cast %110 : vector<1x1x8x8xf32> to vector<8x8xf32>
    %112 = vector.broadcast %109 : f32 to vector<8x8xf32>
    %113 = arith.mulf %112, %111 : vector<8x8xf32>
    %114 = arith.addf %108, %113 : vector<8x8xf32>
    %c3_107 = arith.constant 3 : index
    %115 = memref.load %arg7[%c3_107] : memref<4xf32, #tpu.memory_space<smem>>
    %116 = vector.broadcast %115 : f32 to vector<8x8xf32>
    %117 = arith.addf %114, %116 : vector<8x8xf32>
    %cst_108 = arith.constant dense<0.000000e+00> : vector<8x8xf32>
    %118 = tpu.matmul %0, %117, %cst_108 {dimension_numbers = #tpu.dot_dimension_numbers<[1], [0], [0], [1], [0, 0, 1, 1], [], []>} : vector<8x8xf32>, vector<8x8xf32>, vector<8x8xf32> -> vector<8x8xf32>
    %cst_109 = arith.constant dense<0.000000e+00> : vector<8x16xf32>
    %119 = tpu.matmul %118, %1, %cst_109 {dimension_numbers = #tpu.dot_dimension_numbers<[1], [0], [0], [1], [0, 0, 1, 1], [], []>} : vector<8x8xf32>, vector<8x16xf32>, vector<8x16xf32> -> vector<8x16xf32>
    %cst_110 = arith.constant 0.000000e+00 : f32
    %120 = vector.broadcast %cst_110 : f32 to vector<8x16xf32>
    %121 = arith.maximumf %119, %120 : vector<8x16xf32>
    %c0_111 = arith.constant 0 : index
    %c0_112 = arith.constant 0 : index
    %122 = memref.load %arg8[%c0_111, %c0_112] : memref<4x4xf32, #tpu.memory_space<smem>>
    %c0_113 = arith.constant 0 : index
    %c0_114 = arith.constant 0 : index
    %c0_115 = arith.constant 0 : index
    %c0_116 = arith.constant 0 : index
    %123 = vector.load %arg3[%c0_113, %c0_114, %c0_115, %c0_116] : memref<1x4x8x16xf32, #tpu.memory_space<vmem>>, vector<1x1x8x16xf32>
    %124 = vector.shape_cast %123 : vector<1x1x8x16xf32> to vector<8x16xf32>
    %125 = vector.broadcast %122 : f32 to vector<8x16xf32>
    %126 = arith.mulf %125, %124 : vector<8x16xf32>
    %c0_117 = arith.constant 0 : index
    %c1_118 = arith.constant 1 : index
    %127 = memref.load %arg8[%c0_117, %c1_118] : memref<4x4xf32, #tpu.memory_space<smem>>
    %c0_119 = arith.constant 0 : index
    %c1_120 = arith.constant 1 : index
    %c0_121 = arith.constant 0 : index
    %c0_122 = arith.constant 0 : index
    %128 = vector.load %arg3[%c0_119, %c1_120, %c0_121, %c0_122] : memref<1x4x8x16xf32, #tpu.memory_space<vmem>>, vector<1x1x8x16xf32>
    %129 = vector.shape_cast %128 : vector<1x1x8x16xf32> to vector<8x16xf32>
    %130 = vector.broadcast %127 : f32 to vector<8x16xf32>
    %131 = arith.mulf %130, %129 : vector<8x16xf32>
    %132 = arith.addf %126, %131 : vector<8x16xf32>
    %c0_123 = arith.constant 0 : index
    %c2_124 = arith.constant 2 : index
    %133 = memref.load %arg8[%c0_123, %c2_124] : memref<4x4xf32, #tpu.memory_space<smem>>
    %c0_125 = arith.constant 0 : index
    %c2_126 = arith.constant 2 : index
    %c0_127 = arith.constant 0 : index
    %c0_128 = arith.constant 0 : index
    %134 = vector.load %arg3[%c0_125, %c2_126, %c0_127, %c0_128] : memref<1x4x8x16xf32, #tpu.memory_space<vmem>>, vector<1x1x8x16xf32>
    %135 = vector.shape_cast %134 : vector<1x1x8x16xf32> to vector<8x16xf32>
    %136 = vector.broadcast %133 : f32 to vector<8x16xf32>
    %137 = arith.mulf %136, %135 : vector<8x16xf32>
    %138 = arith.addf %132, %137 : vector<8x16xf32>
    %c0_129 = arith.constant 0 : index
    %c3_130 = arith.constant 3 : index
    %139 = memref.load %arg8[%c0_129, %c3_130] : memref<4x4xf32, #tpu.memory_space<smem>>
    %c0_131 = arith.constant 0 : index
    %c3_132 = arith.constant 3 : index
    %c0_133 = arith.constant 0 : index
    %c0_134 = arith.constant 0 : index
    %140 = vector.load %arg3[%c0_131, %c3_132, %c0_133, %c0_134] : memref<1x4x8x16xf32, #tpu.memory_space<vmem>>, vector<1x1x8x16xf32>
    %141 = vector.shape_cast %140 : vector<1x1x8x16xf32> to vector<8x16xf32>
    %142 = vector.broadcast %139 : f32 to vector<8x16xf32>
    %143 = arith.mulf %142, %141 : vector<8x16xf32>
    %144 = arith.addf %138, %143 : vector<8x16xf32>
    %c0_135 = arith.constant 0 : index
    %145 = memref.load %arg9[%c0_135] : memref<4xf32, #tpu.memory_space<smem>>
    %146 = vector.broadcast %145 : f32 to vector<8x16xf32>
    %147 = arith.addf %144, %146 : vector<8x16xf32>
    %cst_136 = arith.constant 0.000000e+00 : f32
    %148 = vector.broadcast %cst_136 : f32 to vector<8x16xf32>
    %149 = arith.maximumf %147, %148 : vector<8x16xf32>
    %c1_137 = arith.constant 1 : index
    %c0_138 = arith.constant 0 : index
    %150 = memref.load %arg8[%c1_137, %c0_138] : memref<4x4xf32, #tpu.memory_space<smem>>
    %c0_139 = arith.constant 0 : index
    %c0_140 = arith.constant 0 : index
    %c0_141 = arith.constant 0 : index
    %c0_142 = arith.constant 0 : index
    %151 = vector.load %arg3[%c0_139, %c0_140, %c0_141, %c0_142] : memref<1x4x8x16xf32, #tpu.memory_space<vmem>>, vector<1x1x8x16xf32>
    %152 = vector.shape_cast %151 : vector<1x1x8x16xf32> to vector<8x16xf32>
    %153 = vector.broadcast %150 : f32 to vector<8x16xf32>
    %154 = arith.mulf %153, %152 : vector<8x16xf32>
    %c1_143 = arith.constant 1 : index
    %c1_144 = arith.constant 1 : index
    %155 = memref.load %arg8[%c1_143, %c1_144] : memref<4x4xf32, #tpu.memory_space<smem>>
    %c0_145 = arith.constant 0 : index
    %c1_146 = arith.constant 1 : index
    %c0_147 = arith.constant 0 : index
    %c0_148 = arith.constant 0 : index
    %156 = vector.load %arg3[%c0_145, %c1_146, %c0_147, %c0_148] : memref<1x4x8x16xf32, #tpu.memory_space<vmem>>, vector<1x1x8x16xf32>
    %157 = vector.shape_cast %156 : vector<1x1x8x16xf32> to vector<8x16xf32>
    %158 = vector.broadcast %155 : f32 to vector<8x16xf32>
    %159 = arith.mulf %158, %157 : vector<8x16xf32>
    %160 = arith.addf %154, %159 : vector<8x16xf32>
    %c1_149 = arith.constant 1 : index
    %c2_150 = arith.constant 2 : index
    %161 = memref.load %arg8[%c1_149, %c2_150] : memref<4x4xf32, #tpu.memory_space<smem>>
    %c0_151 = arith.constant 0 : index
    %c2_152 = arith.constant 2 : index
    %c0_153 = arith.constant 0 : index
    %c0_154 = arith.constant 0 : index
    %162 = vector.load %arg3[%c0_151, %c2_152, %c0_153, %c0_154] : memref<1x4x8x16xf32, #tpu.memory_space<vmem>>, vector<1x1x8x16xf32>
    %163 = vector.shape_cast %162 : vector<1x1x8x16xf32> to vector<8x16xf32>
    %164 = vector.broadcast %161 : f32 to vector<8x16xf32>
    %165 = arith.mulf %164, %163 : vector<8x16xf32>
    %166 = arith.addf %160, %165 : vector<8x16xf32>
    %c1_155 = arith.constant 1 : index
    %c3_156 = arith.constant 3 : index
    %167 = memref.load %arg8[%c1_155, %c3_156] : memref<4x4xf32, #tpu.memory_space<smem>>
    %c0_157 = arith.constant 0 : index
    %c3_158 = arith.constant 3 : index
    %c0_159 = arith.constant 0 : index
    %c0_160 = arith.constant 0 : index
    %168 = vector.load %arg3[%c0_157, %c3_158, %c0_159, %c0_160] : memref<1x4x8x16xf32, #tpu.memory_space<vmem>>, vector<1x1x8x16xf32>
    %169 = vector.shape_cast %168 : vector<1x1x8x16xf32> to vector<8x16xf32>
    %170 = vector.broadcast %167 : f32 to vector<8x16xf32>
    %171 = arith.mulf %170, %169 : vector<8x16xf32>
    %172 = arith.addf %166, %171 : vector<8x16xf32>
    %c1_161 = arith.constant 1 : index
    %173 = memref.load %arg9[%c1_161] : memref<4xf32, #tpu.memory_space<smem>>
    %174 = vector.broadcast %173 : f32 to vector<8x16xf32>
    %175 = arith.addf %172, %174 : vector<8x16xf32>
    %cst_162 = arith.constant 0.000000e+00 : f32
    %176 = vector.broadcast %cst_162 : f32 to vector<8x16xf32>
    %177 = arith.maximumf %175, %176 : vector<8x16xf32>
    %c2_163 = arith.constant 2 : index
    %c0_164 = arith.constant 0 : index
    %178 = memref.load %arg8[%c2_163, %c0_164] : memref<4x4xf32, #tpu.memory_space<smem>>
    %c0_165 = arith.constant 0 : index
    %c0_166 = arith.constant 0 : index
    %c0_167 = arith.constant 0 : index
    %c0_168 = arith.constant 0 : index
    %179 = vector.load %arg3[%c0_165, %c0_166, %c0_167, %c0_168] : memref<1x4x8x16xf32, #tpu.memory_space<vmem>>, vector<1x1x8x16xf32>
    %180 = vector.shape_cast %179 : vector<1x1x8x16xf32> to vector<8x16xf32>
    %181 = vector.broadcast %178 : f32 to vector<8x16xf32>
    %182 = arith.mulf %181, %180 : vector<8x16xf32>
    %c2_169 = arith.constant 2 : index
    %c1_170 = arith.constant 1 : index
    %183 = memref.load %arg8[%c2_169, %c1_170] : memref<4x4xf32, #tpu.memory_space<smem>>
    %c0_171 = arith.constant 0 : index
    %c1_172 = arith.constant 1 : index
    %c0_173 = arith.constant 0 : index
    %c0_174 = arith.constant 0 : index
    %184 = vector.load %arg3[%c0_171, %c1_172, %c0_173, %c0_174] : memref<1x4x8x16xf32, #tpu.memory_space<vmem>>, vector<1x1x8x16xf32>
    %185 = vector.shape_cast %184 : vector<1x1x8x16xf32> to vector<8x16xf32>
    %186 = vector.broadcast %183 : f32 to vector<8x16xf32>
    %187 = arith.mulf %186, %185 : vector<8x16xf32>
    %188 = arith.addf %182, %187 : vector<8x16xf32>
    %c2_175 = arith.constant 2 : index
    %c2_176 = arith.constant 2 : index
    %189 = memref.load %arg8[%c2_175, %c2_176] : memref<4x4xf32, #tpu.memory_space<smem>>
    %c0_177 = arith.constant 0 : index
    %c2_178 = arith.constant 2 : index
    %c0_179 = arith.constant 0 : index
    %c0_180 = arith.constant 0 : index
    %190 = vector.load %arg3[%c0_177, %c2_178, %c0_179, %c0_180] : memref<1x4x8x16xf32, #tpu.memory_space<vmem>>, vector<1x1x8x16xf32>
    %191 = vector.shape_cast %190 : vector<1x1x8x16xf32> to vector<8x16xf32>
    %192 = vector.broadcast %189 : f32 to vector<8x16xf32>
    %193 = arith.mulf %192, %191 : vector<8x16xf32>
    %194 = arith.addf %188, %193 : vector<8x16xf32>
    %c2_181 = arith.constant 2 : index
    %c3_182 = arith.constant 3 : index
    %195 = memref.load %arg8[%c2_181, %c3_182] : memref<4x4xf32, #tpu.memory_space<smem>>
    %c0_183 = arith.constant 0 : index
    %c3_184 = arith.constant 3 : index
    %c0_185 = arith.constant 0 : index
    %c0_186 = arith.constant 0 : index
    %196 = vector.load %arg3[%c0_183, %c3_184, %c0_185, %c0_186] : memref<1x4x8x16xf32, #tpu.memory_space<vmem>>, vector<1x1x8x16xf32>
    %197 = vector.shape_cast %196 : vector<1x1x8x16xf32> to vector<8x16xf32>
    %198 = vector.broadcast %195 : f32 to vector<8x16xf32>
    %199 = arith.mulf %198, %197 : vector<8x16xf32>
    %200 = arith.addf %194, %199 : vector<8x16xf32>
    %c2_187 = arith.constant 2 : index
    %201 = memref.load %arg9[%c2_187] : memref<4xf32, #tpu.memory_space<smem>>
    %202 = vector.broadcast %201 : f32 to vector<8x16xf32>
    %203 = arith.addf %200, %202 : vector<8x16xf32>
    %cst_188 = arith.constant 0.000000e+00 : f32
    %204 = vector.broadcast %cst_188 : f32 to vector<8x16xf32>
    %205 = arith.maximumf %203, %204 : vector<8x16xf32>
    %c3_189 = arith.constant 3 : index
    %c0_190 = arith.constant 0 : index
    %206 = memref.load %arg8[%c3_189, %c0_190] : memref<4x4xf32, #tpu.memory_space<smem>>
    %c0_191 = arith.constant 0 : index
    %c0_192 = arith.constant 0 : index
    %c0_193 = arith.constant 0 : index
    %c0_194 = arith.constant 0 : index
    %207 = vector.load %arg3[%c0_191, %c0_192, %c0_193, %c0_194] : memref<1x4x8x16xf32, #tpu.memory_space<vmem>>, vector<1x1x8x16xf32>
    %208 = vector.shape_cast %207 : vector<1x1x8x16xf32> to vector<8x16xf32>
    %209 = vector.broadcast %206 : f32 to vector<8x16xf32>
    %210 = arith.mulf %209, %208 : vector<8x16xf32>
    %c3_195 = arith.constant 3 : index
    %c1_196 = arith.constant 1 : index
    %211 = memref.load %arg8[%c3_195, %c1_196] : memref<4x4xf32, #tpu.memory_space<smem>>
    %c0_197 = arith.constant 0 : index
    %c1_198 = arith.constant 1 : index
    %c0_199 = arith.constant 0 : index
    %c0_200 = arith.constant 0 : index
    %212 = vector.load %arg3[%c0_197, %c1_198, %c0_199, %c0_200] : memref<1x4x8x16xf32, #tpu.memory_space<vmem>>, vector<1x1x8x16xf32>
    %213 = vector.shape_cast %212 : vector<1x1x8x16xf32> to vector<8x16xf32>
    %214 = vector.broadcast %211 : f32 to vector<8x16xf32>
    %215 = arith.mulf %214, %213 : vector<8x16xf32>
    %216 = arith.addf %210, %215 : vector<8x16xf32>
    %c3_201 = arith.constant 3 : index
    %c2_202 = arith.constant 2 : index
    %217 = memref.load %arg8[%c3_201, %c2_202] : memref<4x4xf32, #tpu.memory_space<smem>>
    %c0_203 = arith.constant 0 : index
    %c2_204 = arith.constant 2 : index
    %c0_205 = arith.constant 0 : index
    %c0_206 = arith.constant 0 : index
    %218 = vector.load %arg3[%c0_203, %c2_204, %c0_205, %c0_206] : memref<1x4x8x16xf32, #tpu.memory_space<vmem>>, vector<1x1x8x16xf32>
    %219 = vector.shape_cast %218 : vector<1x1x8x16xf32> to vector<8x16xf32>
    %220 = vector.broadcast %217 : f32 to vector<8x16xf32>
    %221 = arith.mulf %220, %219 : vector<8x16xf32>
    %222 = arith.addf %216, %221 : vector<8x16xf32>
    %c3_207 = arith.constant 3 : index
    %c3_208 = arith.constant 3 : index
    %223 = memref.load %arg8[%c3_207, %c3_208] : memref<4x4xf32, #tpu.memory_space<smem>>
    %c0_209 = arith.constant 0 : index
    %c3_210 = arith.constant 3 : index
    %c0_211 = arith.constant 0 : index
    %c0_212 = arith.constant 0 : index
    %224 = vector.load %arg3[%c0_209, %c3_210, %c0_211, %c0_212] : memref<1x4x8x16xf32, #tpu.memory_space<vmem>>, vector<1x1x8x16xf32>
    %225 = vector.shape_cast %224 : vector<1x1x8x16xf32> to vector<8x16xf32>
    %226 = vector.broadcast %223 : f32 to vector<8x16xf32>
    %227 = arith.mulf %226, %225 : vector<8x16xf32>
    %228 = arith.addf %222, %227 : vector<8x16xf32>
    %c3_213 = arith.constant 3 : index
    %229 = memref.load %arg9[%c3_213] : memref<4xf32, #tpu.memory_space<smem>>
    %230 = vector.broadcast %229 : f32 to vector<8x16xf32>
    %231 = arith.addf %228, %230 : vector<8x16xf32>
    %cst_214 = arith.constant 0.000000e+00 : f32
    %232 = vector.broadcast %cst_214 : f32 to vector<8x16xf32>
    %233 = arith.maximumf %231, %232 : vector<8x16xf32>
    %234 = tpu.iota {dimensions = array<i32: 1>} : vector<1x8xi32>
    %cst_215 = arith.constant 0.000000e+00 : f32
    %235 = vector.broadcast %cst_215 : f32 to vector<1x8xf32>
    %cst_216 = arith.constant 0.000000e+00 : f32
    %236 = vector.broadcast %cst_216 : f32 to vector<1x8xf32>
    %c0_i32 = arith.constant 0 : i32
    %237 = vector.broadcast %c0_i32 : i32 to vector<1x8xi32>
    %238 = arith.cmpi eq, %234, %237 : vector<1x8xi32>
    %239 = vector.shape_cast %31 : vector<8x16xf32> to vector<1x8x16xf32>
    %cst_217 = arith.constant dense<0.000000e+00> : vector<1xf32>
    %240 = vector.multi_reduction <add>, %239, %cst_217 [1, 2] : vector<1x8x16xf32> to vector<1xf32>
    %241 = vector.shape_cast %240 : vector<1xf32> to vector<1x1x1xf32>
    %242 = vector.extract %241[0, 0, 0] : f32 from vector<1x1x1xf32>
    %cst_218 = arith.constant 0.000000e+00 : f32
    %243 = vector.broadcast %242 : f32 to vector<1x8xf32>
    %244 = vector.broadcast %cst_218 : f32 to vector<1x8xf32>
    %245 = arith.select %238, %243, %244 : vector<1x8xi1>, vector<1x8xf32>
    %246 = arith.addf %235, %245 : vector<1x8xf32>
    %247 = arith.mulf %31, %31 : vector<8x16xf32>
    %248 = vector.shape_cast %247 : vector<8x16xf32> to vector<1x8x16xf32>
    %cst_219 = arith.constant dense<0.000000e+00> : vector<1xf32>
    %249 = vector.multi_reduction <add>, %248, %cst_219 [1, 2] : vector<1x8x16xf32> to vector<1xf32>
    %250 = vector.shape_cast %249 : vector<1xf32> to vector<1x1x1xf32>
    %251 = vector.extract %250[0, 0, 0] : f32 from vector<1x1x1xf32>
    %cst_220 = arith.constant 0.000000e+00 : f32
    %252 = vector.broadcast %251 : f32 to vector<1x8xf32>
    %253 = vector.broadcast %cst_220 : f32 to vector<1x8xf32>
    %254 = arith.select %238, %252, %253 : vector<1x8xi1>, vector<1x8xf32>
    %255 = arith.addf %236, %254 : vector<1x8xf32>
    %c1_i32 = arith.constant 1 : i32
    %256 = vector.broadcast %c1_i32 : i32 to vector<1x8xi32>
    %257 = arith.cmpi eq, %234, %256 : vector<1x8xi32>
    %258 = vector.shape_cast %61 : vector<8x16xf32> to vector<1x8x16xf32>
    %cst_221 = arith.constant dense<0.000000e+00> : vector<1xf32>
    %259 = vector.multi_reduction <add>, %258, %cst_221 [1, 2] : vector<1x8x16xf32> to vector<1xf32>
    %260 = vector.shape_cast %259 : vector<1xf32> to vector<1x1x1xf32>
    %261 = vector.extract %260[0, 0, 0] : f32 from vector<1x1x1xf32>
    %cst_222 = arith.constant 0.000000e+00 : f32
    %262 = vector.broadcast %261 : f32 to vector<1x8xf32>
    %263 = vector.broadcast %cst_222 : f32 to vector<1x8xf32>
    %264 = arith.select %257, %262, %263 : vector<1x8xi1>, vector<1x8xf32>
    %265 = arith.addf %246, %264 : vector<1x8xf32>
    %266 = arith.mulf %61, %61 : vector<8x16xf32>
    %267 = vector.shape_cast %266 : vector<8x16xf32> to vector<1x8x16xf32>
    %cst_223 = arith.constant dense<0.000000e+00> : vector<1xf32>
    %268 = vector.multi_reduction <add>, %267, %cst_223 [1, 2] : vector<1x8x16xf32> to vector<1xf32>
    %269 = vector.shape_cast %268 : vector<1xf32> to vector<1x1x1xf32>
    %270 = vector.extract %269[0, 0, 0] : f32 from vector<1x1x1xf32>
    %cst_224 = arith.constant 0.000000e+00 : f32
    %271 = vector.broadcast %270 : f32 to vector<1x8xf32>
    %272 = vector.broadcast %cst_224 : f32 to vector<1x8xf32>
    %273 = arith.select %257, %271, %272 : vector<1x8xi1>, vector<1x8xf32>
    %274 = arith.addf %255, %273 : vector<1x8xf32>
    %c2_i32 = arith.constant 2 : i32
    %275 = vector.broadcast %c2_i32 : i32 to vector<1x8xi32>
    %276 = arith.cmpi eq, %234, %275 : vector<1x8xi32>
    %277 = vector.shape_cast %91 : vector<8x16xf32> to vector<1x8x16xf32>
    %cst_225 = arith.constant dense<0.000000e+00> : vector<1xf32>
    %278 = vector.multi_reduction <add>, %277, %cst_225 [1, 2] : vector<1x8x16xf32> to vector<1xf32>
    %279 = vector.shape_cast %278 : vector<1xf32> to vector<1x1x1xf32>
    %280 = vector.extract %279[0, 0, 0] : f32 from vector<1x1x1xf32>
    %cst_226 = arith.constant 0.000000e+00 : f32
    %281 = vector.broadcast %280 : f32 to vector<1x8xf32>
    %282 = vector.broadcast %cst_226 : f32 to vector<1x8xf32>
    %283 = arith.select %276, %281, %282 : vector<1x8xi1>, vector<1x8xf32>
    %284 = arith.addf %265, %283 : vector<1x8xf32>
    %285 = arith.mulf %91, %91 : vector<8x16xf32>
    %286 = vector.shape_cast %285 : vector<8x16xf32> to vector<1x8x16xf32>
    %cst_227 = arith.constant dense<0.000000e+00> : vector<1xf32>
    %287 = vector.multi_reduction <add>, %286, %cst_227 [1, 2] : vector<1x8x16xf32> to vector<1xf32>
    %288 = vector.shape_cast %287 : vector<1xf32> to vector<1x1x1xf32>
    %289 = vector.extract %288[0, 0, 0] : f32 from vector<1x1x1xf32>
    %cst_228 = arith.constant 0.000000e+00 : f32
    %290 = vector.broadcast %289 : f32 to vector<1x8xf32>
    %291 = vector.broadcast %cst_228 : f32 to vector<1x8xf32>
    %292 = arith.select %276, %290, %291 : vector<1x8xi1>, vector<1x8xf32>
    %293 = arith.addf %274, %292 : vector<1x8xf32>
    %c3_i32 = arith.constant 3 : i32
    %294 = vector.broadcast %c3_i32 : i32 to vector<1x8xi32>
    %295 = arith.cmpi eq, %234, %294 : vector<1x8xi32>
    %296 = vector.shape_cast %121 : vector<8x16xf32> to vector<1x8x16xf32>
    %cst_229 = arith.constant dense<0.000000e+00> : vector<1xf32>
    %297 = vector.multi_reduction <add>, %296, %cst_229 [1, 2] : vector<1x8x16xf32> to vector<1xf32>
    %298 = vector.shape_cast %297 : vector<1xf32> to vector<1x1x1xf32>
    %299 = vector.extract %298[0, 0, 0] : f32 from vector<1x1x1xf32>
    %cst_230 = arith.constant 0.000000e+00 : f32
    %300 = vector.broadcast %299 : f32 to vector<1x8xf32>
    %301 = vector.broadcast %cst_230 : f32 to vector<1x8xf32>
    %302 = arith.select %295, %300, %301 : vector<1x8xi1>, vector<1x8xf32>
    %303 = arith.addf %284, %302 : vector<1x8xf32>
    %304 = arith.mulf %121, %121 : vector<8x16xf32>
    %305 = vector.shape_cast %304 : vector<8x16xf32> to vector<1x8x16xf32>
    %cst_231 = arith.constant dense<0.000000e+00> : vector<1xf32>
    %306 = vector.multi_reduction <add>, %305, %cst_231 [1, 2] : vector<1x8x16xf32> to vector<1xf32>
    %307 = vector.shape_cast %306 : vector<1xf32> to vector<1x1x1xf32>
    %308 = vector.extract %307[0, 0, 0] : f32 from vector<1x1x1xf32>
    %cst_232 = arith.constant 0.000000e+00 : f32
    %309 = vector.broadcast %308 : f32 to vector<1x8xf32>
    %310 = vector.broadcast %cst_232 : f32 to vector<1x8xf32>
    %311 = arith.select %295, %309, %310 : vector<1x8xi1>, vector<1x8xf32>
    %312 = arith.addf %293, %311 : vector<1x8xf32>
    %c4_i32 = arith.constant 4 : i32
    %313 = vector.broadcast %c4_i32 : i32 to vector<1x8xi32>
    %314 = arith.cmpi eq, %234, %313 : vector<1x8xi32>
    %315 = vector.shape_cast %149 : vector<8x16xf32> to vector<1x8x16xf32>
    %cst_233 = arith.constant dense<0.000000e+00> : vector<1xf32>
    %316 = vector.multi_reduction <add>, %315, %cst_233 [1, 2] : vector<1x8x16xf32> to vector<1xf32>
    %317 = vector.shape_cast %316 : vector<1xf32> to vector<1x1x1xf32>
    %318 = vector.extract %317[0, 0, 0] : f32 from vector<1x1x1xf32>
    %cst_234 = arith.constant 0.000000e+00 : f32
    %319 = vector.broadcast %318 : f32 to vector<1x8xf32>
    %320 = vector.broadcast %cst_234 : f32 to vector<1x8xf32>
    %321 = arith.select %314, %319, %320 : vector<1x8xi1>, vector<1x8xf32>
    %322 = arith.addf %303, %321 : vector<1x8xf32>
    %323 = arith.mulf %149, %149 : vector<8x16xf32>
    %324 = vector.shape_cast %323 : vector<8x16xf32> to vector<1x8x16xf32>
    %cst_235 = arith.constant dense<0.000000e+00> : vector<1xf32>
    %325 = vector.multi_reduction <add>, %324, %cst_235 [1, 2] : vector<1x8x16xf32> to vector<1xf32>
    %326 = vector.shape_cast %325 : vector<1xf32> to vector<1x1x1xf32>
    %327 = vector.extract %326[0, 0, 0] : f32 from vector<1x1x1xf32>
    %cst_236 = arith.constant 0.000000e+00 : f32
    %328 = vector.broadcast %327 : f32 to vector<1x8xf32>
    %329 = vector.broadcast %cst_236 : f32 to vector<1x8xf32>
    %330 = arith.select %314, %328, %329 : vector<1x8xi1>, vector<1x8xf32>
    %331 = arith.addf %312, %330 : vector<1x8xf32>
    %c5_i32 = arith.constant 5 : i32
    %332 = vector.broadcast %c5_i32 : i32 to vector<1x8xi32>
    %333 = arith.cmpi eq, %234, %332 : vector<1x8xi32>
    %334 = vector.shape_cast %177 : vector<8x16xf32> to vector<1x8x16xf32>
    %cst_237 = arith.constant dense<0.000000e+00> : vector<1xf32>
    %335 = vector.multi_reduction <add>, %334, %cst_237 [1, 2] : vector<1x8x16xf32> to vector<1xf32>
    %336 = vector.shape_cast %335 : vector<1xf32> to vector<1x1x1xf32>
    %337 = vector.extract %336[0, 0, 0] : f32 from vector<1x1x1xf32>
    %cst_238 = arith.constant 0.000000e+00 : f32
    %338 = vector.broadcast %337 : f32 to vector<1x8xf32>
    %339 = vector.broadcast %cst_238 : f32 to vector<1x8xf32>
    %340 = arith.select %333, %338, %339 : vector<1x8xi1>, vector<1x8xf32>
    %341 = arith.addf %322, %340 : vector<1x8xf32>
    %342 = arith.mulf %177, %177 : vector<8x16xf32>
    %343 = vector.shape_cast %342 : vector<8x16xf32> to vector<1x8x16xf32>
    %cst_239 = arith.constant dense<0.000000e+00> : vector<1xf32>
    %344 = vector.multi_reduction <add>, %343, %cst_239 [1, 2] : vector<1x8x16xf32> to vector<1xf32>
    %345 = vector.shape_cast %344 : vector<1xf32> to vector<1x1x1xf32>
    %346 = vector.extract %345[0, 0, 0] : f32 from vector<1x1x1xf32>
    %cst_240 = arith.constant 0.000000e+00 : f32
    %347 = vector.broadcast %346 : f32 to vector<1x8xf32>
    %348 = vector.broadcast %cst_240 : f32 to vector<1x8xf32>
    %349 = arith.select %333, %347, %348 : vector<1x8xi1>, vector<1x8xf32>
    %350 = arith.addf %331, %349 : vector<1x8xf32>
    %c6_i32 = arith.constant 6 : i32
    %351 = vector.broadcast %c6_i32 : i32 to vector<1x8xi32>
    %352 = arith.cmpi eq, %234, %351 : vector<1x8xi32>
    %353 = vector.shape_cast %205 : vector<8x16xf32> to vector<1x8x16xf32>
    %cst_241 = arith.constant dense<0.000000e+00> : vector<1xf32>
    %354 = vector.multi_reduction <add>, %353, %cst_241 [1, 2] : vector<1x8x16xf32> to vector<1xf32>
    %355 = vector.shape_cast %354 : vector<1xf32> to vector<1x1x1xf32>
    %356 = vector.extract %355[0, 0, 0] : f32 from vector<1x1x1xf32>
    %cst_242 = arith.constant 0.000000e+00 : f32
    %357 = vector.broadcast %356 : f32 to vector<1x8xf32>
    %358 = vector.broadcast %cst_242 : f32 to vector<1x8xf32>
    %359 = arith.select %352, %357, %358 : vector<1x8xi1>, vector<1x8xf32>
    %360 = arith.addf %341, %359 : vector<1x8xf32>
    %361 = arith.mulf %205, %205 : vector<8x16xf32>
    %362 = vector.shape_cast %361 : vector<8x16xf32> to vector<1x8x16xf32>
    %cst_243 = arith.constant dense<0.000000e+00> : vector<1xf32>
    %363 = vector.multi_reduction <add>, %362, %cst_243 [1, 2] : vector<1x8x16xf32> to vector<1xf32>
    %364 = vector.shape_cast %363 : vector<1xf32> to vector<1x1x1xf32>
    %365 = vector.extract %364[0, 0, 0] : f32 from vector<1x1x1xf32>
    %cst_244 = arith.constant 0.000000e+00 : f32
    %366 = vector.broadcast %365 : f32 to vector<1x8xf32>
    %367 = vector.broadcast %cst_244 : f32 to vector<1x8xf32>
    %368 = arith.select %352, %366, %367 : vector<1x8xi1>, vector<1x8xf32>
    %369 = arith.addf %350, %368 : vector<1x8xf32>
    %c7_i32 = arith.constant 7 : i32
    %370 = vector.broadcast %c7_i32 : i32 to vector<1x8xi32>
    %371 = arith.cmpi eq, %234, %370 : vector<1x8xi32>
    %372 = vector.shape_cast %233 : vector<8x16xf32> to vector<1x8x16xf32>
    %cst_245 = arith.constant dense<0.000000e+00> : vector<1xf32>
    %373 = vector.multi_reduction <add>, %372, %cst_245 [1, 2] : vector<1x8x16xf32> to vector<1xf32>
    %374 = vector.shape_cast %373 : vector<1xf32> to vector<1x1x1xf32>
    %375 = vector.extract %374[0, 0, 0] : f32 from vector<1x1x1xf32>
    %cst_246 = arith.constant 0.000000e+00 : f32
    %376 = vector.broadcast %375 : f32 to vector<1x8xf32>
    %377 = vector.broadcast %cst_246 : f32 to vector<1x8xf32>
    %378 = arith.select %371, %376, %377 : vector<1x8xi1>, vector<1x8xf32>
    %379 = arith.addf %360, %378 : vector<1x8xf32>
    %380 = arith.mulf %233, %233 : vector<8x16xf32>
    %381 = vector.shape_cast %380 : vector<8x16xf32> to vector<1x8x16xf32>
    %cst_247 = arith.constant dense<0.000000e+00> : vector<1xf32>
    %382 = vector.multi_reduction <add>, %381, %cst_247 [1, 2] : vector<1x8x16xf32> to vector<1xf32>
    %383 = vector.shape_cast %382 : vector<1xf32> to vector<1x1x1xf32>
    %384 = vector.extract %383[0, 0, 0] : f32 from vector<1x1x1xf32>
    %cst_248 = arith.constant 0.000000e+00 : f32
    %385 = vector.broadcast %384 : f32 to vector<1x8xf32>
    %386 = vector.broadcast %cst_248 : f32 to vector<1x8xf32>
    %387 = arith.select %371, %385, %386 : vector<1x8xi1>, vector<1x8xf32>
    %388 = arith.addf %369, %387 : vector<1x8xf32>
    %c0_249 = arith.constant 0 : index
    %c0_250 = arith.constant 0 : index
    %c0_251 = arith.constant 0 : index
    %c0_252 = arith.constant 0 : index
    %389 = vector.load %arg10[%c0_249, %c0_250, %c0_251, %c0_252] : memref<1x1x1x8xf32, #tpu.memory_space<vmem>>, vector<1x1x1x8xf32>
    %390 = vector.shape_cast %389 : vector<1x1x1x8xf32> to vector<1x8xf32>
    %391 = vector.shape_cast %379 : vector<1x8xf32> to vector<1x1x1x8xf32>
    tpu.vector_store %arg10[%c0_249, %c0_250, %c0_251, %c0_252], %391 {strides = array<i32>} : memref<1x1x1x8xf32, #tpu.memory_space<vmem>>, vector<1x1x1x8xf32>,
    %c0_253 = arith.constant 0 : index
    %c0_254 = arith.constant 0 : index
    %c0_255 = arith.constant 0 : index
    %c0_256 = arith.constant 0 : index
    %392 = vector.load %arg11[%c0_253, %c0_254, %c0_255, %c0_256] : memref<1x1x1x8xf32, #tpu.memory_space<vmem>>, vector<1x1x1x8xf32>
    %393 = vector.shape_cast %392 : vector<1x1x1x8xf32> to vector<1x8xf32>
    %394 = vector.shape_cast %388 : vector<1x8xf32> to vector<1x1x1x8xf32>
    tpu.vector_store %arg11[%c0_253, %c0_254, %c0_255, %c0_256], %394 {strides = array<i32>} : memref<1x1x1x8xf32, #tpu.memory_space<vmem>>, vector<1x1x1x8xf32>,
    return
  }
  func.func @transform_0(%arg0: i32, %arg1: i32) -> (i32, i32, i32, i32) {
    %c0_i32 = arith.constant 0 : i32
    %c0_i32_0 = arith.constant 0 : i32
    %c0_i32_1 = arith.constant 0 : i32
    %c0_i32_2 = arith.constant 0 : i32
    return %arg0, %c0_i32, %c0_i32_0, %c0_i32_1 : i32, i32, i32, i32
  }
  func.func @transform_1(%arg0: i32, %arg1: i32) -> (i32, i32, i32, i32) {
    %c0_i32 = arith.constant 0 : i32
    %c0_i32_0 = arith.constant 0 : i32
    %c0_i32_1 = arith.constant 0 : i32
    return %arg0, %c0_i32, %arg1, %c0_i32_0 : i32, i32, i32, i32
  }
  func.func @transform_2(%arg0: i32, %arg1: i32) -> (i32, i32) {
    %c0_i32 = arith.constant 0 : i32
    %c0_i32_0 = arith.constant 0 : i32
    return %arg1, %c0_i32 : i32, i32
  }
  func.func @transform_3(%arg0: i32, %arg1: i32) -> (i32, i32) {
    %c0_i32 = arith.constant 0 : i32
    %c0_i32_0 = arith.constant 0 : i32
    %c0_i32_1 = arith.constant 0 : i32
    return %c0_i32, %c0_i32_0 : i32, i32
  }
  func.func @transform_4(%arg0: i32, %arg1: i32) -> (i32, i32) {
    %c0_i32 = arith.constant 0 : i32
    %c0_i32_0 = arith.constant 0 : i32
    %c0_i32_1 = arith.constant 0 : i32
    return %c0_i32, %c0_i32_0 : i32, i32
  }
  func.func @transform_5(%arg0: i32, %arg1: i32) -> i32 {
    %c0_i32 = arith.constant 0 : i32
    %c0_i32_0 = arith.constant 0 : i32
    return %c0_i32 : i32
  }
  func.func @transform_6(%arg0: i32, %arg1: i32) -> (i32, i32) {
    %c0_i32 = arith.constant 0 : i32
    %c0_i32_0 = arith.constant 0 : i32
    %c0_i32_1 = arith.constant 0 : i32
    return %c0_i32, %c0_i32_0 : i32, i32
  }
  func.func @transform_7(%arg0: i32, %arg1: i32) -> i32 {
    %c0_i32 = arith.constant 0 : i32
    %c0_i32_0 = arith.constant 0 : i32
    return %c0_i32 : i32
  }
  func.func @transform_8(%arg0: i32, %arg1: i32) -> (i32, i32, i32, i32) {
    %c0_i32 = arith.constant 0 : i32
    %c0_i32_0 = arith.constant 0 : i32
    %c0_i32_1 = arith.constant 0 : i32
    return %arg0, %arg1, %c0_i32, %c0_i32_0 : i32, i32, i32, i32
  }
  func.func @transform_9(%arg0: i32, %arg1: i32) -> (i32, i32, i32, i32) {
    %c0_i32 = arith.constant 0 : i32
    %c0_i32_0 = arith.constant 0 : i32
    %c0_i32_1 = arith.constant 0 : i32
    return %arg0, %arg1, %c0_i32, %c0_i32_0 : i32, i32, i32, i32
  }
}

module attributes {stable_mosaic.version = 11 : i64} {
  func.func @_apply_kernel(%arg0: i32, %arg1: i32, %arg2: memref<1x4x8x8xf32, #tpu.memory_space<vmem>>, %arg3: memref<1x4x8x16xf32, #tpu.memory_space<vmem>>, %arg4: memref<8x8xf32, #tpu.memory_space<vmem>>, %arg5: memref<8x16xf32, #tpu.memory_space<vmem>>, %arg6: memref<4x4xf32, #tpu.memory_space<smem>>, %arg7: memref<4xf32, #tpu.memory_space<smem>>, %arg8: memref<4x4xf32, #tpu.memory_space<smem>>, %arg9: memref<4xf32, #tpu.memory_space<smem>>, %arg10: memref<8xf32, #tpu.memory_space<smem>>, %arg11: memref<8xf32, #tpu.memory_space<smem>>, %arg12: memref<1x8x8x16xf32, #tpu.memory_space<vmem>>) attributes {dimension_semantics = [#tpu.dimension_semantics<parallel>, #tpu.dimension_semantics<parallel>], iteration_bounds = array<i64: 2, 2>, scalar_prefetch = 0 : i64, scratch_operands = 0 : i64, tpu.core_type = #tpu.core_type<tc>, window_params = [{transform_indices = @transform_0, window_bounds = array<i64: 1, 4, 8, 8>}, {transform_indices = @transform_1, window_bounds = array<i64: 1, 4, 8, 16>}, {transform_indices = @transform_2, window_bounds = array<i64: 8, 8>}, {pipeline_mode = #tpu.pipeline_mode<synchronous>, transform_indices = @transform_3, window_bounds = array<i64: 8, 16>}, {transform_indices = @transform_4, window_bounds = array<i64: 4, 4>}, {transform_indices = @transform_5, window_bounds = array<i64: 4>}, {transform_indices = @transform_6, window_bounds = array<i64: 4, 4>}, {transform_indices = @transform_7, window_bounds = array<i64: 4>}, {transform_indices = @transform_8, window_bounds = array<i64: 8>}, {transform_indices = @transform_9, window_bounds = array<i64: 8>}, {transform_indices = @transform_10, window_bounds = array<i64: 1, 8, 8, 16>}]} {
    %c0 = arith.constant 0 : index
    %c0_0 = arith.constant 0 : index
    %0 = vector.load %arg4[%c0, %c0_0] : memref<8x8xf32, #tpu.memory_space<vmem>>, vector<8x8xf32>
    %c0_1 = arith.constant 0 : index
    %c0_2 = arith.constant 0 : index
    %1 = vector.load %arg5[%c0_1, %c0_2] : memref<8x16xf32, #tpu.memory_space<vmem>>, vector<8x16xf32>
    %c0_3 = arith.constant 0 : index
    %c0_4 = arith.constant 0 : index
    %2 = memref.load %arg6[%c0_3, %c0_4] : memref<4x4xf32, #tpu.memory_space<smem>>
    %c0_5 = arith.constant 0 : index
    %c0_6 = arith.constant 0 : index
    %c0_7 = arith.constant 0 : index
    %c0_8 = arith.constant 0 : index
    %3 = vector.load %arg2[%c0_5, %c0_6, %c0_7, %c0_8] : memref<1x4x8x8xf32, #tpu.memory_space<vmem>>, vector<1x1x8x8xf32>
    %4 = vector.shape_cast %3 : vector<1x1x8x8xf32> to vector<8x8xf32>
    %5 = vector.broadcast %2 : f32 to vector<8x8xf32>
    %6 = arith.mulf %5, %4 : vector<8x8xf32>
    %c0_9 = arith.constant 0 : index
    %c1 = arith.constant 1 : index
    %7 = memref.load %arg6[%c0_9, %c1] : memref<4x4xf32, #tpu.memory_space<smem>>
    %c0_10 = arith.constant 0 : index
    %c1_11 = arith.constant 1 : index
    %c0_12 = arith.constant 0 : index
    %c0_13 = arith.constant 0 : index
    %8 = vector.load %arg2[%c0_10, %c1_11, %c0_12, %c0_13] : memref<1x4x8x8xf32, #tpu.memory_space<vmem>>, vector<1x1x8x8xf32>
    %9 = vector.shape_cast %8 : vector<1x1x8x8xf32> to vector<8x8xf32>
    %10 = vector.broadcast %7 : f32 to vector<8x8xf32>
    %11 = arith.mulf %10, %9 : vector<8x8xf32>
    %12 = arith.addf %6, %11 : vector<8x8xf32>
    %c0_14 = arith.constant 0 : index
    %c2 = arith.constant 2 : index
    %13 = memref.load %arg6[%c0_14, %c2] : memref<4x4xf32, #tpu.memory_space<smem>>
    %c0_15 = arith.constant 0 : index
    %c2_16 = arith.constant 2 : index
    %c0_17 = arith.constant 0 : index
    %c0_18 = arith.constant 0 : index
    %14 = vector.load %arg2[%c0_15, %c2_16, %c0_17, %c0_18] : memref<1x4x8x8xf32, #tpu.memory_space<vmem>>, vector<1x1x8x8xf32>
    %15 = vector.shape_cast %14 : vector<1x1x8x8xf32> to vector<8x8xf32>
    %16 = vector.broadcast %13 : f32 to vector<8x8xf32>
    %17 = arith.mulf %16, %15 : vector<8x8xf32>
    %18 = arith.addf %12, %17 : vector<8x8xf32>
    %c0_19 = arith.constant 0 : index
    %c3 = arith.constant 3 : index
    %19 = memref.load %arg6[%c0_19, %c3] : memref<4x4xf32, #tpu.memory_space<smem>>
    %c0_20 = arith.constant 0 : index
    %c3_21 = arith.constant 3 : index
    %c0_22 = arith.constant 0 : index
    %c0_23 = arith.constant 0 : index
    %20 = vector.load %arg2[%c0_20, %c3_21, %c0_22, %c0_23] : memref<1x4x8x8xf32, #tpu.memory_space<vmem>>, vector<1x1x8x8xf32>
    %21 = vector.shape_cast %20 : vector<1x1x8x8xf32> to vector<8x8xf32>
    %22 = vector.broadcast %19 : f32 to vector<8x8xf32>
    %23 = arith.mulf %22, %21 : vector<8x8xf32>
    %24 = arith.addf %18, %23 : vector<8x8xf32>
    %c0_24 = arith.constant 0 : index
    %25 = memref.load %arg7[%c0_24] : memref<4xf32, #tpu.memory_space<smem>>
    %26 = vector.broadcast %25 : f32 to vector<8x8xf32>
    %27 = arith.addf %24, %26 : vector<8x8xf32>
    %cst = arith.constant dense<0.000000e+00> : vector<8x8xf32>
    %28 = tpu.matmul %0, %27, %cst {dimension_numbers = #tpu.dot_dimension_numbers<[1], [0], [0], [1], [0, 0, 1, 1], [], []>} : vector<8x8xf32>, vector<8x8xf32>, vector<8x8xf32> -> vector<8x8xf32>
    %cst_25 = arith.constant dense<0.000000e+00> : vector<8x16xf32>
    %29 = tpu.matmul %28, %1, %cst_25 {dimension_numbers = #tpu.dot_dimension_numbers<[1], [0], [0], [1], [0, 0, 1, 1], [], []>} : vector<8x8xf32>, vector<8x16xf32>, vector<8x16xf32> -> vector<8x16xf32>
    %cst_26 = arith.constant 0.000000e+00 : f32
    %30 = vector.broadcast %cst_26 : f32 to vector<8x16xf32>
    %31 = arith.maximumf %29, %30 : vector<8x16xf32>
    %c1_27 = arith.constant 1 : index
    %c0_28 = arith.constant 0 : index
    %32 = memref.load %arg6[%c1_27, %c0_28] : memref<4x4xf32, #tpu.memory_space<smem>>
    %c0_29 = arith.constant 0 : index
    %c0_30 = arith.constant 0 : index
    %c0_31 = arith.constant 0 : index
    %c0_32 = arith.constant 0 : index
    %33 = vector.load %arg2[%c0_29, %c0_30, %c0_31, %c0_32] : memref<1x4x8x8xf32, #tpu.memory_space<vmem>>, vector<1x1x8x8xf32>
    %34 = vector.shape_cast %33 : vector<1x1x8x8xf32> to vector<8x8xf32>
    %35 = vector.broadcast %32 : f32 to vector<8x8xf32>
    %36 = arith.mulf %35, %34 : vector<8x8xf32>
    %c1_33 = arith.constant 1 : index
    %c1_34 = arith.constant 1 : index
    %37 = memref.load %arg6[%c1_33, %c1_34] : memref<4x4xf32, #tpu.memory_space<smem>>
    %c0_35 = arith.constant 0 : index
    %c1_36 = arith.constant 1 : index
    %c0_37 = arith.constant 0 : index
    %c0_38 = arith.constant 0 : index
    %38 = vector.load %arg2[%c0_35, %c1_36, %c0_37, %c0_38] : memref<1x4x8x8xf32, #tpu.memory_space<vmem>>, vector<1x1x8x8xf32>
    %39 = vector.shape_cast %38 : vector<1x1x8x8xf32> to vector<8x8xf32>
    %40 = vector.broadcast %37 : f32 to vector<8x8xf32>
    %41 = arith.mulf %40, %39 : vector<8x8xf32>
    %42 = arith.addf %36, %41 : vector<8x8xf32>
    %c1_39 = arith.constant 1 : index
    %c2_40 = arith.constant 2 : index
    %43 = memref.load %arg6[%c1_39, %c2_40] : memref<4x4xf32, #tpu.memory_space<smem>>
    %c0_41 = arith.constant 0 : index
    %c2_42 = arith.constant 2 : index
    %c0_43 = arith.constant 0 : index
    %c0_44 = arith.constant 0 : index
    %44 = vector.load %arg2[%c0_41, %c2_42, %c0_43, %c0_44] : memref<1x4x8x8xf32, #tpu.memory_space<vmem>>, vector<1x1x8x8xf32>
    %45 = vector.shape_cast %44 : vector<1x1x8x8xf32> to vector<8x8xf32>
    %46 = vector.broadcast %43 : f32 to vector<8x8xf32>
    %47 = arith.mulf %46, %45 : vector<8x8xf32>
    %48 = arith.addf %42, %47 : vector<8x8xf32>
    %c1_45 = arith.constant 1 : index
    %c3_46 = arith.constant 3 : index
    %49 = memref.load %arg6[%c1_45, %c3_46] : memref<4x4xf32, #tpu.memory_space<smem>>
    %c0_47 = arith.constant 0 : index
    %c3_48 = arith.constant 3 : index
    %c0_49 = arith.constant 0 : index
    %c0_50 = arith.constant 0 : index
    %50 = vector.load %arg2[%c0_47, %c3_48, %c0_49, %c0_50] : memref<1x4x8x8xf32, #tpu.memory_space<vmem>>, vector<1x1x8x8xf32>
    %51 = vector.shape_cast %50 : vector<1x1x8x8xf32> to vector<8x8xf32>
    %52 = vector.broadcast %49 : f32 to vector<8x8xf32>
    %53 = arith.mulf %52, %51 : vector<8x8xf32>
    %54 = arith.addf %48, %53 : vector<8x8xf32>
    %c1_51 = arith.constant 1 : index
    %55 = memref.load %arg7[%c1_51] : memref<4xf32, #tpu.memory_space<smem>>
    %56 = vector.broadcast %55 : f32 to vector<8x8xf32>
    %57 = arith.addf %54, %56 : vector<8x8xf32>
    %cst_52 = arith.constant dense<0.000000e+00> : vector<8x8xf32>
    %58 = tpu.matmul %0, %57, %cst_52 {dimension_numbers = #tpu.dot_dimension_numbers<[1], [0], [0], [1], [0, 0, 1, 1], [], []>} : vector<8x8xf32>, vector<8x8xf32>, vector<8x8xf32> -> vector<8x8xf32>
    %cst_53 = arith.constant dense<0.000000e+00> : vector<8x16xf32>
    %59 = tpu.matmul %58, %1, %cst_53 {dimension_numbers = #tpu.dot_dimension_numbers<[1], [0], [0], [1], [0, 0, 1, 1], [], []>} : vector<8x8xf32>, vector<8x16xf32>, vector<8x16xf32> -> vector<8x16xf32>
    %cst_54 = arith.constant 0.000000e+00 : f32
    %60 = vector.broadcast %cst_54 : f32 to vector<8x16xf32>
    %61 = arith.maximumf %59, %60 : vector<8x16xf32>
    %c2_55 = arith.constant 2 : index
    %c0_56 = arith.constant 0 : index
    %62 = memref.load %arg6[%c2_55, %c0_56] : memref<4x4xf32, #tpu.memory_space<smem>>
    %c0_57 = arith.constant 0 : index
    %c0_58 = arith.constant 0 : index
    %c0_59 = arith.constant 0 : index
    %c0_60 = arith.constant 0 : index
    %63 = vector.load %arg2[%c0_57, %c0_58, %c0_59, %c0_60] : memref<1x4x8x8xf32, #tpu.memory_space<vmem>>, vector<1x1x8x8xf32>
    %64 = vector.shape_cast %63 : vector<1x1x8x8xf32> to vector<8x8xf32>
    %65 = vector.broadcast %62 : f32 to vector<8x8xf32>
    %66 = arith.mulf %65, %64 : vector<8x8xf32>
    %c2_61 = arith.constant 2 : index
    %c1_62 = arith.constant 1 : index
    %67 = memref.load %arg6[%c2_61, %c1_62] : memref<4x4xf32, #tpu.memory_space<smem>>
    %c0_63 = arith.constant 0 : index
    %c1_64 = arith.constant 1 : index
    %c0_65 = arith.constant 0 : index
    %c0_66 = arith.constant 0 : index
    %68 = vector.load %arg2[%c0_63, %c1_64, %c0_65, %c0_66] : memref<1x4x8x8xf32, #tpu.memory_space<vmem>>, vector<1x1x8x8xf32>
    %69 = vector.shape_cast %68 : vector<1x1x8x8xf32> to vector<8x8xf32>
    %70 = vector.broadcast %67 : f32 to vector<8x8xf32>
    %71 = arith.mulf %70, %69 : vector<8x8xf32>
    %72 = arith.addf %66, %71 : vector<8x8xf32>
    %c2_67 = arith.constant 2 : index
    %c2_68 = arith.constant 2 : index
    %73 = memref.load %arg6[%c2_67, %c2_68] : memref<4x4xf32, #tpu.memory_space<smem>>
    %c0_69 = arith.constant 0 : index
    %c2_70 = arith.constant 2 : index
    %c0_71 = arith.constant 0 : index
    %c0_72 = arith.constant 0 : index
    %74 = vector.load %arg2[%c0_69, %c2_70, %c0_71, %c0_72] : memref<1x4x8x8xf32, #tpu.memory_space<vmem>>, vector<1x1x8x8xf32>
    %75 = vector.shape_cast %74 : vector<1x1x8x8xf32> to vector<8x8xf32>
    %76 = vector.broadcast %73 : f32 to vector<8x8xf32>
    %77 = arith.mulf %76, %75 : vector<8x8xf32>
    %78 = arith.addf %72, %77 : vector<8x8xf32>
    %c2_73 = arith.constant 2 : index
    %c3_74 = arith.constant 3 : index
    %79 = memref.load %arg6[%c2_73, %c3_74] : memref<4x4xf32, #tpu.memory_space<smem>>
    %c0_75 = arith.constant 0 : index
    %c3_76 = arith.constant 3 : index
    %c0_77 = arith.constant 0 : index
    %c0_78 = arith.constant 0 : index
    %80 = vector.load %arg2[%c0_75, %c3_76, %c0_77, %c0_78] : memref<1x4x8x8xf32, #tpu.memory_space<vmem>>, vector<1x1x8x8xf32>
    %81 = vector.shape_cast %80 : vector<1x1x8x8xf32> to vector<8x8xf32>
    %82 = vector.broadcast %79 : f32 to vector<8x8xf32>
    %83 = arith.mulf %82, %81 : vector<8x8xf32>
    %84 = arith.addf %78, %83 : vector<8x8xf32>
    %c2_79 = arith.constant 2 : index
    %85 = memref.load %arg7[%c2_79] : memref<4xf32, #tpu.memory_space<smem>>
    %86 = vector.broadcast %85 : f32 to vector<8x8xf32>
    %87 = arith.addf %84, %86 : vector<8x8xf32>
    %cst_80 = arith.constant dense<0.000000e+00> : vector<8x8xf32>
    %88 = tpu.matmul %0, %87, %cst_80 {dimension_numbers = #tpu.dot_dimension_numbers<[1], [0], [0], [1], [0, 0, 1, 1], [], []>} : vector<8x8xf32>, vector<8x8xf32>, vector<8x8xf32> -> vector<8x8xf32>
    %cst_81 = arith.constant dense<0.000000e+00> : vector<8x16xf32>
    %89 = tpu.matmul %88, %1, %cst_81 {dimension_numbers = #tpu.dot_dimension_numbers<[1], [0], [0], [1], [0, 0, 1, 1], [], []>} : vector<8x8xf32>, vector<8x16xf32>, vector<8x16xf32> -> vector<8x16xf32>
    %cst_82 = arith.constant 0.000000e+00 : f32
    %90 = vector.broadcast %cst_82 : f32 to vector<8x16xf32>
    %91 = arith.maximumf %89, %90 : vector<8x16xf32>
    %c3_83 = arith.constant 3 : index
    %c0_84 = arith.constant 0 : index
    %92 = memref.load %arg6[%c3_83, %c0_84] : memref<4x4xf32, #tpu.memory_space<smem>>
    %c0_85 = arith.constant 0 : index
    %c0_86 = arith.constant 0 : index
    %c0_87 = arith.constant 0 : index
    %c0_88 = arith.constant 0 : index
    %93 = vector.load %arg2[%c0_85, %c0_86, %c0_87, %c0_88] : memref<1x4x8x8xf32, #tpu.memory_space<vmem>>, vector<1x1x8x8xf32>
    %94 = vector.shape_cast %93 : vector<1x1x8x8xf32> to vector<8x8xf32>
    %95 = vector.broadcast %92 : f32 to vector<8x8xf32>
    %96 = arith.mulf %95, %94 : vector<8x8xf32>
    %c3_89 = arith.constant 3 : index
    %c1_90 = arith.constant 1 : index
    %97 = memref.load %arg6[%c3_89, %c1_90] : memref<4x4xf32, #tpu.memory_space<smem>>
    %c0_91 = arith.constant 0 : index
    %c1_92 = arith.constant 1 : index
    %c0_93 = arith.constant 0 : index
    %c0_94 = arith.constant 0 : index
    %98 = vector.load %arg2[%c0_91, %c1_92, %c0_93, %c0_94] : memref<1x4x8x8xf32, #tpu.memory_space<vmem>>, vector<1x1x8x8xf32>
    %99 = vector.shape_cast %98 : vector<1x1x8x8xf32> to vector<8x8xf32>
    %100 = vector.broadcast %97 : f32 to vector<8x8xf32>
    %101 = arith.mulf %100, %99 : vector<8x8xf32>
    %102 = arith.addf %96, %101 : vector<8x8xf32>
    %c3_95 = arith.constant 3 : index
    %c2_96 = arith.constant 2 : index
    %103 = memref.load %arg6[%c3_95, %c2_96] : memref<4x4xf32, #tpu.memory_space<smem>>
    %c0_97 = arith.constant 0 : index
    %c2_98 = arith.constant 2 : index
    %c0_99 = arith.constant 0 : index
    %c0_100 = arith.constant 0 : index
    %104 = vector.load %arg2[%c0_97, %c2_98, %c0_99, %c0_100] : memref<1x4x8x8xf32, #tpu.memory_space<vmem>>, vector<1x1x8x8xf32>
    %105 = vector.shape_cast %104 : vector<1x1x8x8xf32> to vector<8x8xf32>
    %106 = vector.broadcast %103 : f32 to vector<8x8xf32>
    %107 = arith.mulf %106, %105 : vector<8x8xf32>
    %108 = arith.addf %102, %107 : vector<8x8xf32>
    %c3_101 = arith.constant 3 : index
    %c3_102 = arith.constant 3 : index
    %109 = memref.load %arg6[%c3_101, %c3_102] : memref<4x4xf32, #tpu.memory_space<smem>>
    %c0_103 = arith.constant 0 : index
    %c3_104 = arith.constant 3 : index
    %c0_105 = arith.constant 0 : index
    %c0_106 = arith.constant 0 : index
    %110 = vector.load %arg2[%c0_103, %c3_104, %c0_105, %c0_106] : memref<1x4x8x8xf32, #tpu.memory_space<vmem>>, vector<1x1x8x8xf32>
    %111 = vector.shape_cast %110 : vector<1x1x8x8xf32> to vector<8x8xf32>
    %112 = vector.broadcast %109 : f32 to vector<8x8xf32>
    %113 = arith.mulf %112, %111 : vector<8x8xf32>
    %114 = arith.addf %108, %113 : vector<8x8xf32>
    %c3_107 = arith.constant 3 : index
    %115 = memref.load %arg7[%c3_107] : memref<4xf32, #tpu.memory_space<smem>>
    %116 = vector.broadcast %115 : f32 to vector<8x8xf32>
    %117 = arith.addf %114, %116 : vector<8x8xf32>
    %cst_108 = arith.constant dense<0.000000e+00> : vector<8x8xf32>
    %118 = tpu.matmul %0, %117, %cst_108 {dimension_numbers = #tpu.dot_dimension_numbers<[1], [0], [0], [1], [0, 0, 1, 1], [], []>} : vector<8x8xf32>, vector<8x8xf32>, vector<8x8xf32> -> vector<8x8xf32>
    %cst_109 = arith.constant dense<0.000000e+00> : vector<8x16xf32>
    %119 = tpu.matmul %118, %1, %cst_109 {dimension_numbers = #tpu.dot_dimension_numbers<[1], [0], [0], [1], [0, 0, 1, 1], [], []>} : vector<8x8xf32>, vector<8x16xf32>, vector<8x16xf32> -> vector<8x16xf32>
    %cst_110 = arith.constant 0.000000e+00 : f32
    %120 = vector.broadcast %cst_110 : f32 to vector<8x16xf32>
    %121 = arith.maximumf %119, %120 : vector<8x16xf32>
    %c0_111 = arith.constant 0 : index
    %c0_112 = arith.constant 0 : index
    %122 = memref.load %arg8[%c0_111, %c0_112] : memref<4x4xf32, #tpu.memory_space<smem>>
    %c0_113 = arith.constant 0 : index
    %c0_114 = arith.constant 0 : index
    %c0_115 = arith.constant 0 : index
    %c0_116 = arith.constant 0 : index
    %123 = vector.load %arg3[%c0_113, %c0_114, %c0_115, %c0_116] : memref<1x4x8x16xf32, #tpu.memory_space<vmem>>, vector<1x1x8x16xf32>
    %124 = vector.shape_cast %123 : vector<1x1x8x16xf32> to vector<8x16xf32>
    %125 = vector.broadcast %122 : f32 to vector<8x16xf32>
    %126 = arith.mulf %125, %124 : vector<8x16xf32>
    %c0_117 = arith.constant 0 : index
    %c1_118 = arith.constant 1 : index
    %127 = memref.load %arg8[%c0_117, %c1_118] : memref<4x4xf32, #tpu.memory_space<smem>>
    %c0_119 = arith.constant 0 : index
    %c1_120 = arith.constant 1 : index
    %c0_121 = arith.constant 0 : index
    %c0_122 = arith.constant 0 : index
    %128 = vector.load %arg3[%c0_119, %c1_120, %c0_121, %c0_122] : memref<1x4x8x16xf32, #tpu.memory_space<vmem>>, vector<1x1x8x16xf32>
    %129 = vector.shape_cast %128 : vector<1x1x8x16xf32> to vector<8x16xf32>
    %130 = vector.broadcast %127 : f32 to vector<8x16xf32>
    %131 = arith.mulf %130, %129 : vector<8x16xf32>
    %132 = arith.addf %126, %131 : vector<8x16xf32>
    %c0_123 = arith.constant 0 : index
    %c2_124 = arith.constant 2 : index
    %133 = memref.load %arg8[%c0_123, %c2_124] : memref<4x4xf32, #tpu.memory_space<smem>>
    %c0_125 = arith.constant 0 : index
    %c2_126 = arith.constant 2 : index
    %c0_127 = arith.constant 0 : index
    %c0_128 = arith.constant 0 : index
    %134 = vector.load %arg3[%c0_125, %c2_126, %c0_127, %c0_128] : memref<1x4x8x16xf32, #tpu.memory_space<vmem>>, vector<1x1x8x16xf32>
    %135 = vector.shape_cast %134 : vector<1x1x8x16xf32> to vector<8x16xf32>
    %136 = vector.broadcast %133 : f32 to vector<8x16xf32>
    %137 = arith.mulf %136, %135 : vector<8x16xf32>
    %138 = arith.addf %132, %137 : vector<8x16xf32>
    %c0_129 = arith.constant 0 : index
    %c3_130 = arith.constant 3 : index
    %139 = memref.load %arg8[%c0_129, %c3_130] : memref<4x4xf32, #tpu.memory_space<smem>>
    %c0_131 = arith.constant 0 : index
    %c3_132 = arith.constant 3 : index
    %c0_133 = arith.constant 0 : index
    %c0_134 = arith.constant 0 : index
    %140 = vector.load %arg3[%c0_131, %c3_132, %c0_133, %c0_134] : memref<1x4x8x16xf32, #tpu.memory_space<vmem>>, vector<1x1x8x16xf32>
    %141 = vector.shape_cast %140 : vector<1x1x8x16xf32> to vector<8x16xf32>
    %142 = vector.broadcast %139 : f32 to vector<8x16xf32>
    %143 = arith.mulf %142, %141 : vector<8x16xf32>
    %144 = arith.addf %138, %143 : vector<8x16xf32>
    %c0_135 = arith.constant 0 : index
    %145 = memref.load %arg9[%c0_135] : memref<4xf32, #tpu.memory_space<smem>>
    %146 = vector.broadcast %145 : f32 to vector<8x16xf32>
    %147 = arith.addf %144, %146 : vector<8x16xf32>
    %cst_136 = arith.constant 0.000000e+00 : f32
    %148 = vector.broadcast %cst_136 : f32 to vector<8x16xf32>
    %149 = arith.maximumf %147, %148 : vector<8x16xf32>
    %c1_137 = arith.constant 1 : index
    %c0_138 = arith.constant 0 : index
    %150 = memref.load %arg8[%c1_137, %c0_138] : memref<4x4xf32, #tpu.memory_space<smem>>
    %c0_139 = arith.constant 0 : index
    %c0_140 = arith.constant 0 : index
    %c0_141 = arith.constant 0 : index
    %c0_142 = arith.constant 0 : index
    %151 = vector.load %arg3[%c0_139, %c0_140, %c0_141, %c0_142] : memref<1x4x8x16xf32, #tpu.memory_space<vmem>>, vector<1x1x8x16xf32>
    %152 = vector.shape_cast %151 : vector<1x1x8x16xf32> to vector<8x16xf32>
    %153 = vector.broadcast %150 : f32 to vector<8x16xf32>
    %154 = arith.mulf %153, %152 : vector<8x16xf32>
    %c1_143 = arith.constant 1 : index
    %c1_144 = arith.constant 1 : index
    %155 = memref.load %arg8[%c1_143, %c1_144] : memref<4x4xf32, #tpu.memory_space<smem>>
    %c0_145 = arith.constant 0 : index
    %c1_146 = arith.constant 1 : index
    %c0_147 = arith.constant 0 : index
    %c0_148 = arith.constant 0 : index
    %156 = vector.load %arg3[%c0_145, %c1_146, %c0_147, %c0_148] : memref<1x4x8x16xf32, #tpu.memory_space<vmem>>, vector<1x1x8x16xf32>
    %157 = vector.shape_cast %156 : vector<1x1x8x16xf32> to vector<8x16xf32>
    %158 = vector.broadcast %155 : f32 to vector<8x16xf32>
    %159 = arith.mulf %158, %157 : vector<8x16xf32>
    %160 = arith.addf %154, %159 : vector<8x16xf32>
    %c1_149 = arith.constant 1 : index
    %c2_150 = arith.constant 2 : index
    %161 = memref.load %arg8[%c1_149, %c2_150] : memref<4x4xf32, #tpu.memory_space<smem>>
    %c0_151 = arith.constant 0 : index
    %c2_152 = arith.constant 2 : index
    %c0_153 = arith.constant 0 : index
    %c0_154 = arith.constant 0 : index
    %162 = vector.load %arg3[%c0_151, %c2_152, %c0_153, %c0_154] : memref<1x4x8x16xf32, #tpu.memory_space<vmem>>, vector<1x1x8x16xf32>
    %163 = vector.shape_cast %162 : vector<1x1x8x16xf32> to vector<8x16xf32>
    %164 = vector.broadcast %161 : f32 to vector<8x16xf32>
    %165 = arith.mulf %164, %163 : vector<8x16xf32>
    %166 = arith.addf %160, %165 : vector<8x16xf32>
    %c1_155 = arith.constant 1 : index
    %c3_156 = arith.constant 3 : index
    %167 = memref.load %arg8[%c1_155, %c3_156] : memref<4x4xf32, #tpu.memory_space<smem>>
    %c0_157 = arith.constant 0 : index
    %c3_158 = arith.constant 3 : index
    %c0_159 = arith.constant 0 : index
    %c0_160 = arith.constant 0 : index
    %168 = vector.load %arg3[%c0_157, %c3_158, %c0_159, %c0_160] : memref<1x4x8x16xf32, #tpu.memory_space<vmem>>, vector<1x1x8x16xf32>
    %169 = vector.shape_cast %168 : vector<1x1x8x16xf32> to vector<8x16xf32>
    %170 = vector.broadcast %167 : f32 to vector<8x16xf32>
    %171 = arith.mulf %170, %169 : vector<8x16xf32>
    %172 = arith.addf %166, %171 : vector<8x16xf32>
    %c1_161 = arith.constant 1 : index
    %173 = memref.load %arg9[%c1_161] : memref<4xf32, #tpu.memory_space<smem>>
    %174 = vector.broadcast %173 : f32 to vector<8x16xf32>
    %175 = arith.addf %172, %174 : vector<8x16xf32>
    %cst_162 = arith.constant 0.000000e+00 : f32
    %176 = vector.broadcast %cst_162 : f32 to vector<8x16xf32>
    %177 = arith.maximumf %175, %176 : vector<8x16xf32>
    %c2_163 = arith.constant 2 : index
    %c0_164 = arith.constant 0 : index
    %178 = memref.load %arg8[%c2_163, %c0_164] : memref<4x4xf32, #tpu.memory_space<smem>>
    %c0_165 = arith.constant 0 : index
    %c0_166 = arith.constant 0 : index
    %c0_167 = arith.constant 0 : index
    %c0_168 = arith.constant 0 : index
    %179 = vector.load %arg3[%c0_165, %c0_166, %c0_167, %c0_168] : memref<1x4x8x16xf32, #tpu.memory_space<vmem>>, vector<1x1x8x16xf32>
    %180 = vector.shape_cast %179 : vector<1x1x8x16xf32> to vector<8x16xf32>
    %181 = vector.broadcast %178 : f32 to vector<8x16xf32>
    %182 = arith.mulf %181, %180 : vector<8x16xf32>
    %c2_169 = arith.constant 2 : index
    %c1_170 = arith.constant 1 : index
    %183 = memref.load %arg8[%c2_169, %c1_170] : memref<4x4xf32, #tpu.memory_space<smem>>
    %c0_171 = arith.constant 0 : index
    %c1_172 = arith.constant 1 : index
    %c0_173 = arith.constant 0 : index
    %c0_174 = arith.constant 0 : index
    %184 = vector.load %arg3[%c0_171, %c1_172, %c0_173, %c0_174] : memref<1x4x8x16xf32, #tpu.memory_space<vmem>>, vector<1x1x8x16xf32>
    %185 = vector.shape_cast %184 : vector<1x1x8x16xf32> to vector<8x16xf32>
    %186 = vector.broadcast %183 : f32 to vector<8x16xf32>
    %187 = arith.mulf %186, %185 : vector<8x16xf32>
    %188 = arith.addf %182, %187 : vector<8x16xf32>
    %c2_175 = arith.constant 2 : index
    %c2_176 = arith.constant 2 : index
    %189 = memref.load %arg8[%c2_175, %c2_176] : memref<4x4xf32, #tpu.memory_space<smem>>
    %c0_177 = arith.constant 0 : index
    %c2_178 = arith.constant 2 : index
    %c0_179 = arith.constant 0 : index
    %c0_180 = arith.constant 0 : index
    %190 = vector.load %arg3[%c0_177, %c2_178, %c0_179, %c0_180] : memref<1x4x8x16xf32, #tpu.memory_space<vmem>>, vector<1x1x8x16xf32>
    %191 = vector.shape_cast %190 : vector<1x1x8x16xf32> to vector<8x16xf32>
    %192 = vector.broadcast %189 : f32 to vector<8x16xf32>
    %193 = arith.mulf %192, %191 : vector<8x16xf32>
    %194 = arith.addf %188, %193 : vector<8x16xf32>
    %c2_181 = arith.constant 2 : index
    %c3_182 = arith.constant 3 : index
    %195 = memref.load %arg8[%c2_181, %c3_182] : memref<4x4xf32, #tpu.memory_space<smem>>
    %c0_183 = arith.constant 0 : index
    %c3_184 = arith.constant 3 : index
    %c0_185 = arith.constant 0 : index
    %c0_186 = arith.constant 0 : index
    %196 = vector.load %arg3[%c0_183, %c3_184, %c0_185, %c0_186] : memref<1x4x8x16xf32, #tpu.memory_space<vmem>>, vector<1x1x8x16xf32>
    %197 = vector.shape_cast %196 : vector<1x1x8x16xf32> to vector<8x16xf32>
    %198 = vector.broadcast %195 : f32 to vector<8x16xf32>
    %199 = arith.mulf %198, %197 : vector<8x16xf32>
    %200 = arith.addf %194, %199 : vector<8x16xf32>
    %c2_187 = arith.constant 2 : index
    %201 = memref.load %arg9[%c2_187] : memref<4xf32, #tpu.memory_space<smem>>
    %202 = vector.broadcast %201 : f32 to vector<8x16xf32>
    %203 = arith.addf %200, %202 : vector<8x16xf32>
    %cst_188 = arith.constant 0.000000e+00 : f32
    %204 = vector.broadcast %cst_188 : f32 to vector<8x16xf32>
    %205 = arith.maximumf %203, %204 : vector<8x16xf32>
    %c3_189 = arith.constant 3 : index
    %c0_190 = arith.constant 0 : index
    %206 = memref.load %arg8[%c3_189, %c0_190] : memref<4x4xf32, #tpu.memory_space<smem>>
    %c0_191 = arith.constant 0 : index
    %c0_192 = arith.constant 0 : index
    %c0_193 = arith.constant 0 : index
    %c0_194 = arith.constant 0 : index
    %207 = vector.load %arg3[%c0_191, %c0_192, %c0_193, %c0_194] : memref<1x4x8x16xf32, #tpu.memory_space<vmem>>, vector<1x1x8x16xf32>
    %208 = vector.shape_cast %207 : vector<1x1x8x16xf32> to vector<8x16xf32>
    %209 = vector.broadcast %206 : f32 to vector<8x16xf32>
    %210 = arith.mulf %209, %208 : vector<8x16xf32>
    %c3_195 = arith.constant 3 : index
    %c1_196 = arith.constant 1 : index
    %211 = memref.load %arg8[%c3_195, %c1_196] : memref<4x4xf32, #tpu.memory_space<smem>>
    %c0_197 = arith.constant 0 : index
    %c1_198 = arith.constant 1 : index
    %c0_199 = arith.constant 0 : index
    %c0_200 = arith.constant 0 : index
    %212 = vector.load %arg3[%c0_197, %c1_198, %c0_199, %c0_200] : memref<1x4x8x16xf32, #tpu.memory_space<vmem>>, vector<1x1x8x16xf32>
    %213 = vector.shape_cast %212 : vector<1x1x8x16xf32> to vector<8x16xf32>
    %214 = vector.broadcast %211 : f32 to vector<8x16xf32>
    %215 = arith.mulf %214, %213 : vector<8x16xf32>
    %216 = arith.addf %210, %215 : vector<8x16xf32>
    %c3_201 = arith.constant 3 : index
    %c2_202 = arith.constant 2 : index
    %217 = memref.load %arg8[%c3_201, %c2_202] : memref<4x4xf32, #tpu.memory_space<smem>>
    %c0_203 = arith.constant 0 : index
    %c2_204 = arith.constant 2 : index
    %c0_205 = arith.constant 0 : index
    %c0_206 = arith.constant 0 : index
    %218 = vector.load %arg3[%c0_203, %c2_204, %c0_205, %c0_206] : memref<1x4x8x16xf32, #tpu.memory_space<vmem>>, vector<1x1x8x16xf32>
    %219 = vector.shape_cast %218 : vector<1x1x8x16xf32> to vector<8x16xf32>
    %220 = vector.broadcast %217 : f32 to vector<8x16xf32>
    %221 = arith.mulf %220, %219 : vector<8x16xf32>
    %222 = arith.addf %216, %221 : vector<8x16xf32>
    %c3_207 = arith.constant 3 : index
    %c3_208 = arith.constant 3 : index
    %223 = memref.load %arg8[%c3_207, %c3_208] : memref<4x4xf32, #tpu.memory_space<smem>>
    %c0_209 = arith.constant 0 : index
    %c3_210 = arith.constant 3 : index
    %c0_211 = arith.constant 0 : index
    %c0_212 = arith.constant 0 : index
    %224 = vector.load %arg3[%c0_209, %c3_210, %c0_211, %c0_212] : memref<1x4x8x16xf32, #tpu.memory_space<vmem>>, vector<1x1x8x16xf32>
    %225 = vector.shape_cast %224 : vector<1x1x8x16xf32> to vector<8x16xf32>
    %226 = vector.broadcast %223 : f32 to vector<8x16xf32>
    %227 = arith.mulf %226, %225 : vector<8x16xf32>
    %228 = arith.addf %222, %227 : vector<8x16xf32>
    %c3_213 = arith.constant 3 : index
    %229 = memref.load %arg9[%c3_213] : memref<4xf32, #tpu.memory_space<smem>>
    %230 = vector.broadcast %229 : f32 to vector<8x16xf32>
    %231 = arith.addf %228, %230 : vector<8x16xf32>
    %cst_214 = arith.constant 0.000000e+00 : f32
    %232 = vector.broadcast %cst_214 : f32 to vector<8x16xf32>
    %233 = arith.maximumf %231, %232 : vector<8x16xf32>
    %c0_215 = arith.constant 0 : index
    %234 = memref.load %arg10[%c0_215] : memref<8xf32, #tpu.memory_space<smem>>
    %235 = vector.broadcast %234 : f32 to vector<8x16xf32>
    %236 = arith.mulf %31, %235 : vector<8x16xf32>
    %c0_216 = arith.constant 0 : index
    %237 = memref.load %arg11[%c0_216] : memref<8xf32, #tpu.memory_space<smem>>
    %238 = vector.broadcast %237 : f32 to vector<8x16xf32>
    %239 = arith.addf %236, %238 : vector<8x16xf32>
    %c0_217 = arith.constant 0 : index
    %c0_218 = arith.constant 0 : index
    %c0_219 = arith.constant 0 : index
    %c0_220 = arith.constant 0 : index
    %240 = vector.load %arg12[%c0_217, %c0_218, %c0_219, %c0_220] : memref<1x8x8x16xf32, #tpu.memory_space<vmem>>, vector<1x1x8x16xf32>
    %241 = vector.shape_cast %240 : vector<1x1x8x16xf32> to vector<8x16xf32>
    %242 = vector.shape_cast %239 : vector<8x16xf32> to vector<1x1x8x16xf32>
    tpu.vector_store %arg12[%c0_217, %c0_218, %c0_219, %c0_220], %242 {strides = array<i32>} : memref<1x8x8x16xf32, #tpu.memory_space<vmem>>, vector<1x1x8x16xf32>,
    %c1_221 = arith.constant 1 : index
    %243 = memref.load %arg10[%c1_221] : memref<8xf32, #tpu.memory_space<smem>>
    %244 = vector.broadcast %243 : f32 to vector<8x16xf32>
    %245 = arith.mulf %61, %244 : vector<8x16xf32>
    %c1_222 = arith.constant 1 : index
    %246 = memref.load %arg11[%c1_222] : memref<8xf32, #tpu.memory_space<smem>>
    %247 = vector.broadcast %246 : f32 to vector<8x16xf32>
    %248 = arith.addf %245, %247 : vector<8x16xf32>
    %c0_223 = arith.constant 0 : index
    %c1_224 = arith.constant 1 : index
    %c0_225 = arith.constant 0 : index
    %c0_226 = arith.constant 0 : index
    %249 = vector.load %arg12[%c0_223, %c1_224, %c0_225, %c0_226] : memref<1x8x8x16xf32, #tpu.memory_space<vmem>>, vector<1x1x8x16xf32>
    %250 = vector.shape_cast %249 : vector<1x1x8x16xf32> to vector<8x16xf32>
    %251 = vector.shape_cast %248 : vector<8x16xf32> to vector<1x1x8x16xf32>
    tpu.vector_store %arg12[%c0_223, %c1_224, %c0_225, %c0_226], %251 {strides = array<i32>} : memref<1x8x8x16xf32, #tpu.memory_space<vmem>>, vector<1x1x8x16xf32>,
    %c2_227 = arith.constant 2 : index
    %252 = memref.load %arg10[%c2_227] : memref<8xf32, #tpu.memory_space<smem>>
    %253 = vector.broadcast %252 : f32 to vector<8x16xf32>
    %254 = arith.mulf %91, %253 : vector<8x16xf32>
    %c2_228 = arith.constant 2 : index
    %255 = memref.load %arg11[%c2_228] : memref<8xf32, #tpu.memory_space<smem>>
    %256 = vector.broadcast %255 : f32 to vector<8x16xf32>
    %257 = arith.addf %254, %256 : vector<8x16xf32>
    %c0_229 = arith.constant 0 : index
    %c2_230 = arith.constant 2 : index
    %c0_231 = arith.constant 0 : index
    %c0_232 = arith.constant 0 : index
    %258 = vector.load %arg12[%c0_229, %c2_230, %c0_231, %c0_232] : memref<1x8x8x16xf32, #tpu.memory_space<vmem>>, vector<1x1x8x16xf32>
    %259 = vector.shape_cast %258 : vector<1x1x8x16xf32> to vector<8x16xf32>
    %260 = vector.shape_cast %257 : vector<8x16xf32> to vector<1x1x8x16xf32>
    tpu.vector_store %arg12[%c0_229, %c2_230, %c0_231, %c0_232], %260 {strides = array<i32>} : memref<1x8x8x16xf32, #tpu.memory_space<vmem>>, vector<1x1x8x16xf32>,
    %c3_233 = arith.constant 3 : index
    %261 = memref.load %arg10[%c3_233] : memref<8xf32, #tpu.memory_space<smem>>
    %262 = vector.broadcast %261 : f32 to vector<8x16xf32>
    %263 = arith.mulf %121, %262 : vector<8x16xf32>
    %c3_234 = arith.constant 3 : index
    %264 = memref.load %arg11[%c3_234] : memref<8xf32, #tpu.memory_space<smem>>
    %265 = vector.broadcast %264 : f32 to vector<8x16xf32>
    %266 = arith.addf %263, %265 : vector<8x16xf32>
    %c0_235 = arith.constant 0 : index
    %c3_236 = arith.constant 3 : index
    %c0_237 = arith.constant 0 : index
    %c0_238 = arith.constant 0 : index
    %267 = vector.load %arg12[%c0_235, %c3_236, %c0_237, %c0_238] : memref<1x8x8x16xf32, #tpu.memory_space<vmem>>, vector<1x1x8x16xf32>
    %268 = vector.shape_cast %267 : vector<1x1x8x16xf32> to vector<8x16xf32>
    %269 = vector.shape_cast %266 : vector<8x16xf32> to vector<1x1x8x16xf32>
    tpu.vector_store %arg12[%c0_235, %c3_236, %c0_237, %c0_238], %269 {strides = array<i32>} : memref<1x8x8x16xf32, #tpu.memory_space<vmem>>, vector<1x1x8x16xf32>,
    %c4 = arith.constant 4 : index
    %270 = memref.load %arg10[%c4] : memref<8xf32, #tpu.memory_space<smem>>
    %271 = vector.broadcast %270 : f32 to vector<8x16xf32>
    %272 = arith.mulf %149, %271 : vector<8x16xf32>
    %c4_239 = arith.constant 4 : index
    %273 = memref.load %arg11[%c4_239] : memref<8xf32, #tpu.memory_space<smem>>
    %274 = vector.broadcast %273 : f32 to vector<8x16xf32>
    %275 = arith.addf %272, %274 : vector<8x16xf32>
    %c0_240 = arith.constant 0 : index
    %c4_241 = arith.constant 4 : index
    %c0_242 = arith.constant 0 : index
    %c0_243 = arith.constant 0 : index
    %276 = vector.load %arg12[%c0_240, %c4_241, %c0_242, %c0_243] : memref<1x8x8x16xf32, #tpu.memory_space<vmem>>, vector<1x1x8x16xf32>
    %277 = vector.shape_cast %276 : vector<1x1x8x16xf32> to vector<8x16xf32>
    %278 = vector.shape_cast %275 : vector<8x16xf32> to vector<1x1x8x16xf32>
    tpu.vector_store %arg12[%c0_240, %c4_241, %c0_242, %c0_243], %278 {strides = array<i32>} : memref<1x8x8x16xf32, #tpu.memory_space<vmem>>, vector<1x1x8x16xf32>,
    %c5 = arith.constant 5 : index
    %279 = memref.load %arg10[%c5] : memref<8xf32, #tpu.memory_space<smem>>
    %280 = vector.broadcast %279 : f32 to vector<8x16xf32>
    %281 = arith.mulf %177, %280 : vector<8x16xf32>
    %c5_244 = arith.constant 5 : index
    %282 = memref.load %arg11[%c5_244] : memref<8xf32, #tpu.memory_space<smem>>
    %283 = vector.broadcast %282 : f32 to vector<8x16xf32>
    %284 = arith.addf %281, %283 : vector<8x16xf32>
    %c0_245 = arith.constant 0 : index
    %c5_246 = arith.constant 5 : index
    %c0_247 = arith.constant 0 : index
    %c0_248 = arith.constant 0 : index
    %285 = vector.load %arg12[%c0_245, %c5_246, %c0_247, %c0_248] : memref<1x8x8x16xf32, #tpu.memory_space<vmem>>, vector<1x1x8x16xf32>
    %286 = vector.shape_cast %285 : vector<1x1x8x16xf32> to vector<8x16xf32>
    %287 = vector.shape_cast %284 : vector<8x16xf32> to vector<1x1x8x16xf32>
    tpu.vector_store %arg12[%c0_245, %c5_246, %c0_247, %c0_248], %287 {strides = array<i32>} : memref<1x8x8x16xf32, #tpu.memory_space<vmem>>, vector<1x1x8x16xf32>,
    %c6 = arith.constant 6 : index
    %288 = memref.load %arg10[%c6] : memref<8xf32, #tpu.memory_space<smem>>
    %289 = vector.broadcast %288 : f32 to vector<8x16xf32>
    %290 = arith.mulf %205, %289 : vector<8x16xf32>
    %c6_249 = arith.constant 6 : index
    %291 = memref.load %arg11[%c6_249] : memref<8xf32, #tpu.memory_space<smem>>
    %292 = vector.broadcast %291 : f32 to vector<8x16xf32>
    %293 = arith.addf %290, %292 : vector<8x16xf32>
    %c0_250 = arith.constant 0 : index
    %c6_251 = arith.constant 6 : index
    %c0_252 = arith.constant 0 : index
    %c0_253 = arith.constant 0 : index
    %294 = vector.load %arg12[%c0_250, %c6_251, %c0_252, %c0_253] : memref<1x8x8x16xf32, #tpu.memory_space<vmem>>, vector<1x1x8x16xf32>
    %295 = vector.shape_cast %294 : vector<1x1x8x16xf32> to vector<8x16xf32>
    %296 = vector.shape_cast %293 : vector<8x16xf32> to vector<1x1x8x16xf32>
    tpu.vector_store %arg12[%c0_250, %c6_251, %c0_252, %c0_253], %296 {strides = array<i32>} : memref<1x8x8x16xf32, #tpu.memory_space<vmem>>, vector<1x1x8x16xf32>,
    %c7 = arith.constant 7 : index
    %297 = memref.load %arg10[%c7] : memref<8xf32, #tpu.memory_space<smem>>
    %298 = vector.broadcast %297 : f32 to vector<8x16xf32>
    %299 = arith.mulf %233, %298 : vector<8x16xf32>
    %c7_254 = arith.constant 7 : index
    %300 = memref.load %arg11[%c7_254] : memref<8xf32, #tpu.memory_space<smem>>
    %301 = vector.broadcast %300 : f32 to vector<8x16xf32>
    %302 = arith.addf %299, %301 : vector<8x16xf32>
    %c0_255 = arith.constant 0 : index
    %c7_256 = arith.constant 7 : index
    %c0_257 = arith.constant 0 : index
    %c0_258 = arith.constant 0 : index
    %303 = vector.load %arg12[%c0_255, %c7_256, %c0_257, %c0_258] : memref<1x8x8x16xf32, #tpu.memory_space<vmem>>, vector<1x1x8x16xf32>
    %304 = vector.shape_cast %303 : vector<1x1x8x16xf32> to vector<8x16xf32>
    %305 = vector.shape_cast %302 : vector<8x16xf32> to vector<1x1x8x16xf32>
    tpu.vector_store %arg12[%c0_255, %c7_256, %c0_257, %c0_258], %305 {strides = array<i32>} : memref<1x8x8x16xf32, #tpu.memory_space<vmem>>, vector<1x1x8x16xf32>,
    return
  }
  func.func @transform_0(%arg0: i32, %arg1: i32) -> (i32, i32, i32, i32) {
    %c0_i32 = arith.constant 0 : i32
    %c0_i32_0 = arith.constant 0 : i32
    %c0_i32_1 = arith.constant 0 : i32
    %c0_i32_2 = arith.constant 0 : i32
    return %arg0, %c0_i32, %c0_i32_0, %c0_i32_1 : i32, i32, i32, i32
  }
  func.func @transform_1(%arg0: i32, %arg1: i32) -> (i32, i32, i32, i32) {
    %c0_i32 = arith.constant 0 : i32
    %c0_i32_0 = arith.constant 0 : i32
    %c0_i32_1 = arith.constant 0 : i32
    return %arg0, %c0_i32, %arg1, %c0_i32_0 : i32, i32, i32, i32
  }
  func.func @transform_2(%arg0: i32, %arg1: i32) -> (i32, i32) {
    %c0_i32 = arith.constant 0 : i32
    %c0_i32_0 = arith.constant 0 : i32
    return %arg1, %c0_i32 : i32, i32
  }
  func.func @transform_3(%arg0: i32, %arg1: i32) -> (i32, i32) {
    %c0_i32 = arith.constant 0 : i32
    %c0_i32_0 = arith.constant 0 : i32
    %c0_i32_1 = arith.constant 0 : i32
    return %c0_i32, %c0_i32_0 : i32, i32
  }
  func.func @transform_4(%arg0: i32, %arg1: i32) -> (i32, i32) {
    %c0_i32 = arith.constant 0 : i32
    %c0_i32_0 = arith.constant 0 : i32
    %c0_i32_1 = arith.constant 0 : i32
    return %c0_i32, %c0_i32_0 : i32, i32
  }
  func.func @transform_5(%arg0: i32, %arg1: i32) -> i32 {
    %c0_i32 = arith.constant 0 : i32
    %c0_i32_0 = arith.constant 0 : i32
    return %c0_i32 : i32
  }
  func.func @transform_6(%arg0: i32, %arg1: i32) -> (i32, i32) {
    %c0_i32 = arith.constant 0 : i32
    %c0_i32_0 = arith.constant 0 : i32
    %c0_i32_1 = arith.constant 0 : i32
    return %c0_i32, %c0_i32_0 : i32, i32
  }
  func.func @transform_7(%arg0: i32, %arg1: i32) -> i32 {
    %c0_i32 = arith.constant 0 : i32
    %c0_i32_0 = arith.constant 0 : i32
    return %c0_i32 : i32
  }
  func.func @transform_8(%arg0: i32, %arg1: i32) -> i32 {
    %c0_i32 = arith.constant 0 : i32
    %c0_i32_0 = arith.constant 0 : i32
    return %c0_i32 : i32
  }
  func.func @transform_9(%arg0: i32, %arg1: i32) -> i32 {
    %c0_i32 = arith.constant 0 : i32
    %c0_i32_0 = arith.constant 0 : i32
    return %c0_i32 : i32
  }
  func.func @transform_10(%arg0: i32, %arg1: i32) -> (i32, i32, i32, i32) {
    %c0_i32 = arith.constant 0 : i32
    %c0_i32_0 = arith.constant 0 : i32
    %c0_i32_1 = arith.constant 0 : i32
    return %arg0, %c0_i32, %arg1, %c0_i32_0 : i32, i32, i32, i32
  }
}

</mosaic_0001>

<llo_original>
// kernel: unet_block0_forward.3
$region0: #{unet_block0_forward.3}
  #allocation0 [shape = 'u32[]', space=smem, size = 0x4, offset = 0x4, fixed_abs, tag = 'smem constant byte address 0x4 - core index']
  #allocation1 [shape = 'u32[144,128]{1,0:T(1,128)}', space=vmem, size = 0x12000, scoped, tag = 'internal scratch']
  %s0 = inlined_call_operand.vmem [shape: f32[2,4,8,8], index: 0, kind: input, shape index: {}]
  %s1 = inlined_call_operand.vmem [shape: f32[2,4,16,16], index: 1, kind: input, shape index: {}]
  %s2 = inlined_call_operand.vmem [shape: f32[16,8], index: 2, kind: input, shape index: {}]
  %s3 = inlined_call_operand.vmem [shape: f32[8,16], index: 3, kind: input, shape index: {}]
  %s4 = inlined_call_operand.vmem [shape: f32[4,4], index: 4, kind: input, shape index: {}]
  %s5 = inlined_call_operand.vmem [shape: f32[4], index: 5, kind: input, shape index: {}]
  %s6 = inlined_call_operand.vmem [shape: f32[4,4], index: 6, kind: input, shape index: {}]
  %s7 = inlined_call_operand.vmem [shape: f32[4], index: 7, kind: input, shape index: {}]
  %s8 = inlined_call_operand.vmem [shape: f32[8], index: 8, kind: input, shape index: {}]
  %s9 = inlined_call_operand.vmem [shape: f32[8], index: 9, kind: input, shape index: {}]
  %s10 = inlined_call_operand.hbm [shape: f32[2,8,16,16], index: 10, kind: output, shape index: {}]
  %s11 = sld [smem:[#allocation0]]
  $region135: #{unet_block0_forward.3} parent=0
    _
  %s13 = ssub.s32 1, %s11
  %s14 = scalar_select 0, %s13, %s11
  $region1: #{unet_block0_forward.3} parent=0
    #allocation2 [shape = 'u8[32768]{0}', space=vmem, size = 0x8000, scoped, tag = 'input window, operand 1']
    #allocation3 [shape = 'u8[2048]{0}', space=smem, size = 0x800, scoped, tag = 'input window, operand 4, single buffered']
    #allocation4 [shape = 's32[2]{0}', space=sflag, size = 0x8, scoped, tag = 'scoped memory for unet_block0_forward.3']
    #allocation5 [shape = 's32[2]{0}', space=sflag, size = 0x8, scoped, tag = 'scoped memory for unet_block0_forward.3']
    #allocation6 [shape = 'u8[512]{0}', space=smem, size = 0x200, scoped, tag = 'input window, operand 5, single buffered']
    #allocation7 [shape = 's32[1]{0}', space=sflag, size = 0x4, scoped, tag = 'scoped memory for unet_block0_forward.3']
    #allocation8 [shape = 'u8[2048]{0}', space=smem, size = 0x800, scoped, tag = 'input window, operand 6, single buffered']
    #allocation9 [shape = 'u8[512]{0}', space=smem, size = 0x200, scoped, tag = 'input window, operand 7, single buffered']
    #allocation10 [shape = 's32[1]{0}', space=sflag, size = 0x4, scoped, tag = 'scoped memory for unet_block0_forward.3']
    #allocation11 [shape = 'u8[512]{0}', space=smem, size = 0x200, scoped, tag = 'input window, operand 8, single buffered']
    #allocation12 [shape = 'u8[512]{0}', space=smem, size = 0x200, scoped, tag = 'input window, operand 9, single buffered']
    #allocation13 [shape = 's32[1]{0}', space=sflag, size = 0x4, scoped, tag = 'scoped memory for unet_block0_forward.3']
    #allocation14 [shape = 'u8[65536]{0}', space=vmem, size = 0x10000, scoped, tag = 'output window, operand 0']
    %15 = vsyncpa [#allocation5], 0
    %16 = vsyncpa [#allocation7], 0
    %17 = vsyncpa [#allocation10], 0
    %18 = vsyncpa [#allocation13], 0
    %19 = vsyncpa [#allocation4], 0
    %s20 = scalar_lea.sflag [#allocation4], 1
    %21 = vsyncpa %s20, 0
    loop: start=0, step=1, limit=6
    $region2: #{unet_block0_forward.3} parent=1 // loop_pre_header
      _
    $region3: #{unet_block0_forward.3} parent=1 // loop_header
      %s23 = sphi 0, %s27
      %p24 = scmp.ge.s32.totalorder %s23, 6
      %s30 = sphi 0, %s42
      %s31 = sphi 0, %s38
      %s32 = sphi 0, %s30
      %s33 = sphi 0, %s31
      %s34 = sphi 0, %s32
      %s35 = sphi 0, %s33
      %s45 = sphi 0, %s47
      %s48 = sphi 0, %s45
      %s49 = sphi 0, %s48
      %s65 = sphi 0, %s49
      %s73 = sphi 0, %s75
      %s76 = sphi 0, %s73
      %s77 = sphi 0, %s76
      %s93 = sphi 0, %s77
      %s99 = sphi 0, %s101
      %s102 = sphi 0, %s99
      %s103 = sphi 0, %s102
      %s119 = sphi 0, %s103
      %s123 = sphi 0, %s123
      %s125 = sphi 0, %s123
      %s126 = sphi 0, %s125
      %s140 = sphi 0, %s126
      %s144 = sphi 0, %s144
      %s146 = sphi 0, %s144
      %s147 = sphi 0, %s146
      %s161 = sphi 0, %s147
      %s165 = sphi 0, %s165
      %s167 = sphi 0, %s165
      %s168 = sphi 0, %s167
      %s182 = sphi 0, %s168
      %s186 = sphi 0, %s186
      %s188 = sphi 0, %s186
      %s189 = sphi 0, %s188
      %s203 = sphi 0, %s189
      %s207 = sphi 0, %s207
      %s209 = sphi 0, %s207
      %s210 = sphi 0, %s209
      %s224 = sphi 0, %s210
      %s228 = sphi 0, %s228
      %s230 = sphi 0, %s228
      %s231 = sphi 0, %s230
      %s245 = sphi 0, %s231
      %s249 = sphi 0, %s249
      %s251 = sphi 0, %s249
      %s252 = sphi 0, %s251
      %s266 = sphi 0, %s252
      %s274 = sphi 0, %s276
      %s277 = sphi 0, %s274
      %s278 = sphi 0, %s277
      %s294 = sphi 0, %s278
    $region4: #{unet_block0_forward.3} parent=1 // loop_header_branch
      %26 = sbr.rel (%p24) target = $region8
    $region5: #{unet_block0_forward.3} parent=1 // loop_body
      %s28 = ssub.s32 %s23, 1
      %s29 = ssub.s32 %s23, 2
      %s36 = sadd.s32 1, %s31
      %p37 = scmp.ge.s32.totalorder %s36, 2
      %s38 = scalar_select %p37, 0, %s36
      %s39 = sadd.s32 1, %s30
      %s40 = scalar_select %p37, %s39, %s30
      %p41 = scmp.ge.s32.totalorder %s40, 2
      %s42 = scalar_select %p41, 0, %s40
      %s43 = ssub.s32 %s30, %s42
      %p44 = scmp.eq.s32.totalorder %s43, 0
      %s46 = sadd.s32 %s45, 1
      %s47 = scalar_select %p44, %s45, %s46
      %p50 = pneg %p44
      %p51 = scmp.eq.s32.totalorder %s23, 3
      %p52 = por %p50, %p51
      %p53 = scmp.ne.s32.totalorder %s45, %s48
      %p54 = scmp.eq.s32.totalorder %s23, 0
      %p55 = por %p53, %p54
      %p56 = scmp.ne.s32.totalorder %s45, %s48
      %p57 = scmp.eq.s32.totalorder %s28, 3
      %p58 = por %p56, %p57
      %p59 = scmp.ne.s32.totalorder %s48, %s49
      %p60 = scmp.eq.s32.totalorder %s28, 0
      %p61 = por %p59, %p60
      %p62 = scmp.ne.s32.totalorder %s48, %s49
      %p63 = scmp.eq.s32.totalorder %s29, 3
      %p64 = por %p62, %p63
      %p66 = scmp.ne.s32.totalorder %s49, %s65
      %p67 = scmp.eq.s32.totalorder %s29, 0
      %p68 = por %p66, %p67
      %s69 = ssub.s32 %s30, %s42
      %s70 = ssub.s32 %s31, %s38
      %s71 = sor.u32 %s69, %s70
      %p72 = scmp.eq.s32.totalorder %s71, 0
      %s74 = sadd.s32 %s73, 1
      %s75 = scalar_select %p72, %s73, %s74
      %p78 = pneg %p72
      %p79 = scmp.eq.s32.totalorder %s23, 3
      %p80 = por %p78, %p79
      %p81 = scmp.ne.s32.totalorder %s73, %s76
      %p82 = scmp.eq.s32.totalorder %s23, 0
      %p83 = por %p81, %p82
      %p84 = scmp.ne.s32.totalorder %s73, %s76
      %p85 = scmp.eq.s32.totalorder %s28, 3
      %p86 = por %p84, %p85
      %p87 = scmp.ne.s32.totalorder %s76, %s77
      %p88 = scmp.eq.s32.totalorder %s28, 0
      %p89 = por %p87, %p88
      %p90 = scmp.ne.s32.totalorder %s76, %s77
      %p91 = scmp.eq.s32.totalorder %s29, 3
      %p92 = por %p90, %p91
      %p94 = scmp.ne.s32.totalorder %s77, %s93
      %p95 = scmp.eq.s32.totalorder %s29, 0
      %p96 = por %p94, %p95
      %s97 = ssub.s32 %s31, %s38
      %p98 = scmp.eq.s32.totalorder %s97, 0
      %s100 = sadd.s32 %s99, 1
      %s101 = scalar_select %p98, %s99, %s100
      %p104 = pneg %p98
      %p105 = scmp.eq.s32.totalorder %s23, 3
      %p106 = por %p104, %p105
      %p107 = scmp.ne.s32.totalorder %s99, %s102
      %p108 = scmp.eq.s32.totalorder %s23, 0
      %p109 = por %p107, %p108
      %p110 = scmp.ne.s32.totalorder %s99, %s102
      %p111 = scmp.eq.s32.totalorder %s28, 3
      %p112 = por %p110, %p111
      %p113 = scmp.ne.s32.totalorder %s102, %s103
      %p114 = scmp.eq.s32.totalorder %s28, 0
      %p115 = por %p113, %p114
      %p116 = scmp.ne.s32.totalorder %s102, %s103
      %p117 = scmp.eq.s32.totalorder %s29, 3
      %p118 = por %p116, %p117
      %p120 = scmp.ne.s32.totalorder %s103, %s119
      %p121 = scmp.eq.s32.totalorder %s29, 0
      %p122 = por %p120, %p121
      %s124 = sadd.s32 %s123, 1
      %p127 = scmp.eq.s32.totalorder %s23, 3
      %p128 = scmp.ne.s32.totalorder %s123, %s125
      %p129 = scmp.eq.s32.totalorder %s23, 0
      %p130 = por %p128, %p129
      %p131 = scmp.ne.s32.totalorder %s123, %s125
      %p132 = scmp.eq.s32.totalorder %s28, 3
      %p133 = por %p131, %p132
      %p134 = scmp.ne.s32.totalorder %s125, %s126
      %p135 = scmp.eq.s32.totalorder %s28, 0
      %p136 = por %p134, %p135
      %p137 = scmp.ne.s32.totalorder %s125, %s126
      %p138 = scmp.eq.s32.totalorder %s29, 3
      %p139 = por %p137, %p138
      %p141 = scmp.ne.s32.totalorder %s126, %s140
      %p142 = scmp.eq.s32.totalorder %s29, 0
      %p143 = por %p141, %p142
      %s145 = sadd.s32 %s144, 1
      %p148 = scmp.eq.s32.totalorder %s23, 3
      %p149 = scmp.ne.s32.totalorder %s144, %s146
      %p150 = scmp.eq.s32.totalorder %s23, 0
      %p151 = por %p149, %p150
      %p152 = scmp.ne.s32.totalorder %s144, %s146
      %p153 = scmp.eq.s32.totalorder %s28, 3
      %p154 = por %p152, %p153
      %p155 = scmp.ne.s32.totalorder %s146, %s147
      %p156 = scmp.eq.s32.totalorder %s28, 0
      %p157 = por %p155, %p156
      %p158 = scmp.ne.s32.totalorder %s146, %s147
      %p159 = scmp.eq.s32.totalorder %s29, 3
      %p160 = por %p158, %p159
      %p162 = scmp.ne.s32.totalorder %s147, %s161
      %p163 = scmp.eq.s32.totalorder %s29, 0
      %p164 = por %p162, %p163
      %s166 = sadd.s32 %s165, 1
      %p169 = scmp.eq.s32.totalorder %s23, 3
      %p170 = scmp.ne.s32.totalorder %s165, %s167
      %p171 = scmp.eq.s32.totalorder %s23, 0
      %p172 = por %p170, %p171
      %p173 = scmp.ne.s32.totalorder %s165, %s167
      %p174 = scmp.eq.s32.totalorder %s28, 3
      %p175 = por %p173, %p174
      %p176 = scmp.ne.s32.totalorder %s167, %s168
      %p177 = scmp.eq.s32.totalorder %s28, 0
      %p178 = por %p176, %p177
      %p179 = scmp.ne.s32.totalorder %s167, %s168
      %p180 = scmp.eq.s32.totalorder %s29, 3
      %p181 = por %p179, %p180
      %p183 = scmp.ne.s32.totalorder %s168, %s182
      %p184 = scmp.eq.s32.totalorder %s29, 0
      %p185 = por %p183, %p184
      %s187 = sadd.s32 %s186, 1
      %p190 = scmp.eq.s32.totalorder %s23, 3
      %p191 = scmp.ne.s32.totalorder %s186, %s188
      %p192 = scmp.eq.s32.totalorder %s23, 0
      %p193 = por %p191, %p192
      %p194 = scmp.ne.s32.totalorder %s186, %s188
      %p195 = scmp.eq.s32.totalorder %s28, 3
      %p196 = por %p194, %p195
      %p197 = scmp.ne.s32.totalorder %s188, %s189
      %p198 = scmp.eq.s32.totalorder %s28, 0
      %p199 = por %p197, %p198
      %p200 = scmp.ne.s32.totalorder %s188, %s189
      %p201 = scmp.eq.s32.totalorder %s29, 3
      %p202 = por %p200, %p201
      %p204 = scmp.ne.s32.totalorder %s189, %s203
      %p205 = scmp.eq.s32.totalorder %s29, 0
      %p206 = por %p204, %p205
      %s208 = sadd.s32 %s207, 1
      %p211 = scmp.eq.s32.totalorder %s23, 3
      %p212 = scmp.ne.s32.totalorder %s207, %s209
      %p213 = scmp.eq.s32.totalorder %s23, 0
      %p214 = por %p212, %p213
      %p215 = scmp.ne.s32.totalorder %s207, %s209
      %p216 = scmp.eq.s32.totalorder %s28, 3
      %p217 = por %p215, %p216
      %p218 = scmp.ne.s32.totalorder %s209, %s210
      %p219 = scmp.eq.s32.totalorder %s28, 0
      %p220 = por %p218, %p219
      %p221 = scmp.ne.s32.totalorder %s209, %s210
      %p222 = scmp.eq.s32.totalorder %s29, 3
      %p223 = por %p221, %p222
      %p225 = scmp.ne.s32.totalorder %s210, %s224
      %p226 = scmp.eq.s32.totalorder %s29, 0
      %p227 = por %p225, %p226
      %s229 = sadd.s32 %s228, 1
      %p232 = scmp.eq.s32.totalorder %s23, 3
      %p233 = scmp.ne.s32.totalorder %s228, %s230
      %p234 = scmp.eq.s32.totalorder %s23, 0
      %p235 = por %p233, %p234
      %p236 = scmp.ne.s32.totalorder %s228, %s230
      %p237 = scmp.eq.s32.totalorder %s28, 3
      %p238 = por %p236, %p237
      %p239 = scmp.ne.s32.totalorder %s230, %s231
      %p240 = scmp.eq.s32.totalorder %s28, 0
      %p241 = por %p239, %p240
      %p242 = scmp.ne.s32.totalorder %s230, %s231
      %p243 = scmp.eq.s32.totalorder %s29, 3
      %p244 = por %p242, %p243
      %p246 = scmp.ne.s32.totalorder %s231, %s245
      %p247 = scmp.eq.s32.totalorder %s29, 0
      %p248 = por %p246, %p247
      %s250 = sadd.s32 %s249, 1
      %p253 = scmp.eq.s32.totalorder %s23, 3
      %p254 = scmp.ne.s32.totalorder %s249, %s251
      %p255 = scmp.eq.s32.totalorder %s23, 0
      %p256 = por %p254, %p255
      %p257 = scmp.ne.s32.totalorder %s249, %s251
      %p258 = scmp.eq.s32.totalorder %s28, 3
      %p259 = por %p257, %p258
      %p260 = scmp.ne.s32.totalorder %s251, %s252
      %p261 = scmp.eq.s32.totalorder %s28, 0
      %p262 = por %p260, %p261
      %p263 = scmp.ne.s32.totalorder %s251, %s252
      %p264 = scmp.eq.s32.totalorder %s29, 3
      %p265 = por %p263, %p264
      %p267 = scmp.ne.s32.totalorder %s252, %s266
      %p268 = scmp.eq.s32.totalorder %s29, 0
      %p269 = por %p267, %p268
      %s270 = ssub.s32 %s30, %s42
      %s271 = ssub.s32 %s31, %s38
      %s272 = sor.u32 %s270, %s271
      %p273 = scmp.eq.s32.totalorder %s272, 0
      %s275 = sadd.s32 %s274, 1
      %s276 = scalar_select %p273, %s274, %s275
      %p279 = pneg %p273
      %p280 = scmp.eq.s32.totalorder %s23, 3
      %p281 = por %p279, %p280
      %p282 = scmp.ne.s32.totalorder %s274, %s277
      %p283 = scmp.eq.s32.totalorder %s23, 0
      %p284 = por %p282, %p283
      %p285 = scmp.ne.s32.totalorder %s274, %s277
      %p286 = scmp.eq.s32.totalorder %s28, 3
      %p287 = por %p285, %p286
      %p288 = scmp.ne.s32.totalorder %s277, %s278
      %p289 = scmp.eq.s32.totalorder %s28, 0
      %p290 = por %p288, %p289
      %p291 = scmp.ne.s32.totalorder %s277, %s278
      %p292 = scmp.eq.s32.totalorder %s29, 3
      %p293 = por %p291, %p292
      %p295 = scmp.ne.s32.totalorder %s278, %s294
      %p296 = scmp.eq.s32.totalorder %s29, 0
      %p297 = por %p295, %p296
      %p298 = scmp.le.s32.totalorder 1, %s23
      %p299 = scmp.lt.s32.totalorder %s23, 5
      %p300 = pnand %p298, %p299
      %p301 = pneg %p300
      // Predicated region
      $region9: #{unet_block0_forward.3} parent=5 // pred_check
        _
      $region10: #{unet_block0_forward.3} parent=5 // pred_check_branch
        %303 = sbr.rel (%p300) target = $region12
      $region11: #{unet_block0_forward.3} parent=5 // pred_region
        %s304 = ssub.s32 %s23, 1
        // Predicated region
        $region13: #{unet_block0_forward.3} parent=11 // pred_check
          %p305 = pneg %p136
        $region14: #{unet_block0_forward.3} parent=11 // pred_check_branch
          %307 = sbr.rel (%p305) target = $region16
        $region15: #{unet_block0_forward.3} parent=11 // pred_region
          _
        $region16: #{unet_block0_forward.3} parent=11 // pred_fallthru
          _
        // Predicated region
        $region17: #{unet_block0_forward.3} parent=11 // pred_check
          %p308 = pneg %p157
        $region18: #{unet_block0_forward.3} parent=11 // pred_check_branch
          %310 = sbr.rel (%p308) target = $region20
        $region19: #{unet_block0_forward.3} parent=11 // pred_region
          %s312 = ssub.s32 64, 64
          %313 = vsyncadd [#allocation5], %s312
          %s315 = sshll.u32 %s4, 4
          %s316 = int_to_ptr.vmem [resolvable:$true] %s315
          %318 = dma.vmem_to_smem %s316, 64, [#allocation3], [#allocation5]
        $region20: #{unet_block0_forward.3} parent=11 // pred_fallthru
          _
        // Predicated region
        $region21: #{unet_block0_forward.3} parent=11 // pred_check
          %p319 = pneg %p178
        $region22: #{unet_block0_forward.3} parent=11 // pred_check_branch
          %321 = sbr.rel (%p319) target = $region24
        $region23: #{unet_block0_forward.3} parent=11 // pred_region
          %s323 = ssub.s32 16, 16
          %324 = vsyncadd [#allocation7], %s323
          %s326 = sshll.u32 %s5, 4
          %s327 = int_to_ptr.vmem [resolvable:$true] %s326
          %329 = dma.vmem_to_smem %s327, 16, [#allocation6], [#allocation7]
        $region24: #{unet_block0_forward.3} parent=11 // pred_fallthru
          _
        // Predicated region
        $region25: #{unet_block0_forward.3} parent=11 // pred_check
          %p330 = pneg %p199
        $region26: #{unet_block0_forward.3} parent=11 // pred_check_branch
          %332 = sbr.rel (%p330) target = $region28
        $region27: #{unet_block0_forward.3} parent=11 // pred_region
          %s334 = ssub.s32 64, 64
          %335 = vsyncadd [#allocation7], %s334
          %s337 = sshll.u32 %s6, 4
          %s338 = int_to_ptr.vmem [resolvable:$true] %s337
          %340 = dma.vmem_to_smem %s338, 64, [#allocation8], [#allocation7]
        $region28: #{unet_block0_forward.3} parent=11 // pred_fallthru
          _
        // Predicated region
        $region29: #{unet_block0_forward.3} parent=11 // pred_check
          %p341 = pneg %p220
        $region30: #{unet_block0_forward.3} parent=11 // pred_check_branch
          %343 = sbr.rel (%p341) target = $region32
        $region31: #{unet_block0_forward.3} parent=11 // pred_region
          %s345 = ssub.s32 16, 16
          %346 = vsyncadd [#allocation10], %s345
          %s348 = sshll.u32 %s7, 4
          %s349 = int_to_ptr.vmem [resolvable:$true] %s348
          %351 = dma.vmem_to_smem %s349, 16, [#allocation9], [#allocation10]
        $region32: #{unet_block0_forward.3} parent=11 // pred_fallthru
          _
        // Predicated region
        $region33: #{unet_block0_forward.3} parent=11 // pred_check
          %p352 = pneg %p241
        $region34: #{unet_block0_forward.3} parent=11 // pred_check_branch
          %354 = sbr.rel (%p352) target = $region36
        $region35: #{unet_block0_forward.3} parent=11 // pred_region
          %s356 = ssub.s32 16, 16
          %357 = vsyncadd [#allocation10], %s356
          %s359 = sshll.u32 %s8, 4
          %s360 = int_to_ptr.vmem [resolvable:$true] %s359
          %362 = dma.vmem_to_smem %s360, 16, [#allocation11], [#allocation10]
        $region36: #{unet_block0_forward.3} parent=11 // pred_fallthru
          _
        // Predicated region
        $region37: #{unet_block0_forward.3} parent=11 // pred_check
          %p363 = pneg %p262
        $region38: #{unet_block0_forward.3} parent=11 // pred_check_branch
          %365 = sbr.rel (%p363) target = $region40
        $region39: #{unet_block0_forward.3} parent=11 // pred_region
          %s367 = ssub.s32 16, 16
          %368 = vsyncadd [#allocation13], %s367
          %s370 = sshll.u32 %s9, 4
          %s371 = int_to_ptr.vmem [resolvable:$true] %s370
          %373 = dma.vmem_to_smem %s371, 16, [#allocation12], [#allocation13]
        $region40: #{unet_block0_forward.3} parent=11 // pred_fallthru
          _
      $region12: #{unet_block0_forward.3} parent=5 // pred_fallthru
        _
      %p374 = scmp.lt.s32.totalorder %s23, 4
      // Predicated region
      $region41: #{unet_block0_forward.3} parent=5 // pred_check
        %p375 = pneg %p374
      $region42: #{unet_block0_forward.3} parent=5 // pred_check_branch
        %377 = sbr.rel (%p375) target = $region44
      $region43: #{unet_block0_forward.3} parent=5 // pred_region
        // Predicated region
        $region45: #{unet_block0_forward.3} parent=43 // pred_check
          %p378 = pneg %p55
        $region46: #{unet_block0_forward.3} parent=43 // pred_check_branch
          %380 = sbr.rel (%p378) target = $region48
        $region47: #{unet_block0_forward.3} parent=43 // pred_region
          %p381 = scmp.lt.s32.totalorder %s30, 1
          %s382 = scalar_select %p381, %s30, 1
          %s383 = smul.addr %s382, 4
          %s384 = smul.addr %s383, 8
          %s385 = scalar_lea.vmem %s0, %s384
        $region48: #{unet_block0_forward.3} parent=43 // pred_fallthru
          _
        // Predicated region
        $region49: #{unet_block0_forward.3} parent=43 // pred_check
          %p386 = pneg %p83
        $region50: #{unet_block0_forward.3} parent=43 // pred_check_branch
          %388 = sbr.rel (%p386) target = $region52
        $region51: #{unet_block0_forward.3} parent=43 // pred_region
          %s389 = sand.u32 %s73, 1
          %s390 = sand.u32 %s73, 1
          %s391 = smul.addr %s390, 32
          %s392 = scalar_lea.vmem [#allocation2], %s391
          %s393 = smul.addr %s30, 8
          %s394 = sadd.s32 %s31, %s393
          %s395 = smul.addr %s394, 8
          %s396 = scalar_lea.vmem %s1, %s395
          // Predicated region
          $region53: #{unet_block0_forward.3} parent=51 // pred_check
            _
          $region54: #{unet_block0_forward.3} parent=51 // pred_check_branch
            %398 = sbr.rel (0) target = $region56
          $region55: #{unet_block0_forward.3} parent=51 // pred_region
            // Predicated region
            $region57: #{unet_block0_forward.3} parent=55 // pred_check
              _
            $region58: #{unet_block0_forward.3} parent=55 // pred_check_branch
              %400 = sbr.rel (0) target = $region60
            $region59: #{unet_block0_forward.3} parent=55 // pred_region
              // Predicated region
              $region72: #{unet_block0_forward.3} parent=59 // pred_check
                _
              $region73: #{unet_block0_forward.3} parent=59 // pred_check_branch
                %422 = sbr.rel (0) target = $region75
              $region74: #{unet_block0_forward.3} parent=59 // pred_region
                loop: start=0, step=1, limit=1
                $region76: #{unet_block0_forward.3} parent=74 // loop_pre_header
                  _
                $region77: #{unet_block0_forward.3} parent=74 // loop_header
                  %s424 = sphi 0, %s428
                  %p425 = scmp.ge.s32.totalorder %s424, 1
                  %s429 = sphi %s396, %s396
                  %s430 = sphi %s392, %s392
                $region78: #{unet_block0_forward.3} parent=74 // loop_header_branch
                  %427 = sbr.rel (%p425) target = $region82
                $region79: #{unet_block0_forward.3} parent=74 // loop_body
                  %v431 = vld [vmem:[%s429] sm:$0xff]
                  %432 = vst [vmem:[%s430] sm:$0xff] %v431
                  %v433 = vld [vmem:[%s429 + $0x10] sm:$0xff]
                  %434 = vst [vmem:[%s430 + $0x8] sm:$0xff] %v433
                  %v435 = vld [vmem:[%s429 + $0x20] sm:$0xff]
                  %436 = vst [vmem:[%s430 + $0x10] sm:$0xff] %v435
                  %v437 = vld [vmem:[%s429 + $0x30] sm:$0xff]
                  %438 = vst [vmem:[%s430 + $0x18] sm:$0xff] %v437
                $region80: #{unet_block0_forward.3} parent=74 // loop_footer
                  %s428 = sadd.s32 1, %s424
                $region81: #{unet_block0_forward.3} parent=74 // loop_footer_branch
                  %423 = sbr.rel target = $region77
                $region82: #{unet_block0_forward.3} parent=74 // loop_exit
                  _
              $region75: #{unet_block0_forward.3} parent=59 // pred_fallthru
                _
              // Predicated region
              $region83: #{unet_block0_forward.3} parent=59 // pred_check
                _
              $region84: #{unet_block0_forward.3} parent=59 // pred_check_branch
                %440 = sbr.rel target = $region86
              $region85: #{unet_block0_forward.3} parent=59 // pred_region
                _
              $region86: #{unet_block0_forward.3} parent=59 // pred_fallthru
                _
            $region60: #{unet_block0_forward.3} parent=55 // pred_fallthru
              _
            // Predicated region
            $region61: #{unet_block0_forward.3} parent=55 // pred_check
              _
            $region62: #{unet_block0_forward.3} parent=55 // pred_check_branch
              %402 = sbr.rel target = $region64
            $region63: #{unet_block0_forward.3} parent=55 // pred_region
              %s404 = ssub.s32 256, 1
              loop: start=0, step=1, limit=1
              $region65: #{unet_block0_forward.3} parent=63 // loop_pre_header
                _
              $region66: #{unet_block0_forward.3} parent=63 // loop_header
                %s406 = sphi 0, %s410
                %p407 = scmp.ge.s32.totalorder %s406, 1
                %s411 = sphi %s396, %s396
                %s412 = sphi %s392, %s392
              $region67: #{unet_block0_forward.3} parent=63 // loop_header_branch
                %409 = sbr.rel (%p407) target = $region71
              $region68: #{unet_block0_forward.3} parent=63 // loop_body
                %v413 = vld [vmem:[%s411] sm:%s404]
                %414 = vst [vmem:[%s412] sm:%s404] %v413
                %v415 = vld [vmem:[%s411 + $0x10] sm:%s404]
                %416 = vst [vmem:[%s412 + $0x8] sm:%s404] %v415
                %v417 = vld [vmem:[%s411 + $0x20] sm:%s404]
                %418 = vst [vmem:[%s412 + $0x10] sm:%s404] %v417
                %v419 = vld [vmem:[%s411 + $0x30] sm:%s404]
                %420 = vst [vmem:[%s412 + $0x18] sm:%s404] %v419
              $region69: #{unet_block0_forward.3} parent=63 // loop_footer
                %s410 = sadd.s32 1, %s406
              $region70: #{unet_block0_forward.3} parent=63 // loop_footer_branch
                %405 = sbr.rel target = $region66
              $region71: #{unet_block0_forward.3} parent=63 // loop_exit
                _
            $region64: #{unet_block0_forward.3} parent=55 // pred_fallthru
              _
          $region56: #{unet_block0_forward.3} parent=51 // pred_fallthru
            _
          %441 = vnop
        $region52: #{unet_block0_forward.3} parent=43 // pred_fallthru
          _
        // Predicated region
        $region87: #{unet_block0_forward.3} parent=43 // pred_check
          %p442 = pneg %p109
        $region88: #{unet_block0_forward.3} parent=43 // pred_check_branch
          %444 = sbr.rel (%p442) target = $region90
        $region89: #{unet_block0_forward.3} parent=43 // pred_region
          %p445 = scmp.lt.s32.totalorder %s31, 1
          %s446 = scalar_select %p445, %s31, 1
          %s447 = smul.addr %s446, 8
          %s448 = scalar_lea.vmem %s2, %s447
        $region90: #{unet_block0_forward.3} parent=43 // pred_fallthru
          _
      $region44: #{unet_block0_forward.3} parent=5 // pred_fallthru
        _
      %p449 = scmp.le.s32.totalorder 1, %s23
      %p450 = scmp.lt.s32.totalorder %s23, 5
      %p451 = pnand %p449, %p450
      %p452 = pneg %p451
      // Predicated region
      $region91: #{unet_block0_forward.3} parent=5 // pred_check
        _
      $region92: #{unet_block0_forward.3} parent=5 // pred_check_branch
        %454 = sbr.rel (%p451) target = $region94
      $region93: #{unet_block0_forward.3} parent=5 // pred_region
        %s455 = ssub.s32 %s23, 1
        %s456 = sand.u32 %s76, 1
        %s457 = sand.u32 %s76, 1
        %s458 = smul.addr %s457, 32
        %s459 = scalar_lea.vmem [#allocation2], %s458
        // Predicated region
        $region95: #{unet_block0_forward.3} parent=93 // pred_check
          %p460 = pneg %p89
        $region96: #{unet_block0_forward.3} parent=93 // pred_check_branch
          %462 = sbr.rel (%p460) target = $region98
        $region97: #{unet_block0_forward.3} parent=93 // pred_region
          _
        $region98: #{unet_block0_forward.3} parent=93 // pred_fallthru
          _
        // Predicated region
        $region99: #{unet_block0_forward.3} parent=93 // pred_check
          %p463 = pneg %p157
        $region100: #{unet_block0_forward.3} parent=93 // pred_check_branch
          %465 = sbr.rel (%p463) target = $region102
        $region101: #{unet_block0_forward.3} parent=93 // pred_region
          %466 = dma.done [#allocation5], 64
        $region102: #{unet_block0_forward.3} parent=93 // pred_fallthru
          _
        // Predicated region
        $region103: #{unet_block0_forward.3} parent=93 // pred_check
          %p467 = pneg %p178
        $region104: #{unet_block0_forward.3} parent=93 // pred_check_branch
          %469 = sbr.rel (%p467) target = $region106
        $region105: #{unet_block0_forward.3} parent=93 // pred_region
          %470 = dma.done [#allocation7], 16
        $region106: #{unet_block0_forward.3} parent=93 // pred_fallthru
          _
        // Predicated region
        $region107: #{unet_block0_forward.3} parent=93 // pred_check
          %p471 = pneg %p199
        $region108: #{unet_block0_forward.3} parent=93 // pred_check_branch
          %473 = sbr.rel (%p471) target = $region110
        $region109: #{unet_block0_forward.3} parent=93 // pred_region
          %474 = dma.done [#allocation7], 64
        $region110: #{unet_block0_forward.3} parent=93 // pred_fallthru
          _
        // Predicated region
        $region111: #{unet_block0_forward.3} parent=93 // pred_check
          %p475 = pneg %p220
        $region112: #{unet_block0_forward.3} parent=93 // pred_check_branch
          %477 = sbr.rel (%p475) target = $region114
        $region113: #{unet_block0_forward.3} parent=93 // pred_region
          %478 = dma.done [#allocation10], 16
        $region114: #{unet_block0_forward.3} parent=93 // pred_fallthru
          _
        // Predicated region
        $region115: #{unet_block0_forward.3} parent=93 // pred_check
          %p479 = pneg %p241
        $region116: #{unet_block0_forward.3} parent=93 // pred_check_branch
          %481 = sbr.rel (%p479) target = $region118
        $region117: #{unet_block0_forward.3} parent=93 // pred_region
          %482 = dma.done [#allocation10], 16
        $region118: #{unet_block0_forward.3} parent=93 // pred_fallthru
          _
        // Predicated region
        $region119: #{unet_block0_forward.3} parent=93 // pred_check
          %p483 = pneg %p262
        $region120: #{unet_block0_forward.3} parent=93 // pred_check_branch
          %485 = sbr.rel (%p483) target = $region122
        $region121: #{unet_block0_forward.3} parent=93 // pred_region
          %486 = dma.done [#allocation13], 16
        $region122: #{unet_block0_forward.3} parent=93 // pred_fallthru
          _
        %487 = sfence
        %p488 = scmp.lt.s32.totalorder %s32, 1
        %s489 = scalar_select %p488, %s32, 1
        %s490 = smul.addr %s489, 4
        %s491 = smul.addr %s490, 8
        %s492 = scalar_lea.vmem %s0, %s491
        %p493 = pneg %p61
        %p494 = pneg %p58
        %s495 = sand.u32 %s76, 1
        %s496 = sand.u32 %s76, 1
        %s497 = smul.addr %s496, 32
        %s498 = scalar_lea.vmem [#allocation2], %s497
        %p499 = pneg %p89
        %p500 = pneg %p86
        %p501 = scmp.lt.s32.totalorder %s33, 1
        %s502 = scalar_select %p501, %s33, 1
        %s503 = smul.addr %s502, 8
        %s504 = scalar_lea.vmem %s2, %s503
        %p505 = pneg %p115
        %p506 = pneg %p112
        %p507 = pneg %p136
        %p508 = pneg %p133
        %p509 = pneg %p157
        %p510 = pneg %p154
        %p511 = pneg %p178
        %p512 = pneg %p175
        %p513 = pneg %p199
        %p514 = pneg %p196
        %p515 = pneg %p220
        %p516 = pneg %p217
        %p517 = pneg %p241
        %p518 = pneg %p238
        %p519 = pneg %p262
        %p520 = pneg %p259
        %p521 = pneg %p290
        %p522 = pneg %p287
        %s523 = sand.u32 %s277, 1
        %s524 = scalar_lea.sflag [#allocation4], %s523
        %s525 = sand.u32 %s277, 1
        %s526 = smul.addr %s525, 64
        %s527 = scalar_lea.vmem [#allocation14], %s526
        %p528 = scmp.lt.s32.totalorder %s32, 1
        %s529 = scalar_select %p528, %s32, 1
        %s530 = smul.addr %s529, 4
        %s531 = smul.addr %s530, 8
        %s532 = scalar_lea.vmem %s0, %s531
        %p533 = scmp.lt.s32.totalorder %s33, 1
        %s534 = scalar_select %p533, %s33, 1
        %s535 = smul.addr %s534, 8
        %s536 = scalar_lea.vmem %s2, %s535
        %v537 = vld [vmem:[%s536] sm:$0xff]
        %v538 = vld [vmem:[%s3] sm:$0xff]
        %s539 = sld [smem:[#allocation3]]
        %v540 = vld [vmem:[%s532] sm:$0xff]
        %v541 = vstv %s539
        %v542 = vmul.f32 %v541, %v540
        %s543 = sld [smem:[#allocation3 + $0x1]]
        %s544 = scalar_lea.vmem %s532, 8
        %v545 = vld [vmem:[%s544] sm:$0xff]
        %v546 = vstv %s543
        %v547 = vmul.f32 %v546, %v545
        %v548 = vadd.f32 %v542, %v547
        %s549 = sld [smem:[#allocation3 + $0x2]]
        %s550 = scalar_lea.vmem %s532, 16
        %v551 = vld [vmem:[%s550] sm:$0xff]
        %v552 = vstv %s549
        %v553 = vmul.f32 %v552, %v551
        %v554 = vadd.f32 %v548, %v553
        %s555 = sld [smem:[#allocation3 + $0x3]]
        %s556 = scalar_lea.vmem %s532, 24
        %v557 = vld [vmem:[%s556] sm:$0xff]
        %v558 = vstv %s555
        %v559 = vmul.f32 %v558, %v557
        %v560 = vadd.f32 %v554, %v559
        %s561 = sld [smem:[#allocation6]]
        %v562 = vstv %s561
        %v563 = vadd.f32 %v560, %v562
        %vm564 = vcmask 64512
        %v566 = vsel %vm564, %v537, 0
        %568 = vmatprep.subr.mxu0 0.0
        %569 = vmatpush1.msra.mxu0 0.0
        %570 = vmatprep.subr.mxu0 0.0
        %571 = vmatpush1.msra.mxu0 0.0
        %572 = vmatprep.subr.mxu0 0.0
        %573 = vmatpush1.msra.mxu0 0.0
        %574 = vmatprep.subr.mxu0 0.0
        %575 = vmatpush1.msra.mxu0 0.0
        %576 = vmatprep.subr.mxu0 0.0
        %577 = vmatpush1.msra.mxu0 0.0
        %578 = vmatprep.subr.mxu0 0.0
        %579 = vmatpush1.msra.mxu0 0.0
        %580 = vmatprep.subr.mxu0 0.0
        %581 = vmatpush1.msra.mxu0 0.0
        %582 = vmatprep.subr.mxu0 0.0
        %583 = vmatpush1.msra.mxu0 0.0
        %584 = vmatprep.subr.mxu0 0.0
        %585 = vmatpush1.msra.mxu0 0.0
        %586 = vmatprep.subr.mxu0 0.0
        %587 = vmatpush1.msra.mxu0 0.0
        %588 = vmatprep.subr.mxu0 0.0
        %589 = vmatpush1.msra.mxu0 0.0
        %590 = vmatprep.subr.mxu0 0.0
        %591 = vmatpush1.msra.mxu0 0.0
        %592 = vmatprep.subr.mxu0 0.0
        %593 = vmatpush1.msra.mxu0 0.0
        %594 = vmatprep.subr.mxu0 0.0
        %595 = vmatpush1.msra.mxu0 0.0
        %596 = vmatprep.subr.mxu0 0.0
        %597 = vmatpush1.msra.mxu0 0.0
        %598 = vmatprep.subr.mxu0 0.0
        %599 = vmatpush1.msra.mxu0 %v563
        %600 = vmatprep.subr.mxu0 0.0
        %601 = vmatpush2.msra.mxu0 0.0
        %602 = vmatprep.subr.mxu0 0.0
        %603 = vmatpush2.msra.mxu0 0.0
        %604 = vmatprep.subr.mxu0 0.0
        %605 = vmatpush2.msra.mxu0 0.0
        %606 = vmatprep.subr.mxu0 0.0
        %607 = vmatpush2.msra.mxu0 0.0
        %608 = vmatprep.subr.mxu0 0.0
        %609 = vmatpush2.msra.mxu0 0.0
        %610 = vmatprep.subr.mxu0 0.0
        %611 = vmatpush2.msra.mxu0 0.0
        %612 = vmatprep.subr.mxu0 0.0
        %613 = vmatpush2.msra.mxu0 0.0
        %614 = vmatprep.subr.mxu0 0.0
        %615 = vmatpush2.msra.mxu0 0.0
        %616 = vmatprep.subr.mxu0 0.0
        %617 = vmatpush2.msra.mxu0 0.0
        %618 = vmatprep.subr.mxu0 0.0
        %619 = vmatpush2.msra.mxu0 0.0
        %620 = vmatprep.subr.mxu0 0.0
        %621 = vmatpush2.msra.mxu0 0.0
        %622 = vmatprep.subr.mxu0 0.0
        %623 = vmatpush2.msra.mxu0 0.0
        %624 = vmatprep.subr.mxu0 0.0
        %625 = vmatpush2.msra.mxu0 0.0
        %626 = vmatprep.subr.mxu0 0.0
        %627 = vmatpush2.msra.mxu0 0.0
        %628 = vmatprep.subr.mxu0 0.0
        %629 = vmatpush2.msra.mxu0 0.0
        %630 = vmatprep.subr.mxu0 0.0
        %631 = vmatpush2.msra.mxu0 0.0
        %632 = vmatprep.mubr.f32.mxu0 0.0
        %633 = vmatmul.mubr.f32.gmra.mxu0 %v566
        %v634 = vpop.f32.mrf.mxu0
        %v635 = vadd.f32 0.0, %v634
        %v636 = vpop.f32.mrf.mxu0
        %637 = vdwg.mxu0
        %v639 = vsel %vm564, %v635, 0
        %641 = vmatprep.subr.mxu0 0.0
        %642 = vmatpush1.msra.mxu0 0.0
        %643 = vmatprep.subr.mxu0 0.0
        %644 = vmatpush1.msra.mxu0 0.0
        %645 = vmatprep.subr.mxu0 0.0
        %646 = vmatpush1.msra.mxu0 0.0
        %647 = vmatprep.subr.mxu0 0.0
        %648 = vmatpush1.msra.mxu0 0.0
        %649 = vmatprep.subr.mxu0 0.0
        %650 = vmatpush1.msra.mxu0 0.0
        %651 = vmatprep.subr.mxu0 0.0
        %652 = vmatpush1.msra.mxu0 0.0
        %653 = vmatprep.subr.mxu0 0.0
        %654 = vmatpush1.msra.mxu0 0.0
        %655 = vmatprep.subr.mxu0 0.0
        %656 = vmatpush1.msra.mxu0 0.0
        %657 = vmatprep.subr.mxu0 0.0
        %658 = vmatpush1.msra.mxu0 0.0
        %659 = vmatprep.subr.mxu0 0.0
        %660 = vmatpush1.msra.mxu0 0.0
        %661 = vmatprep.subr.mxu0 0.0
        %662 = vmatpush1.msra.mxu0 0.0
        %663 = vmatprep.subr.mxu0 0.0
        %664 = vmatpush1.msra.mxu0 0.0
        %665 = vmatprep.subr.mxu0 0.0
        %666 = vmatpush1.msra.mxu0 0.0
        %667 = vmatprep.subr.mxu0 0.0
        %668 = vmatpush1.msra.mxu0 0.0
        %669 = vmatprep.subr.mxu0 0.0
        %670 = vmatpush1.msra.mxu0 0.0
        %671 = vmatprep.subr.mxu0 0.0
        %672 = vmatpush1.msra.mxu0 %v538
        %673 = vmatprep.subr.mxu0 0.0
        %674 = vmatpush2.msra.mxu0 0.0
        %675 = vmatprep.subr.mxu0 0.0
        %676 = vmatpush2.msra.mxu0 0.0
        %677 = vmatprep.subr.mxu0 0.0
        %678 = vmatpush2.msra.mxu0 0.0
        %679 = vmatprep.subr.mxu0 0.0
        %680 = vmatpush2.msra.mxu0 0.0
        %681 = vmatprep.subr.mxu0 0.0
        %682 = vmatpush2.msra.mxu0 0.0
        %683 = vmatprep.subr.mxu0 0.0
        %684 = vmatpush2.msra.mxu0 0.0
        %685 = vmatprep.subr.mxu0 0.0
        %686 = vmatpush2.msra.mxu0 0.0
        %687 = vmatprep.subr.mxu0 0.0
        %688 = vmatpush2.msra.mxu0 0.0
        %689 = vmatprep.subr.mxu0 0.0
        %690 = vmatpush2.msra.mxu0 0.0
        %691 = vmatprep.subr.mxu0 0.0
        %692 = vmatpush2.msra.mxu0 0.0
        %693 = vmatprep.subr.mxu0 0.0
        %694 = vmatpush2.msra.mxu0 0.0
        %695 = vmatprep.subr.mxu0 0.0
        %696 = vmatpush2.msra.mxu0 0.0
        %697 = vmatprep.subr.mxu0 0.0
        %698 = vmatpush2.msra.mxu0 0.0
        %699 = vmatprep.subr.mxu0 0.0
        %700 = vmatpush2.msra.mxu0 0.0
        %701 = vmatprep.subr.mxu0 0.0
        %702 = vmatpush2.msra.mxu0 0.0
        %703 = vmatprep.subr.mxu0 0.0
        %704 = vmatpush2.msra.mxu0 0.0
        %705 = vmatprep.mubr.f32.mxu0 0.0
        %706 = vmatmul.mubr.f32.gmra.mxu0 %v639
        %v707 = vpop.f32.mrf.mxu0
        %v708 = vadd.f32 0.0, %v707
        %v709 = vpop.f32.mrf.mxu0
        %710 = vdwg.mxu0
        %v711 = vmax.f32 %v708, 0.0
        %s712 = sld [smem:[#allocation3 + $0x80]]
        %v713 = vstv %s712
        %v714 = vmul.f32 %v713, %v540
        %s715 = sld [smem:[#allocation3 + $0x81]]
        %v716 = vstv %s715
        %v717 = vmul.f32 %v716, %v545
        %v718 = vadd.f32 %v714, %v717
        %s719 = sld [smem:[#allocation3 + $0x82]]
        %v720 = vstv %s719
        %v721 = vmul.f32 %v720, %v551
        %v722 = vadd.f32 %v718, %v721
        %s723 = sld [smem:[#allocation3 + $0x83]]
        %v724 = vstv %s723
        %v725 = vmul.f32 %v724, %v557
        %v726 = vadd.f32 %v722, %v725
        %s727 = sld [smem:[#allocation6 + $0x1]]
        %v728 = vstv %s727
        %v729 = vadd.f32 %v726, %v728
        %730 = vmatprep.subr.mxu0 0.0
        %731 = vmatpush1.msra.mxu0 0.0
        %732 = vmatprep.subr.mxu0 0.0
        %733 = vmatpush1.msra.mxu0 0.0
        %734 = vmatprep.subr.mxu0 0.0
        %735 = vmatpush1.msra.mxu0 0.0
        %736 = vmatprep.subr.mxu0 0.0
        %737 = vmatpush1.msra.mxu0 0.0
        %738 = vmatprep.subr.mxu0 0.0
        %739 = vmatpush1.msra.mxu0 0.0
        %740 = vmatprep.subr.mxu0 0.0
        %741 = vmatpush1.msra.mxu0 0.0
        %742 = vmatprep.subr.mxu0 0.0
        %743 = vmatpush1.msra.mxu0 0.0
        %744 = vmatprep.subr.mxu0 0.0
        %745 = vmatpush1.msra.mxu0 0.0
        %746 = vmatprep.subr.mxu0 0.0
        %747 = vmatpush1.msra.mxu0 0.0
        %748 = vmatprep.subr.mxu0 0.0
        %749 = vmatpush1.msra.mxu0 0.0
        %750 = vmatprep.subr.mxu0 0.0
        %751 = vmatpush1.msra.mxu0 0.0
        %752 = vmatprep.subr.mxu0 0.0
        %753 = vmatpush1.msra.mxu0 0.0
        %754 = vmatprep.subr.mxu0 0.0
        %755 = vmatpush1.msra.mxu0 0.0
        %756 = vmatprep.subr.mxu0 0.0
        %757 = vmatpush1.msra.mxu0 0.0
        %758 = vmatprep.subr.mxu0 0.0
        %759 = vmatpush1.msra.mxu0 0.0
        %760 = vmatprep.subr.mxu0 0.0
        %761 = vmatpush1.msra.mxu0 %v729
        %762 = vmatprep.subr.mxu0 0.0
        %763 = vmatpush2.msra.mxu0 0.0
        %764 = vmatprep.subr.mxu0 0.0
        %765 = vmatpush2.msra.mxu0 0.0
        %766 = vmatprep.subr.mxu0 0.0
        %767 = vmatpush2.msra.mxu0 0.0
        %768 = vmatprep.subr.mxu0 0.0
        %769 = vmatpush2.msra.mxu0 0.0
        %770 = vmatprep.subr.mxu0 0.0
        %771 = vmatpush2.msra.mxu0 0.0
        %772 = vmatprep.subr.mxu0 0.0
        %773 = vmatpush2.msra.mxu0 0.0
        %774 = vmatprep.subr.mxu0 0.0
        %775 = vmatpush2.msra.mxu0 0.0
        %776 = vmatprep.subr.mxu0 0.0
        %777 = vmatpush2.msra.mxu0 0.0
        %778 = vmatprep.subr.mxu0 0.0
        %779 = vmatpush2.msra.mxu0 0.0
        %780 = vmatprep.subr.mxu0 0.0
        %781 = vmatpush2.msra.mxu0 0.0
        %782 = vmatprep.subr.mxu0 0.0
        %783 = vmatpush2.msra.mxu0 0.0
        %784 = vmatprep.subr.mxu0 0.0
        %785 = vmatpush2.msra.mxu0 0.0
        %786 = vmatprep.subr.mxu0 0.0
        %787 = vmatpush2.msra.mxu0 0.0
        %788 = vmatprep.subr.mxu0 0.0
        %789 = vmatpush2.msra.mxu0 0.0
        %790 = vmatprep.subr.mxu0 0.0
        %791 = vmatpush2.msra.mxu0 0.0
        %792 = vmatprep.subr.mxu0 0.0
        %793 = vmatpush2.msra.mxu0 0.0
        %794 = vmatprep.mubr.f32.mxu0 0.0
        %795 = vmatmul.mubr.f32.gmra.mxu0 %v566
        %v796 = vpop.f32.mrf.mxu0
        %v797 = vadd.f32 0.0, %v796
        %v798 = vpop.f32.mrf.mxu0
        %799 = vdwg.mxu0
        %v801 = vsel %vm564, %v797, 0
        %803 = vmatprep.subr.mxu0 0.0
        %804 = vmatpush1.msra.mxu0 0.0
        %805 = vmatprep.subr.mxu0 0.0
        %806 = vmatpush1.msra.mxu0 0.0
        %807 = vmatprep.subr.mxu0 0.0
        %808 = vmatpush1.msra.mxu0 0.0
        %809 = vmatprep.subr.mxu0 0.0
        %810 = vmatpush1.msra.mxu0 0.0
        %811 = vmatprep.subr.mxu0 0.0
        %812 = vmatpush1.msra.mxu0 0.0
        %813 = vmatprep.subr.mxu0 0.0
        %814 = vmatpush1.msra.mxu0 0.0
        %815 = vmatprep.subr.mxu0 0.0
        %816 = vmatpush1.msra.mxu0 0.0
        %817 = vmatprep.subr.mxu0 0.0
        %818 = vmatpush1.msra.mxu0 0.0
        %819 = vmatprep.subr.mxu0 0.0
        %820 = vmatpush1.msra.mxu0 0.0
        %821 = vmatprep.subr.mxu0 0.0
        %822 = vmatpush1.msra.mxu0 0.0
        %823 = vmatprep.subr.mxu0 0.0
        %824 = vmatpush1.msra.mxu0 0.0
        %825 = vmatprep.subr.mxu0 0.0
        %826 = vmatpush1.msra.mxu0 0.0
        %827 = vmatprep.subr.mxu0 0.0
        %828 = vmatpush1.msra.mxu0 0.0
        %829 = vmatprep.subr.mxu0 0.0
        %830 = vmatpush1.msra.mxu0 0.0
        %831 = vmatprep.subr.mxu0 0.0
        %832 = vmatpush1.msra.mxu0 0.0
        %833 = vmatprep.subr.mxu0 0.0
        %834 = vmatpush1.msra.mxu0 %v538
        %835 = vmatprep.subr.mxu0 0.0
        %836 = vmatpush2.msra.mxu0 0.0
        %837 = vmatprep.subr.mxu0 0.0
        %838 = vmatpush2.msra.mxu0 0.0
        %839 = vmatprep.subr.mxu0 0.0
        %840 = vmatpush2.msra.mxu0 0.0
        %841 = vmatprep.subr.mxu0 0.0
        %842 = vmatpush2.msra.mxu0 0.0
        %843 = vmatprep.subr.mxu0 0.0
        %844 = vmatpush2.msra.mxu0 0.0
        %845 = vmatprep.subr.mxu0 0.0
        %846 = vmatpush2.msra.mxu0 0.0
        %847 = vmatprep.subr.mxu0 0.0
        %848 = vmatpush2.msra.mxu0 0.0
        %849 = vmatprep.subr.mxu0 0.0
        %850 = vmatpush2.msra.mxu0 0.0
        %851 = vmatprep.subr.mxu0 0.0
        %852 = vmatpush2.msra.mxu0 0.0
        %853 = vmatprep.subr.mxu0 0.0
        %854 = vmatpush2.msra.mxu0 0.0
        %855 = vmatprep.subr.mxu0 0.0
        %856 = vmatpush2.msra.mxu0 0.0
        %857 = vmatprep.subr.mxu0 0.0
        %858 = vmatpush2.msra.mxu0 0.0
        %859 = vmatprep.subr.mxu0 0.0
        %860 = vmatpush2.msra.mxu0 0.0
        %861 = vmatprep.subr.mxu0 0.0
        %862 = vmatpush2.msra.mxu0 0.0
        %863 = vmatprep.subr.mxu0 0.0
        %864 = vmatpush2.msra.mxu0 0.0
        %865 = vmatprep.subr.mxu0 0.0
        %866 = vmatpush2.msra.mxu0 0.0
        %867 = vmatprep.mubr.f32.mxu0 0.0
        %868 = vmatmul.mubr.f32.gmra.mxu0 %v801
        %v869 = vpop.f32.mrf.mxu0
        %v870 = vadd.f32 0.0, %v869
        %v871 = vpop.f32.mrf.mxu0
        %872 = vdwg.mxu0
        %v873 = vmax.f32 %v870, 0.0
        %s874 = sld [smem:[#allocation3 + $0x100]]
        %v875 = vstv %s874
        %v876 = vmul.f32 %v875, %v540
        %s877 = sld [smem:[#allocation3 + $0x101]]
        %v878 = vstv %s877
        %v879 = vmul.f32 %v878, %v545
        %v880 = vadd.f32 %v876, %v879
        %s881 = sld [smem:[#allocation3 + $0x102]]
        %v882 = vstv %s881
        %v883 = vmul.f32 %v882, %v551
        %v884 = vadd.f32 %v880, %v883
        %s885 = sld [smem:[#allocation3 + $0x103]]
        %v886 = vstv %s885
        %v887 = vmul.f32 %v886, %v557
        %v888 = vadd.f32 %v884, %v887
        %s889 = sld [smem:[#allocation6 + $0x2]]
        %v890 = vstv %s889
        %v891 = vadd.f32 %v888, %v890
        %892 = vmatprep.subr.mxu0 0.0
        %893 = vmatpush1.msra.mxu0 0.0
        %894 = vmatprep.subr.mxu0 0.0
        %895 = vmatpush1.msra.mxu0 0.0
        %896 = vmatprep.subr.mxu0 0.0
        %897 = vmatpush1.msra.mxu0 0.0
        %898 = vmatprep.subr.mxu0 0.0
        %899 = vmatpush1.msra.mxu0 0.0
        %900 = vmatprep.subr.mxu0 0.0
        %901 = vmatpush1.msra.mxu0 0.0
        %902 = vmatprep.subr.mxu0 0.0
        %903 = vmatpush1.msra.mxu0 0.0
        %904 = vmatprep.subr.mxu0 0.0
        %905 = vmatpush1.msra.mxu0 0.0
        %906 = vmatprep.subr.mxu0 0.0
        %907 = vmatpush1.msra.mxu0 0.0
        %908 = vmatprep.subr.mxu0 0.0
        %909 = vmatpush1.msra.mxu0 0.0
        %910 = vmatprep.subr.mxu0 0.0
        %911 = vmatpush1.msra.mxu0 0.0
        %912 = vmatprep.subr.mxu0 0.0
        %913 = vmatpush1.msra.mxu0 0.0
        %914 = vmatprep.subr.mxu0 0.0
        %915 = vmatpush1.msra.mxu0 0.0
        %916 = vmatprep.subr.mxu0 0.0
        %917 = vmatpush1.msra.mxu0 0.0
        %918 = vmatprep.subr.mxu0 0.0
        %919 = vmatpush1.msra.mxu0 0.0
        %920 = vmatprep.subr.mxu0 0.0
        %921 = vmatpush1.msra.mxu0 0.0
        %922 = vmatprep.subr.mxu0 0.0
        %923 = vmatpush1.msra.mxu0 %v891
        %924 = vmatprep.subr.mxu0 0.0
        %925 = vmatpush2.msra.mxu0 0.0
        %926 = vmatprep.subr.mxu0 0.0
        %927 = vmatpush2.msra.mxu0 0.0
        %928 = vmatprep.subr.mxu0 0.0
        %929 = vmatpush2.msra.mxu0 0.0
        %930 = vmatprep.subr.mxu0 0.0
        %931 = vmatpush2.msra.mxu0 0.0
        %932 = vmatprep.subr.mxu0 0.0
        %933 = vmatpush2.msra.mxu0 0.0
        %934 = vmatprep.subr.mxu0 0.0
        %935 = vmatpush2.msra.mxu0 0.0
        %936 = vmatprep.subr.mxu0 0.0
        %937 = vmatpush2.msra.mxu0 0.0
        %938 = vmatprep.subr.mxu0 0.0
        %939 = vmatpush2.msra.mxu0 0.0
        %940 = vmatprep.subr.mxu0 0.0
        %941 = vmatpush2.msra.mxu0 0.0
        %942 = vmatprep.subr.mxu0 0.0
        %943 = vmatpush2.msra.mxu0 0.0
        %944 = vmatprep.subr.mxu0 0.0
        %945 = vmatpush2.msra.mxu0 0.0
        %946 = vmatprep.subr.mxu0 0.0
        %947 = vmatpush2.msra.mxu0 0.0
        %948 = vmatprep.subr.mxu0 0.0
        %949 = vmatpush2.msra.mxu0 0.0
        %950 = vmatprep.subr.mxu0 0.0
        %951 = vmatpush2.msra.mxu0 0.0
        %952 = vmatprep.subr.mxu0 0.0
        %953 = vmatpush2.msra.mxu0 0.0
        %954 = vmatprep.subr.mxu0 0.0
        %955 = vmatpush2.msra.mxu0 0.0
        %956 = vmatprep.mubr.f32.mxu0 0.0
        %957 = vmatmul.mubr.f32.gmra.mxu0 %v566
        %v958 = vpop.f32.mrf.mxu0
        %v959 = vadd.f32 0.0, %v958
        %v960 = vpop.f32.mrf.mxu0
        %961 = vdwg.mxu0
        %v963 = vsel %vm564, %v959, 0
        %965 = vmatprep.subr.mxu0 0.0
        %966 = vmatpush1.msra.mxu0 0.0
        %967 = vmatprep.subr.mxu0 0.0
        %968 = vmatpush1.msra.mxu0 0.0
        %969 = vmatprep.subr.mxu0 0.0
        %970 = vmatpush1.msra.mxu0 0.0
        %971 = vmatprep.subr.mxu0 0.0
        %972 = vmatpush1.msra.mxu0 0.0
        %973 = vmatprep.subr.mxu0 0.0
        %974 = vmatpush1.msra.mxu0 0.0
        %975 = vmatprep.subr.mxu0 0.0
        %976 = vmatpush1.msra.mxu0 0.0
        %977 = vmatprep.subr.mxu0 0.0
        %978 = vmatpush1.msra.mxu0 0.0
        %979 = vmatprep.subr.mxu0 0.0
        %980 = vmatpush1.msra.mxu0 0.0
        %981 = vmatprep.subr.mxu0 0.0
        %982 = vmatpush1.msra.mxu0 0.0
        %983 = vmatprep.subr.mxu0 0.0
        %984 = vmatpush1.msra.mxu0 0.0
        %985 = vmatprep.subr.mxu0 0.0
        %986 = vmatpush1.msra.mxu0 0.0
        %987 = vmatprep.subr.mxu0 0.0
        %988 = vmatpush1.msra.mxu0 0.0
        %989 = vmatprep.subr.mxu0 0.0
        %990 = vmatpush1.msra.mxu0 0.0
        %991 = vmatprep.subr.mxu0 0.0
        %992 = vmatpush1.msra.mxu0 0.0
        %993 = vmatprep.subr.mxu0 0.0
        %994 = vmatpush1.msra.mxu0 0.0
        %995 = vmatprep.subr.mxu0 0.0
        %996 = vmatpush1.msra.mxu0 %v538
        %997 = vmatprep.subr.mxu0 0.0
        %998 = vmatpush2.msra.mxu0 0.0
        %999 = vmatprep.subr.mxu0 0.0
        %1000 = vmatpush2.msra.mxu0 0.0
        %1001 = vmatprep.subr.mxu0 0.0
        %1002 = vmatpush2.msra.mxu0 0.0
        %1003 = vmatprep.subr.mxu0 0.0
        %1004 = vmatpush2.msra.mxu0 0.0
        %1005 = vmatprep.subr.mxu0 0.0
        %1006 = vmatpush2.msra.mxu0 0.0
        %1007 = vmatprep.subr.mxu0 0.0
        %1008 = vmatpush2.msra.mxu0 0.0
        %1009 = vmatprep.subr.mxu0 0.0
        %1010 = vmatpush2.msra.mxu0 0.0
        %1011 = vmatprep.subr.mxu0 0.0
        %1012 = vmatpush2.msra.mxu0 0.0
        %1013 = vmatprep.subr.mxu0 0.0
        %1014 = vmatpush2.msra.mxu0 0.0
        %1015 = vmatprep.subr.mxu0 0.0
        %1016 = vmatpush2.msra.mxu0 0.0
        %1017 = vmatprep.subr.mxu0 0.0
        %1018 = vmatpush2.msra.mxu0 0.0
        %1019 = vmatprep.subr.mxu0 0.0
        %1020 = vmatpush2.msra.mxu0 0.0
        %1021 = vmatprep.subr.mxu0 0.0
        %1022 = vmatpush2.msra.mxu0 0.0
        %1023 = vmatprep.subr.mxu0 0.0
        %1024 = vmatpush2.msra.mxu0 0.0
        %1025 = vmatprep.subr.mxu0 0.0
        %1026 = vmatpush2.msra.mxu0 0.0
        %1027 = vmatprep.subr.mxu0 0.0
        %1028 = vmatpush2.msra.mxu0 0.0
        %1029 = vmatprep.mubr.f32.mxu0 0.0
        %1030 = vmatmul.mubr.f32.gmra.mxu0 %v963
        %v1031 = vpop.f32.mrf.mxu0
        %v1032 = vadd.f32 0.0, %v1031
        %v1033 = vpop.f32.mrf.mxu0
        %1034 = vdwg.mxu0
        %v1035 = vmax.f32 %v1032, 0.0
        %s1036 = sld [smem:[#allocation3 + $0x180]]
        %v1037 = vstv %s1036
        %v1038 = vmul.f32 %v1037, %v540
        %s1039 = sld [smem:[#allocation3 + $0x181]]
        %v1040 = vstv %s1039
        %v1041 = vmul.f32 %v1040, %v545
        %v1042 = vadd.f32 %v1038, %v1041
        %s1043 = sld [smem:[#allocation3 + $0x182]]
        %v1044 = vstv %s1043
        %v1045 = vmul.f32 %v1044, %v551
        %v1046 = vadd.f32 %v1042, %v1045
        %s1047 = sld [smem:[#allocation3 + $0x183]]
        %v1048 = vstv %s1047
        %v1049 = vmul.f32 %v1048, %v557
        %v1050 = vadd.f32 %v1046, %v1049
        %s1051 = sld [smem:[#allocation6 + $0x3]]
        %v1052 = vstv %s1051
        %v1053 = vadd.f32 %v1050, %v1052
        %1054 = vmatprep.subr.mxu0 0.0
        %1055 = vmatpush1.msra.mxu0 0.0
        %1056 = vmatprep.subr.mxu0 0.0
        %1057 = vmatpush1.msra.mxu0 0.0
        %1058 = vmatprep.subr.mxu0 0.0
        %1059 = vmatpush1.msra.mxu0 0.0
        %1060 = vmatprep.subr.mxu0 0.0
        %1061 = vmatpush1.msra.mxu0 0.0
        %1062 = vmatprep.subr.mxu0 0.0
        %1063 = vmatpush1.msra.mxu0 0.0
        %1064 = vmatprep.subr.mxu0 0.0
        %1065 = vmatpush1.msra.mxu0 0.0
        %1066 = vmatprep.subr.mxu0 0.0
        %1067 = vmatpush1.msra.mxu0 0.0
        %1068 = vmatprep.subr.mxu0 0.0
        %1069 = vmatpush1.msra.mxu0 0.0
        %1070 = vmatprep.subr.mxu0 0.0
        %1071 = vmatpush1.msra.mxu0 0.0
        %1072 = vmatprep.subr.mxu0 0.0
        %1073 = vmatpush1.msra.mxu0 0.0
        %1074 = vmatprep.subr.mxu0 0.0
        %1075 = vmatpush1.msra.mxu0 0.0
        %1076 = vmatprep.subr.mxu0 0.0
        %1077 = vmatpush1.msra.mxu0 0.0
        %1078 = vmatprep.subr.mxu0 0.0
        %1079 = vmatpush1.msra.mxu0 0.0
        %1080 = vmatprep.subr.mxu0 0.0
        %1081 = vmatpush1.msra.mxu0 0.0
        %1082 = vmatprep.subr.mxu0 0.0
        %1083 = vmatpush1.msra.mxu0 0.0
        %1084 = vmatprep.subr.mxu0 0.0
        %1085 = vmatpush1.msra.mxu0 %v1053
        %1086 = vmatprep.subr.mxu0 0.0
        %1087 = vmatpush2.msra.mxu0 0.0
        %1088 = vmatprep.subr.mxu0 0.0
        %1089 = vmatpush2.msra.mxu0 0.0
        %1090 = vmatprep.subr.mxu0 0.0
        %1091 = vmatpush2.msra.mxu0 0.0
        %1092 = vmatprep.subr.mxu0 0.0
        %1093 = vmatpush2.msra.mxu0 0.0
        %1094 = vmatprep.subr.mxu0 0.0
        %1095 = vmatpush2.msra.mxu0 0.0
        %1096 = vmatprep.subr.mxu0 0.0
        %1097 = vmatpush2.msra.mxu0 0.0
        %1098 = vmatprep.subr.mxu0 0.0
        %1099 = vmatpush2.msra.mxu0 0.0
        %1100 = vmatprep.subr.mxu0 0.0
        %1101 = vmatpush2.msra.mxu0 0.0
        %1102 = vmatprep.subr.mxu0 0.0
        %1103 = vmatpush2.msra.mxu0 0.0
        %1104 = vmatprep.subr.mxu0 0.0
        %1105 = vmatpush2.msra.mxu0 0.0
        %1106 = vmatprep.subr.mxu0 0.0
        %1107 = vmatpush2.msra.mxu0 0.0
        %1108 = vmatprep.subr.mxu0 0.0
        %1109 = vmatpush2.msra.mxu0 0.0
        %1110 = vmatprep.subr.mxu0 0.0
        %1111 = vmatpush2.msra.mxu0 0.0
        %1112 = vmatprep.subr.mxu0 0.0
        %1113 = vmatpush2.msra.mxu0 0.0
        %1114 = vmatprep.subr.mxu0 0.0
        %1115 = vmatpush2.msra.mxu0 0.0
        %1116 = vmatprep.subr.mxu0 0.0
        %1117 = vmatpush2.msra.mxu0 0.0
        %1118 = vmatprep.mubr.f32.mxu0 0.0
        %1119 = vmatmul.mubr.f32.gmra.mxu0 %v566
        %v1120 = vpop.f32.mrf.mxu0
        %v1121 = vadd.f32 0.0, %v1120
        %v1122 = vpop.f32.mrf.mxu0
        %1123 = vdwg.mxu0
        %v1125 = vsel %vm564, %v1121, 0
        %1127 = vmatprep.subr.mxu0 0.0
        %1128 = vmatpush1.msra.mxu0 0.0
        %1129 = vmatprep.subr.mxu0 0.0
        %1130 = vmatpush1.msra.mxu0 0.0
        %1131 = vmatprep.subr.mxu0 0.0
        %1132 = vmatpush1.msra.mxu0 0.0
        %1133 = vmatprep.subr.mxu0 0.0
        %1134 = vmatpush1.msra.mxu0 0.0
        %1135 = vmatprep.subr.mxu0 0.0
        %1136 = vmatpush1.msra.mxu0 0.0
        %1137 = vmatprep.subr.mxu0 0.0
        %1138 = vmatpush1.msra.mxu0 0.0
        %1139 = vmatprep.subr.mxu0 0.0
        %1140 = vmatpush1.msra.mxu0 0.0
        %1141 = vmatprep.subr.mxu0 0.0
        %1142 = vmatpush1.msra.mxu0 0.0
        %1143 = vmatprep.subr.mxu0 0.0
        %1144 = vmatpush1.msra.mxu0 0.0
        %1145 = vmatprep.subr.mxu0 0.0
        %1146 = vmatpush1.msra.mxu0 0.0
        %1147 = vmatprep.subr.mxu0 0.0
        %1148 = vmatpush1.msra.mxu0 0.0
        %1149 = vmatprep.subr.mxu0 0.0
        %1150 = vmatpush1.msra.mxu0 0.0
        %1151 = vmatprep.subr.mxu0 0.0
        %1152 = vmatpush1.msra.mxu0 0.0
        %1153 = vmatprep.subr.mxu0 0.0
        %1154 = vmatpush1.msra.mxu0 0.0
        %1155 = vmatprep.subr.mxu0 0.0
        %1156 = vmatpush1.msra.mxu0 0.0
        %1157 = vmatprep.subr.mxu0 0.0
        %1158 = vmatpush1.msra.mxu0 %v538
        %1159 = vmatprep.subr.mxu0 0.0
        %1160 = vmatpush2.msra.mxu0 0.0
        %1161 = vmatprep.subr.mxu0 0.0
        %1162 = vmatpush2.msra.mxu0 0.0
        %1163 = vmatprep.subr.mxu0 0.0
        %1164 = vmatpush2.msra.mxu0 0.0
        %1165 = vmatprep.subr.mxu0 0.0
        %1166 = vmatpush2.msra.mxu0 0.0
        %1167 = vmatprep.subr.mxu0 0.0
        %1168 = vmatpush2.msra.mxu0 0.0
        %1169 = vmatprep.subr.mxu0 0.0
        %1170 = vmatpush2.msra.mxu0 0.0
        %1171 = vmatprep.subr.mxu0 0.0
        %1172 = vmatpush2.msra.mxu0 0.0
        %1173 = vmatprep.subr.mxu0 0.0
        %1174 = vmatpush2.msra.mxu0 0.0
        %1175 = vmatprep.subr.mxu0 0.0
        %1176 = vmatpush2.msra.mxu0 0.0
        %1177 = vmatprep.subr.mxu0 0.0
        %1178 = vmatpush2.msra.mxu0 0.0
        %1179 = vmatprep.subr.mxu0 0.0
        %1180 = vmatpush2.msra.mxu0 0.0
        %1181 = vmatprep.subr.mxu0 0.0
        %1182 = vmatpush2.msra.mxu0 0.0
        %1183 = vmatprep.subr.mxu0 0.0
        %1184 = vmatpush2.msra.mxu0 0.0
        %1185 = vmatprep.subr.mxu0 0.0
        %1186 = vmatpush2.msra.mxu0 0.0
        %1187 = vmatprep.subr.mxu0 0.0
        %1188 = vmatpush2.msra.mxu0 0.0
        %1189 = vmatprep.subr.mxu0 0.0
        %1190 = vmatpush2.msra.mxu0 0.0
        %1191 = vmatprep.mubr.f32.mxu0 0.0
        %1192 = vmatmul.mubr.f32.gmra.mxu0 %v1125
        %v1193 = vpop.f32.mrf.mxu0
        %v1194 = vadd.f32 0.0, %v1193
        %v1195 = vpop.f32.mrf.mxu0
        %1196 = vdwg.mxu0
        %v1197 = vmax.f32 %v1194, 0.0
        %s1198 = sld [smem:[#allocation8]]
        %v1199 = vld [vmem:[%s459] sm:$0xff]
        %v1200 = vstv %s1198
        %v1201 = vmul.f32 %v1200, %v1199
        %s1202 = sld [smem:[#allocation8 + $0x1]]
        %s1203 = scalar_lea.vmem %s459, 8 [#allocation2]
        %v1204 = vld [vmem:[%s1203] sm:$0xff]
        %v1205 = vstv %s1202
        %v1206 = vmul.f32 %v1205, %v1204
        %v1207 = vadd.f32 %v1201, %v1206
        %s1208 = sld [smem:[#allocation8 + $0x2]]
        %s1209 = scalar_lea.vmem %s459, 16 [#allocation2]
        %v1210 = vld [vmem:[%s1209] sm:$0xff]
        %v1211 = vstv %s1208
        %v1212 = vmul.f32 %v1211, %v1210
        %v1213 = vadd.f32 %v1207, %v1212
        %s1214 = sld [smem:[#allocation8 + $0x3]]
        %s1215 = scalar_lea.vmem %s459, 24 [#allocation2]
        %v1216 = vld [vmem:[%s1215] sm:$0xff]
        %v1217 = vstv %s1214
        %v1218 = vmul.f32 %v1217, %v1216
        %v1219 = vadd.f32 %v1213, %v1218
        %s1220 = sld [smem:[#allocation9]]
        %v1221 = vstv %s1220
        %v1222 = vadd.f32 %v1219, %v1221
        %v1223 = vmax.f32 %v1222, 0.0
        %s1224 = sld [smem:[#allocation8 + $0x80]]
        %v1225 = vstv %s1224
        %v1226 = vmul.f32 %v1225, %v1199
        %s1227 = sld [smem:[#allocation8 + $0x81]]
        %v1228 = vstv %s1227
        %v1229 = vmul.f32 %v1228, %v1204
        %v1230 = vadd.f32 %v1226, %v1229
        %s1231 = sld [smem:[#allocation8 + $0x82]]
        %v1232 = vstv %s1231
        %v1233 = vmul.f32 %v1232, %v1210
        %v1234 = vadd.f32 %v1230, %v1233
        %s1235 = sld [smem:[#allocation8 + $0x83]]
        %v1236 = vstv %s1235
        %v1237 = vmul.f32 %v1236, %v1216
        %v1238 = vadd.f32 %v1234, %v1237
        %s1239 = sld [smem:[#allocation9 + $0x1]]
        %v1240 = vstv %s1239
        %v1241 = vadd.f32 %v1238, %v1240
        %v1242 = vmax.f32 %v1241, 0.0
        %s1243 = sld [smem:[#allocation8 + $0x100]]
        %v1244 = vstv %s1243
        %v1245 = vmul.f32 %v1244, %v1199
        %s1246 = sld [smem:[#allocation8 + $0x101]]
        %v1247 = vstv %s1246
        %v1248 = vmul.f32 %v1247, %v1204
        %v1249 = vadd.f32 %v1245, %v1248
        %s1250 = sld [smem:[#allocation8 + $0x102]]
        %v1251 = vstv %s1250
        %v1252 = vmul.f32 %v1251, %v1210
        %v1253 = vadd.f32 %v1249, %v1252
        %s1254 = sld [smem:[#allocation8 + $0x103]]
        %v1255 = vstv %s1254
        %v1256 = vmul.f32 %v1255, %v1216
        %v1257 = vadd.f32 %v1253, %v1256
        %s1258 = sld [smem:[#allocation9 + $0x2]]
        %v1259 = vstv %s1258
        %v1260 = vadd.f32 %v1257, %v1259
        %v1261 = vmax.f32 %v1260, 0.0
        %s1262 = sld [smem:[#allocation8 + $0x180]]
        %v1263 = vstv %s1262
        %v1264 = vmul.f32 %v1263, %v1199
        %s1265 = sld [smem:[#allocation8 + $0x181]]
        %v1266 = vstv %s1265
        %v1267 = vmul.f32 %v1266, %v1204
        %v1268 = vadd.f32 %v1264, %v1267
        %s1269 = sld [smem:[#allocation8 + $0x182]]
        %v1270 = vstv %s1269
        %v1271 = vmul.f32 %v1270, %v1210
        %v1272 = vadd.f32 %v1268, %v1271
        %s1273 = sld [smem:[#allocation8 + $0x183]]
        %v1274 = vstv %s1273
        %v1275 = vmul.f32 %v1274, %v1216
        %v1276 = vadd.f32 %v1272, %v1275
        %s1277 = sld [smem:[#allocation9 + $0x3]]
        %v1278 = vstv %s1277
        %v1279 = vadd.f32 %v1276, %v1278
        %v1280 = vmax.f32 %v1279, 0.0
        %s1281 = sld [smem:[#allocation11]]
        %v1282 = vstv %s1281
        %v1283 = vmul.f32 %v711, %v1282
        %s1284 = sld [smem:[#allocation12]]
        %v1285 = vstv %s1284
        %v1286 = vadd.f32 %v1283, %v1285
        %vm1287 = vcmask 130048
        %1288 = vst.msk [vmem:[%s527] sm:$0xff] %vm1287, %v1286
        %s1289 = sld [smem:[#allocation11 + $0x1]]
        %v1290 = vstv %s1289
        %v1291 = vmul.f32 %v873, %v1290
        %s1292 = sld [smem:[#allocation12 + $0x1]]
        %v1293 = vstv %s1292
        %v1294 = vadd.f32 %v1291, %v1293
        %s1295 = scalar_lea.vmem %s527, 8 [#allocation14]
        %1296 = vst.msk [vmem:[%s1295] sm:$0xff] %vm1287, %v1294
        %s1297 = sld [smem:[#allocation11 + $0x2]]
        %v1298 = vstv %s1297
        %v1299 = vmul.f32 %v1035, %v1298
        %s1300 = sld [smem:[#allocation12 + $0x2]]
        %v1301 = vstv %s1300
        %v1302 = vadd.f32 %v1299, %v1301
        %s1303 = scalar_lea.vmem %s527, 16 [#allocation14]
        %1304 = vst.msk [vmem:[%s1303] sm:$0xff] %vm1287, %v1302
        %s1305 = sld [smem:[#allocation11 + $0x3]]
        %v1306 = vstv %s1305
        %v1307 = vmul.f32 %v1197, %v1306
        %s1308 = sld [smem:[#allocation12 + $0x3]]
        %v1309 = vstv %s1308
        %v1310 = vadd.f32 %v1307, %v1309
        %s1311 = scalar_lea.vmem %s527, 24 [#allocation14]
        %1312 = vst.msk [vmem:[%s1311] sm:$0xff] %vm1287, %v1310
        %s1313 = sld [smem:[#allocation11 + $0x4]]
        %v1314 = vstv %s1313
        %v1315 = vmul.f32 %v1223, %v1314
        %s1316 = sld [smem:[#allocation12 + $0x4]]
        %v1317 = vstv %s1316
        %v1318 = vadd.f32 %v1315, %v1317
        %s1319 = scalar_lea.vmem %s527, 32 [#allocation14]
        %1320 = vst.msk [vmem:[%s1319] sm:$0xff] %vm1287, %v1318
        %s1321 = sld [smem:[#allocation11 + $0x5]]
        %v1322 = vstv %s1321
        %v1323 = vmul.f32 %v1242, %v1322
        %s1324 = sld [smem:[#allocation12 + $0x5]]
        %v1325 = vstv %s1324
        %v1326 = vadd.f32 %v1323, %v1325
        %s1327 = scalar_lea.vmem %s527, 40 [#allocation14]
        %1328 = vst.msk [vmem:[%s1327] sm:$0xff] %vm1287, %v1326
        %s1329 = sld [smem:[#allocation11 + $0x6]]
        %v1330 = vstv %s1329
        %v1331 = vmul.f32 %v1261, %v1330
        %s1332 = sld [smem:[#allocation12 + $0x6]]
        %v1333 = vstv %s1332
        %v1334 = vadd.f32 %v1331, %v1333
        %s1335 = scalar_lea.vmem %s527, 48 [#allocation14]
        %1336 = vst.msk [vmem:[%s1335] sm:$0xff] %vm1287, %v1334
        %s1337 = sld [smem:[#allocation11 + $0x7]]
        %v1338 = vstv %s1337
        %v1339 = vmul.f32 %v1280, %v1338
        %s1340 = sld [smem:[#allocation12 + $0x7]]
        %v1341 = vstv %s1340
        %v1342 = vadd.f32 %v1339, %v1341
        %s1343 = scalar_lea.vmem %s527, 56 [#allocation14]
        %1344 = vst.msk [vmem:[%s1343] sm:$0xff] %vm1287, %v1342
        %s1345 = sand.u32 %s277, 1
        %s1346 = scalar_lea.sflag [#allocation4], %s1345
        %s1347 = sand.u32 %s277, 1
        %s1348 = smul.addr %s1347, 64
        %s1349 = scalar_lea.vmem [#allocation14], %s1348
        // Predicated region
        $region123: #{unet_block0_forward.3} parent=93 // pred_check
          %p1350 = pneg %p287
        $region124: #{unet_block0_forward.3} parent=93 // pred_check_branch
          %1352 = sbr.rel (%p1350) target = $region126
        $region125: #{unet_block0_forward.3} parent=93 // pred_region
          %s1354 = ssub.s32 1024, 1024
          %1355 = vsyncadd %s1346, %s1354
          %s1356 = smul.addr %s32, 16
          %s1357 = sadd.s32 %s33, %s1356
          %s1358 = smul.addr %s1357, 128
          %s1359 = scalar_lea.hbm %s10, %s1358
          %s1360 = sshll.u32 %s1349, 4
          %s1361 = int_to_ptr.vmem [resolvable:$true] %s1360
          %1366 = dma.vmem_to_hbm [thread:$0]  %s1361, 1024, %s1359, %s1346, 128, 256, 8
        $region126: #{unet_block0_forward.3} parent=93 // pred_fallthru
          _
      $region94: #{unet_block0_forward.3} parent=5 // pred_fallthru
        _
      %p1367 = scmp.le.s32.totalorder 2, %s23
      // Predicated region
      $region127: #{unet_block0_forward.3} parent=5 // pred_check
        %p1368 = pneg %p1367
      $region128: #{unet_block0_forward.3} parent=5 // pred_check_branch
        %1370 = sbr.rel (%p1368) target = $region130
      $region129: #{unet_block0_forward.3} parent=5 // pred_region
        %s1371 = ssub.s32 %s23, 2
        // Predicated region
        $region131: #{unet_block0_forward.3} parent=129 // pred_check
          %p1372 = pneg %p293
        $region132: #{unet_block0_forward.3} parent=129 // pred_check_branch
          %1374 = sbr.rel (%p1372) target = $region134
        $region133: #{unet_block0_forward.3} parent=129 // pred_region
          %s1375 = sand.u32 %s278, 1
          %s1376 = scalar_lea.sflag [#allocation4], %s1375
          %s1377 = sand.u32 %s278, 1
          %s1378 = smul.addr %s1377, 64
          %s1379 = scalar_lea.vmem [#allocation14], %s1378
          %1380 = dma.done %s1376, 1024
        $region134: #{unet_block0_forward.3} parent=129 // pred_fallthru
          _
      $region130: #{unet_block0_forward.3} parent=5 // pred_fallthru
        _
    $region6: #{unet_block0_forward.3} parent=1 // loop_footer
      %s27 = sadd.s32 1, %s23
    $region7: #{unet_block0_forward.3} parent=1 // loop_footer_branch
      %22 = sbr.rel target = $region3
    $region8: #{unet_block0_forward.3} parent=1 // loop_exit
      _
    %1381 = vsyncpa [#allocation4], 1
    %s1382 = scalar_lea.sflag [#allocation4], 1
    %1383 = vsyncpa %s1382, 1
    %1384 = vsyncpa [#allocation5], 1
    %s1385 = scalar_lea.sflag [#allocation5], 1
    %1386 = vsyncpa %s1385, 1
    %1387 = vsyncpa [#allocation7], 1
    %1388 = vsyncpa [#allocation10], 1
    %1389 = vsyncpa [#allocation13], 1

// kernel: unet_block0_forward.2
$region0: #{unet_block0_forward.2}
  #allocation0 [shape = 'u32[]', space=smem, size = 0x4, offset = 0x4, fixed_abs, tag = 'smem constant byte address 0x4 - core index']
  #allocation1 [shape = 'u32[144,128]{1,0:T(1,128)}', space=vmem, size = 0x12000, scoped, tag = 'internal scratch']
  %s0 = inlined_call_operand.vmem [shape: f32[2,4,8,8], index: 0, kind: input, shape index: {}]
  %s1 = inlined_call_operand.vmem [shape: f32[2,4,16,16], index: 1, kind: input, shape index: {}]
  %s2 = inlined_call_operand.vmem [shape: f32[16,8], index: 2, kind: input, shape index: {}]
  %s3 = inlined_call_operand.vmem [shape: f32[8,16], index: 3, kind: input, shape index: {}]
  %s4 = inlined_call_operand.vmem [shape: f32[4,4], index: 4, kind: input, shape index: {}]
  %s5 = inlined_call_operand.vmem [shape: f32[4], index: 5, kind: input, shape index: {}]
  %s6 = inlined_call_operand.vmem [shape: f32[4,4], index: 6, kind: input, shape index: {}]
  %s7 = inlined_call_operand.vmem [shape: f32[4], index: 7, kind: input, shape index: {}]
  %s8 = inlined_call_operand.vmem [shape: f32[2,2,1,8], index: 8, kind: output, shape index: {0}]
  %s9 = inlined_call_operand.vmem [shape: f32[2,2,1,8], index: 9, kind: output, shape index: {1}]
  %10 = xla_tuple %s8, %s9
  %s11 = sld [smem:[#allocation0]]
  $region127: #{unet_block0_forward.2} parent=0
    _
  %s13 = ssub.s32 1, %s11
  %s14 = scalar_select 0, %s13, %s11
  $region1: #{unet_block0_forward.2} parent=0
    #allocation2 [shape = 'u8[32768]{0}', space=vmem, size = 0x8000, scoped, tag = 'input window, operand 1']
    #allocation3 [shape = 'u8[2048]{0}', space=smem, size = 0x800, scoped, tag = 'input window, operand 4, single buffered']
    #allocation4 [shape = 's32[2]{0}', space=sflag, size = 0x8, scoped, tag = 'scoped memory for unet_block0_forward.2']
    #allocation5 [shape = 'u8[512]{0}', space=smem, size = 0x200, scoped, tag = 'input window, operand 5, single buffered']
    #allocation6 [shape = 's32[1]{0}', space=sflag, size = 0x4, scoped, tag = 'scoped memory for unet_block0_forward.2']
    #allocation7 [shape = 'u8[2048]{0}', space=smem, size = 0x800, scoped, tag = 'input window, operand 6, single buffered']
    #allocation8 [shape = 'u8[512]{0}', space=smem, size = 0x200, scoped, tag = 'input window, operand 7, single buffered']
    #allocation9 [shape = 's32[1]{0}', space=sflag, size = 0x4, scoped, tag = 'scoped memory for unet_block0_forward.2']
    %15 = vsyncpa [#allocation4], 0
    %16 = vsyncpa [#allocation6], 0
    %17 = vsyncpa [#allocation9], 0
    loop: start=0, step=1, limit=6
    $region2: #{unet_block0_forward.2} parent=1 // loop_pre_header
      _
    $region3: #{unet_block0_forward.2} parent=1 // loop_header
      %s19 = sphi 0, %s23
      %p20 = scmp.ge.s32.totalorder %s19, 6
      %s26 = sphi 0, %s38
      %s27 = sphi 0, %s34
      %s28 = sphi 0, %s26
      %s29 = sphi 0, %s27
      %s30 = sphi 0, %s28
      %s31 = sphi 0, %s29
      %s41 = sphi 0, %s43
      %s44 = sphi 0, %s41
      %s45 = sphi 0, %s44
      %s61 = sphi 0, %s45
      %s69 = sphi 0, %s71
      %s72 = sphi 0, %s69
      %s73 = sphi 0, %s72
      %s89 = sphi 0, %s73
      %s95 = sphi 0, %s97
      %s98 = sphi 0, %s95
      %s99 = sphi 0, %s98
      %s115 = sphi 0, %s99
      %s119 = sphi 0, %s119
      %s121 = sphi 0, %s119
      %s122 = sphi 0, %s121
      %s136 = sphi 0, %s122
      %s140 = sphi 0, %s140
      %s142 = sphi 0, %s140
      %s143 = sphi 0, %s142
      %s157 = sphi 0, %s143
      %s161 = sphi 0, %s161
      %s163 = sphi 0, %s161
      %s164 = sphi 0, %s163
      %s178 = sphi 0, %s164
      %s182 = sphi 0, %s182
      %s184 = sphi 0, %s182
      %s185 = sphi 0, %s184
      %s199 = sphi 0, %s185
      %s203 = sphi 0, %s203
      %s205 = sphi 0, %s203
      %s206 = sphi 0, %s205
      %s220 = sphi 0, %s206
      %s228 = sphi 0, %s230
      %s231 = sphi 0, %s228
      %s232 = sphi 0, %s231
      %s248 = sphi 0, %s232
      %s256 = sphi 0, %s258
      %s259 = sphi 0, %s256
      %s260 = sphi 0, %s259
      %s276 = sphi 0, %s260
    $region4: #{unet_block0_forward.2} parent=1 // loop_header_branch
      %22 = sbr.rel (%p20) target = $region8
    $region5: #{unet_block0_forward.2} parent=1 // loop_body
      %s24 = ssub.s32 %s19, 1
      %s25 = ssub.s32 %s19, 2
      %s32 = sadd.s32 1, %s27
      %p33 = scmp.ge.s32.totalorder %s32, 2
      %s34 = scalar_select %p33, 0, %s32
      %s35 = sadd.s32 1, %s26
      %s36 = scalar_select %p33, %s35, %s26
      %p37 = scmp.ge.s32.totalorder %s36, 2
      %s38 = scalar_select %p37, 0, %s36
      %s39 = ssub.s32 %s26, %s38
      %p40 = scmp.eq.s32.totalorder %s39, 0
      %s42 = sadd.s32 %s41, 1
      %s43 = scalar_select %p40, %s41, %s42
      %p46 = pneg %p40
      %p47 = scmp.eq.s32.totalorder %s19, 3
      %p48 = por %p46, %p47
      %p49 = scmp.ne.s32.totalorder %s41, %s44
      %p50 = scmp.eq.s32.totalorder %s19, 0
      %p51 = por %p49, %p50
      %p52 = scmp.ne.s32.totalorder %s41, %s44
      %p53 = scmp.eq.s32.totalorder %s24, 3
      %p54 = por %p52, %p53
      %p55 = scmp.ne.s32.totalorder %s44, %s45
      %p56 = scmp.eq.s32.totalorder %s24, 0
      %p57 = por %p55, %p56
      %p58 = scmp.ne.s32.totalorder %s44, %s45
      %p59 = scmp.eq.s32.totalorder %s25, 3
      %p60 = por %p58, %p59
      %p62 = scmp.ne.s32.totalorder %s45, %s61
      %p63 = scmp.eq.s32.totalorder %s25, 0
      %p64 = por %p62, %p63
      %s65 = ssub.s32 %s26, %s38
      %s66 = ssub.s32 %s27, %s34
      %s67 = sor.u32 %s65, %s66
      %p68 = scmp.eq.s32.totalorder %s67, 0
      %s70 = sadd.s32 %s69, 1
      %s71 = scalar_select %p68, %s69, %s70
      %p74 = pneg %p68
      %p75 = scmp.eq.s32.totalorder %s19, 3
      %p76 = por %p74, %p75
      %p77 = scmp.ne.s32.totalorder %s69, %s72
      %p78 = scmp.eq.s32.totalorder %s19, 0
      %p79 = por %p77, %p78
      %p80 = scmp.ne.s32.totalorder %s69, %s72
      %p81 = scmp.eq.s32.totalorder %s24, 3
      %p82 = por %p80, %p81
      %p83 = scmp.ne.s32.totalorder %s72, %s73
      %p84 = scmp.eq.s32.totalorder %s24, 0
      %p85 = por %p83, %p84
      %p86 = scmp.ne.s32.totalorder %s72, %s73
      %p87 = scmp.eq.s32.totalorder %s25, 3
      %p88 = por %p86, %p87
      %p90 = scmp.ne.s32.totalorder %s73, %s89
      %p91 = scmp.eq.s32.totalorder %s25, 0
      %p92 = por %p90, %p91
      %s93 = ssub.s32 %s27, %s34
      %p94 = scmp.eq.s32.totalorder %s93, 0
      %s96 = sadd.s32 %s95, 1
      %s97 = scalar_select %p94, %s95, %s96
      %p100 = pneg %p94
      %p101 = scmp.eq.s32.totalorder %s19, 3
      %p102 = por %p100, %p101
      %p103 = scmp.ne.s32.totalorder %s95, %s98
      %p104 = scmp.eq.s32.totalorder %s19, 0
      %p105 = por %p103, %p104
      %p106 = scmp.ne.s32.totalorder %s95, %s98
      %p107 = scmp.eq.s32.totalorder %s24, 3
      %p108 = por %p106, %p107
      %p109 = scmp.ne.s32.totalorder %s98, %s99
      %p110 = scmp.eq.s32.totalorder %s24, 0
      %p111 = por %p109, %p110
      %p112 = scmp.ne.s32.totalorder %s98, %s99
      %p113 = scmp.eq.s32.totalorder %s25, 3
      %p114 = por %p112, %p113
      %p116 = scmp.ne.s32.totalorder %s99, %s115
      %p117 = scmp.eq.s32.totalorder %s25, 0
      %p118 = por %p116, %p117
      %s120 = sadd.s32 %s119, 1
      %p123 = scmp.eq.s32.totalorder %s19, 3
      %p124 = scmp.ne.s32.totalorder %s119, %s121
      %p125 = scmp.eq.s32.totalorder %s19, 0
      %p126 = por %p124, %p125
      %p127 = scmp.ne.s32.totalorder %s119, %s121
      %p128 = scmp.eq.s32.totalorder %s24, 3
      %p129 = por %p127, %p128
      %p130 = scmp.ne.s32.totalorder %s121, %s122
      %p131 = scmp.eq.s32.totalorder %s24, 0
      %p132 = por %p130, %p131
      %p133 = scmp.ne.s32.totalorder %s121, %s122
      %p134 = scmp.eq.s32.totalorder %s25, 3
      %p135 = por %p133, %p134
      %p137 = scmp.ne.s32.totalorder %s122, %s136
      %p138 = scmp.eq.s32.totalorder %s25, 0
      %p139 = por %p137, %p138
      %s141 = sadd.s32 %s140, 1
      %p144 = scmp.eq.s32.totalorder %s19, 3
      %p145 = scmp.ne.s32.totalorder %s140, %s142
      %p146 = scmp.eq.s32.totalorder %s19, 0
      %p147 = por %p145, %p146
      %p148 = scmp.ne.s32.totalorder %s140, %s142
      %p149 = scmp.eq.s32.totalorder %s24, 3
      %p150 = por %p148, %p149
      %p151 = scmp.ne.s32.totalorder %s142, %s143
      %p152 = scmp.eq.s32.totalorder %s24, 0
      %p153 = por %p151, %p152
      %p154 = scmp.ne.s32.totalorder %s142, %s143
      %p155 = scmp.eq.s32.totalorder %s25, 3
      %p156 = por %p154, %p155
      %p158 = scmp.ne.s32.totalorder %s143, %s157
      %p159 = scmp.eq.s32.totalorder %s25, 0
      %p160 = por %p158, %p159
      %s162 = sadd.s32 %s161, 1
      %p165 = scmp.eq.s32.totalorder %s19, 3
      %p166 = scmp.ne.s32.totalorder %s161, %s163
      %p167 = scmp.eq.s32.totalorder %s19, 0
      %p168 = por %p166, %p167
      %p169 = scmp.ne.s32.totalorder %s161, %s163
      %p170 = scmp.eq.s32.totalorder %s24, 3
      %p171 = por %p169, %p170
      %p172 = scmp.ne.s32.totalorder %s163, %s164
      %p173 = scmp.eq.s32.totalorder %s24, 0
      %p174 = por %p172, %p173
      %p175 = scmp.ne.s32.totalorder %s163, %s164
      %p176 = scmp.eq.s32.totalorder %s25, 3
      %p177 = por %p175, %p176
      %p179 = scmp.ne.s32.totalorder %s164, %s178
      %p180 = scmp.eq.s32.totalorder %s25, 0
      %p181 = por %p179, %p180
      %s183 = sadd.s32 %s182, 1
      %p186 = scmp.eq.s32.totalorder %s19, 3
      %p187 = scmp.ne.s32.totalorder %s182, %s184
      %p188 = scmp.eq.s32.totalorder %s19, 0
      %p189 = por %p187, %p188
      %p190 = scmp.ne.s32.totalorder %s182, %s184
      %p191 = scmp.eq.s32.totalorder %s24, 3
      %p192 = por %p190, %p191
      %p193 = scmp.ne.s32.totalorder %s184, %s185
      %p194 = scmp.eq.s32.totalorder %s24, 0
      %p195 = por %p193, %p194
      %p196 = scmp.ne.s32.totalorder %s184, %s185
      %p197 = scmp.eq.s32.totalorder %s25, 3
      %p198 = por %p196, %p197
      %p200 = scmp.ne.s32.totalorder %s185, %s199
      %p201 = scmp.eq.s32.totalorder %s25, 0
      %p202 = por %p200, %p201
      %s204 = sadd.s32 %s203, 1
      %p207 = scmp.eq.s32.totalorder %s19, 3
      %p208 = scmp.ne.s32.totalorder %s203, %s205
      %p209 = scmp.eq.s32.totalorder %s19, 0
      %p210 = por %p208, %p209
      %p211 = scmp.ne.s32.totalorder %s203, %s205
      %p212 = scmp.eq.s32.totalorder %s24, 3
      %p213 = por %p211, %p212
      %p214 = scmp.ne.s32.totalorder %s205, %s206
      %p215 = scmp.eq.s32.totalorder %s24, 0
      %p216 = por %p214, %p215
      %p217 = scmp.ne.s32.totalorder %s205, %s206
      %p218 = scmp.eq.s32.totalorder %s25, 3
      %p219 = por %p217, %p218
      %p221 = scmp.ne.s32.totalorder %s206, %s220
      %p222 = scmp.eq.s32.totalorder %s25, 0
      %p223 = por %p221, %p222
      %s224 = ssub.s32 %s26, %s38
      %s225 = ssub.s32 %s27, %s34
      %s226 = sor.u32 %s224, %s225
      %p227 = scmp.eq.s32.totalorder %s226, 0
      %s229 = sadd.s32 %s228, 1
      %s230 = scalar_select %p227, %s228, %s229
      %p233 = pneg %p227
      %p234 = scmp.eq.s32.totalorder %s19, 3
      %p235 = por %p233, %p234
      %p236 = scmp.ne.s32.totalorder %s228, %s231
      %p237 = scmp.eq.s32.totalorder %s19, 0
      %p238 = por %p236, %p237
      %p239 = scmp.ne.s32.totalorder %s228, %s231
      %p240 = scmp.eq.s32.totalorder %s24, 3
      %p241 = por %p239, %p240
      %p242 = scmp.ne.s32.totalorder %s231, %s232
      %p243 = scmp.eq.s32.totalorder %s24, 0
      %p244 = por %p242, %p243
      %p245 = scmp.ne.s32.totalorder %s231, %s232
      %p246 = scmp.eq.s32.totalorder %s25, 3
      %p247 = por %p245, %p246
      %p249 = scmp.ne.s32.totalorder %s232, %s248
      %p250 = scmp.eq.s32.totalorder %s25, 0
      %p251 = por %p249, %p250
      %s252 = ssub.s32 %s26, %s38
      %s253 = ssub.s32 %s27, %s34
      %s254 = sor.u32 %s252, %s253
      %p255 = scmp.eq.s32.totalorder %s254, 0
      %s257 = sadd.s32 %s256, 1
      %s258 = scalar_select %p255, %s256, %s257
      %p261 = pneg %p255
      %p262 = scmp.eq.s32.totalorder %s19, 3
      %p263 = por %p261, %p262
      %p264 = scmp.ne.s32.totalorder %s256, %s259
      %p265 = scmp.eq.s32.totalorder %s19, 0
      %p266 = por %p264, %p265
      %p267 = scmp.ne.s32.totalorder %s256, %s259
      %p268 = scmp.eq.s32.totalorder %s24, 3
      %p269 = por %p267, %p268
      %p270 = scmp.ne.s32.totalorder %s259, %s260
      %p271 = scmp.eq.s32.totalorder %s24, 0
      %p272 = por %p270, %p271
      %p273 = scmp.ne.s32.totalorder %s259, %s260
      %p274 = scmp.eq.s32.totalorder %s25, 3
      %p275 = por %p273, %p274
      %p277 = scmp.ne.s32.totalorder %s260, %s276
      %p278 = scmp.eq.s32.totalorder %s25, 0
      %p279 = por %p277, %p278
      %p280 = scmp.le.s32.totalorder 1, %s19
      %p281 = scmp.lt.s32.totalorder %s19, 5
      %p282 = pnand %p280, %p281
      %p283 = pneg %p282
      // Predicated region
      $region9: #{unet_block0_forward.2} parent=5 // pred_check
        _
      $region10: #{unet_block0_forward.2} parent=5 // pred_check_branch
        %285 = sbr.rel (%p282) target = $region12
      $region11: #{unet_block0_forward.2} parent=5 // pred_region
        %s286 = ssub.s32 %s19, 1
        // Predicated region
        $region13: #{unet_block0_forward.2} parent=11 // pred_check
          %p287 = pneg %p132
        $region14: #{unet_block0_forward.2} parent=11 // pred_check_branch
          %289 = sbr.rel (%p287) target = $region16
        $region15: #{unet_block0_forward.2} parent=11 // pred_region
          _
        $region16: #{unet_block0_forward.2} parent=11 // pred_fallthru
          _
        // Predicated region
        $region17: #{unet_block0_forward.2} parent=11 // pred_check
          %p290 = pneg %p153
        $region18: #{unet_block0_forward.2} parent=11 // pred_check_branch
          %292 = sbr.rel (%p290) target = $region20
        $region19: #{unet_block0_forward.2} parent=11 // pred_region
          %s294 = ssub.s32 64, 64
          %295 = vsyncadd [#allocation4], %s294
          %s297 = sshll.u32 %s4, 4
          %s298 = int_to_ptr.vmem [resolvable:$true] %s297
          %300 = dma.vmem_to_smem %s298, 64, [#allocation3], [#allocation4]
        $region20: #{unet_block0_forward.2} parent=11 // pred_fallthru
          _
        // Predicated region
        $region21: #{unet_block0_forward.2} parent=11 // pred_check
          %p301 = pneg %p174
        $region22: #{unet_block0_forward.2} parent=11 // pred_check_branch
          %303 = sbr.rel (%p301) target = $region24
        $region23: #{unet_block0_forward.2} parent=11 // pred_region
          %s305 = ssub.s32 16, 16
          %306 = vsyncadd [#allocation6], %s305
          %s308 = sshll.u32 %s5, 4
          %s309 = int_to_ptr.vmem [resolvable:$true] %s308
          %311 = dma.vmem_to_smem %s309, 16, [#allocation5], [#allocation6]
        $region24: #{unet_block0_forward.2} parent=11 // pred_fallthru
          _
        // Predicated region
        $region25: #{unet_block0_forward.2} parent=11 // pred_check
          %p312 = pneg %p195
        $region26: #{unet_block0_forward.2} parent=11 // pred_check_branch
          %314 = sbr.rel (%p312) target = $region28
        $region27: #{unet_block0_forward.2} parent=11 // pred_region
          %s316 = ssub.s32 64, 64
          %317 = vsyncadd [#allocation6], %s316
          %s319 = sshll.u32 %s6, 4
          %s320 = int_to_ptr.vmem [resolvable:$true] %s319
          %322 = dma.vmem_to_smem %s320, 64, [#allocation7], [#allocation6]
        $region28: #{unet_block0_forward.2} parent=11 // pred_fallthru
          _
        // Predicated region
        $region29: #{unet_block0_forward.2} parent=11 // pred_check
          %p323 = pneg %p216
        $region30: #{unet_block0_forward.2} parent=11 // pred_check_branch
          %325 = sbr.rel (%p323) target = $region32
        $region31: #{unet_block0_forward.2} parent=11 // pred_region
          %s327 = ssub.s32 16, 16
          %328 = vsyncadd [#allocation9], %s327
          %s330 = sshll.u32 %s7, 4
          %s331 = int_to_ptr.vmem [resolvable:$true] %s330
          %333 = dma.vmem_to_smem %s331, 16, [#allocation8], [#allocation9]
        $region32: #{unet_block0_forward.2} parent=11 // pred_fallthru
          _
      $region12: #{unet_block0_forward.2} parent=5 // pred_fallthru
        _
      %p334 = scmp.lt.s32.totalorder %s19, 4
      // Predicated region
      $region33: #{unet_block0_forward.2} parent=5 // pred_check
        %p335 = pneg %p334
      $region34: #{unet_block0_forward.2} parent=5 // pred_check_branch
        %337 = sbr.rel (%p335) target = $region36
      $region35: #{unet_block0_forward.2} parent=5 // pred_region
        // Predicated region
        $region37: #{unet_block0_forward.2} parent=35 // pred_check
          %p338 = pneg %p51
        $region38: #{unet_block0_forward.2} parent=35 // pred_check_branch
          %340 = sbr.rel (%p338) target = $region40
        $region39: #{unet_block0_forward.2} parent=35 // pred_region
          %p341 = scmp.lt.s32.totalorder %s26, 1
          %s342 = scalar_select %p341, %s26, 1
          %s343 = smul.addr %s342, 4
          %s344 = smul.addr %s343, 8
          %s345 = scalar_lea.vmem %s0, %s344
        $region40: #{unet_block0_forward.2} parent=35 // pred_fallthru
          _
        // Predicated region
        $region41: #{unet_block0_forward.2} parent=35 // pred_check
          %p346 = pneg %p79
        $region42: #{unet_block0_forward.2} parent=35 // pred_check_branch
          %348 = sbr.rel (%p346) target = $region44
        $region43: #{unet_block0_forward.2} parent=35 // pred_region
          %s349 = sand.u32 %s69, 1
          %s350 = sand.u32 %s69, 1
          %s351 = smul.addr %s350, 32
          %s352 = scalar_lea.vmem [#allocation2], %s351
          %s353 = smul.addr %s26, 8
          %s354 = sadd.s32 %s27, %s353
          %s355 = smul.addr %s354, 8
          %s356 = scalar_lea.vmem %s1, %s355
          // Predicated region
          $region45: #{unet_block0_forward.2} parent=43 // pred_check
            _
          $region46: #{unet_block0_forward.2} parent=43 // pred_check_branch
            %358 = sbr.rel (0) target = $region48
          $region47: #{unet_block0_forward.2} parent=43 // pred_region
            // Predicated region
            $region49: #{unet_block0_forward.2} parent=47 // pred_check
              _
            $region50: #{unet_block0_forward.2} parent=47 // pred_check_branch
              %360 = sbr.rel (0) target = $region52
            $region51: #{unet_block0_forward.2} parent=47 // pred_region
              // Predicated region
              $region64: #{unet_block0_forward.2} parent=51 // pred_check
                _
              $region65: #{unet_block0_forward.2} parent=51 // pred_check_branch
                %382 = sbr.rel (0) target = $region67
              $region66: #{unet_block0_forward.2} parent=51 // pred_region
                loop: start=0, step=1, limit=1
                $region68: #{unet_block0_forward.2} parent=66 // loop_pre_header
                  _
                $region69: #{unet_block0_forward.2} parent=66 // loop_header
                  %s384 = sphi 0, %s388
                  %p385 = scmp.ge.s32.totalorder %s384, 1
                  %s389 = sphi %s356, %s356
                  %s390 = sphi %s352, %s352
                $region70: #{unet_block0_forward.2} parent=66 // loop_header_branch
                  %387 = sbr.rel (%p385) target = $region74
                $region71: #{unet_block0_forward.2} parent=66 // loop_body
                  %v391 = vld [vmem:[%s389] sm:$0xff]
                  %392 = vst [vmem:[%s390] sm:$0xff] %v391
                  %v393 = vld [vmem:[%s389 + $0x10] sm:$0xff]
                  %394 = vst [vmem:[%s390 + $0x8] sm:$0xff] %v393
                  %v395 = vld [vmem:[%s389 + $0x20] sm:$0xff]
                  %396 = vst [vmem:[%s390 + $0x10] sm:$0xff] %v395
                  %v397 = vld [vmem:[%s389 + $0x30] sm:$0xff]
                  %398 = vst [vmem:[%s390 + $0x18] sm:$0xff] %v397
                $region72: #{unet_block0_forward.2} parent=66 // loop_footer
                  %s388 = sadd.s32 1, %s384
                $region73: #{unet_block0_forward.2} parent=66 // loop_footer_branch
                  %383 = sbr.rel target = $region69
                $region74: #{unet_block0_forward.2} parent=66 // loop_exit
                  _
              $region67: #{unet_block0_forward.2} parent=51 // pred_fallthru
                _
              // Predicated region
              $region75: #{unet_block0_forward.2} parent=51 // pred_check
                _
              $region76: #{unet_block0_forward.2} parent=51 // pred_check_branch
                %400 = sbr.rel target = $region78
              $region77: #{unet_block0_forward.2} parent=51 // pred_region
                _
              $region78: #{unet_block0_forward.2} parent=51 // pred_fallthru
                _
            $region52: #{unet_block0_forward.2} parent=47 // pred_fallthru
              _
            // Predicated region
            $region53: #{unet_block0_forward.2} parent=47 // pred_check
              _
            $region54: #{unet_block0_forward.2} parent=47 // pred_check_branch
              %362 = sbr.rel target = $region56
            $region55: #{unet_block0_forward.2} parent=47 // pred_region
              %s364 = ssub.s32 256, 1
              loop: start=0, step=1, limit=1
              $region57: #{unet_block0_forward.2} parent=55 // loop_pre_header
                _
              $region58: #{unet_block0_forward.2} parent=55 // loop_header
                %s366 = sphi 0, %s370
                %p367 = scmp.ge.s32.totalorder %s366, 1
                %s371 = sphi %s356, %s356
                %s372 = sphi %s352, %s352
              $region59: #{unet_block0_forward.2} parent=55 // loop_header_branch
                %369 = sbr.rel (%p367) target = $region63
              $region60: #{unet_block0_forward.2} parent=55 // loop_body
                %v373 = vld [vmem:[%s371] sm:%s364]
                %374 = vst [vmem:[%s372] sm:%s364] %v373
                %v375 = vld [vmem:[%s371 + $0x10] sm:%s364]
                %376 = vst [vmem:[%s372 + $0x8] sm:%s364] %v375
                %v377 = vld [vmem:[%s371 + $0x20] sm:%s364]
                %378 = vst [vmem:[%s372 + $0x10] sm:%s364] %v377
                %v379 = vld [vmem:[%s371 + $0x30] sm:%s364]
                %380 = vst [vmem:[%s372 + $0x18] sm:%s364] %v379
              $region61: #{unet_block0_forward.2} parent=55 // loop_footer
                %s370 = sadd.s32 1, %s366
              $region62: #{unet_block0_forward.2} parent=55 // loop_footer_branch
                %365 = sbr.rel target = $region58
              $region63: #{unet_block0_forward.2} parent=55 // loop_exit
                _
            $region56: #{unet_block0_forward.2} parent=47 // pred_fallthru
              _
          $region48: #{unet_block0_forward.2} parent=43 // pred_fallthru
            _
          %401 = vnop
        $region44: #{unet_block0_forward.2} parent=35 // pred_fallthru
          _
        // Predicated region
        $region79: #{unet_block0_forward.2} parent=35 // pred_check
          %p402 = pneg %p105
        $region80: #{unet_block0_forward.2} parent=35 // pred_check_branch
          %404 = sbr.rel (%p402) target = $region82
        $region81: #{unet_block0_forward.2} parent=35 // pred_region
          %p405 = scmp.lt.s32.totalorder %s27, 1
          %s406 = scalar_select %p405, %s27, 1
          %s407 = smul.addr %s406, 8
          %s408 = scalar_lea.vmem %s2, %s407
        $region82: #{unet_block0_forward.2} parent=35 // pred_fallthru
          _
      $region36: #{unet_block0_forward.2} parent=5 // pred_fallthru
        _
      %p409 = scmp.le.s32.totalorder 1, %s19
      %p410 = scmp.lt.s32.totalorder %s19, 5
      %p411 = pnand %p409, %p410
      %p412 = pneg %p411
      // Predicated region
      $region83: #{unet_block0_forward.2} parent=5 // pred_check
        _
      $region84: #{unet_block0_forward.2} parent=5 // pred_check_branch
        %414 = sbr.rel (%p411) target = $region86
      $region85: #{unet_block0_forward.2} parent=5 // pred_region
        %s415 = ssub.s32 %s19, 1
        %s416 = sand.u32 %s72, 1
        %s417 = sand.u32 %s72, 1
        %s418 = smul.addr %s417, 32
        %s419 = scalar_lea.vmem [#allocation2], %s418
        // Predicated region
        $region87: #{unet_block0_forward.2} parent=85 // pred_check
          %p420 = pneg %p85
        $region88: #{unet_block0_forward.2} parent=85 // pred_check_branch
          %422 = sbr.rel (%p420) target = $region90
        $region89: #{unet_block0_forward.2} parent=85 // pred_region
          _
        $region90: #{unet_block0_forward.2} parent=85 // pred_fallthru
          _
        // Predicated region
        $region91: #{unet_block0_forward.2} parent=85 // pred_check
          %p423 = pneg %p153
        $region92: #{unet_block0_forward.2} parent=85 // pred_check_branch
          %425 = sbr.rel (%p423) target = $region94
        $region93: #{unet_block0_forward.2} parent=85 // pred_region
          %426 = dma.done [#allocation4], 64
        $region94: #{unet_block0_forward.2} parent=85 // pred_fallthru
          _
        // Predicated region
        $region95: #{unet_block0_forward.2} parent=85 // pred_check
          %p427 = pneg %p174
        $region96: #{unet_block0_forward.2} parent=85 // pred_check_branch
          %429 = sbr.rel (%p427) target = $region98
        $region97: #{unet_block0_forward.2} parent=85 // pred_region
          %430 = dma.done [#allocation6], 16
        $region98: #{unet_block0_forward.2} parent=85 // pred_fallthru
          _
        // Predicated region
        $region99: #{unet_block0_forward.2} parent=85 // pred_check
          %p431 = pneg %p195
        $region100: #{unet_block0_forward.2} parent=85 // pred_check_branch
          %433 = sbr.rel (%p431) target = $region102
        $region101: #{unet_block0_forward.2} parent=85 // pred_region
          %434 = dma.done [#allocation6], 64
        $region102: #{unet_block0_forward.2} parent=85 // pred_fallthru
          _
        // Predicated region
        $region103: #{unet_block0_forward.2} parent=85 // pred_check
          %p435 = pneg %p216
        $region104: #{unet_block0_forward.2} parent=85 // pred_check_branch
          %437 = sbr.rel (%p435) target = $region106
        $region105: #{unet_block0_forward.2} parent=85 // pred_region
          %438 = dma.done [#allocation9], 16
        $region106: #{unet_block0_forward.2} parent=85 // pred_fallthru
          _
        %439 = sfence
        %p440 = scmp.lt.s32.totalorder %s28, 1
        %s441 = scalar_select %p440, %s28, 1
        %s442 = smul.addr %s441, 4
        %s443 = smul.addr %s442, 8
        %s444 = scalar_lea.vmem %s0, %s443
        %p445 = pneg %p57
        %p446 = pneg %p54
        %s447 = sand.u32 %s72, 1
        %s448 = sand.u32 %s72, 1
        %s449 = smul.addr %s448, 32
        %s450 = scalar_lea.vmem [#allocation2], %s449
        %p451 = pneg %p85
        %p452 = pneg %p82
        %p453 = scmp.lt.s32.totalorder %s29, 1
        %s454 = scalar_select %p453, %s29, 1
        %s455 = smul.addr %s454, 8
        %s456 = scalar_lea.vmem %s2, %s455
        %p457 = pneg %p111
        %p458 = pneg %p108
        %p459 = pneg %p132
        %p460 = pneg %p129
        %p461 = pneg %p153
        %p462 = pneg %p150
        %p463 = pneg %p174
        %p464 = pneg %p171
        %p465 = pneg %p195
        %p466 = pneg %p192
        %p467 = pneg %p216
        %p468 = pneg %p213
        %p469 = pneg %p244
        %p470 = pneg %p241
        %p471 = scmp.lt.s32.totalorder %s28, 1
        %s472 = scalar_select %p471, %s28, 1
        %p473 = scmp.lt.s32.totalorder %s29, 1
        %s474 = scalar_select %p473, %s29, 1
        %s475 = smul.addr %s472, 2
        %s476 = sadd.s32 %s474, %s475
        %s477 = scalar_lea.vmem %s8, %s476
        %p478 = pneg %p272
        %p479 = pneg %p269
        %p480 = scmp.lt.s32.totalorder %s28, 1
        %s481 = scalar_select %p480, %s28, 1
        %p482 = scmp.lt.s32.totalorder %s29, 1
        %s483 = scalar_select %p482, %s29, 1
        %s484 = smul.addr %s481, 2
        %s485 = sadd.s32 %s483, %s484
        %s486 = scalar_lea.vmem %s9, %s485
        %p487 = scmp.lt.s32.totalorder %s28, 1
        %s488 = scalar_select %p487, %s28, 1
        %s489 = smul.addr %s488, 4
        %s490 = smul.addr %s489, 8
        %s491 = scalar_lea.vmem %s0, %s490
        %p492 = scmp.lt.s32.totalorder %s29, 1
        %s493 = scalar_select %p492, %s29, 1
        %s494 = smul.addr %s493, 8
        %s495 = scalar_lea.vmem %s2, %s494
        %p496 = scmp.lt.s32.totalorder %s28, 1
        %s497 = scalar_select %p496, %s28, 1
        %p498 = scmp.lt.s32.totalorder %s29, 1
        %s499 = scalar_select %p498, %s29, 1
        %s500 = smul.addr %s497, 2
        %s501 = sadd.s32 %s499, %s500
        %s502 = scalar_lea.vmem %s8, %s501
        %p503 = scmp.lt.s32.totalorder %s28, 1
        %s504 = scalar_select %p503, %s28, 1
        %p505 = scmp.lt.s32.totalorder %s29, 1
        %s506 = scalar_select %p505, %s29, 1
        %s507 = smul.addr %s504, 2
        %s508 = sadd.s32 %s506, %s507
        %s509 = scalar_lea.vmem %s9, %s508
        %v510 = vld [vmem:[%s495] sm:$0xff]
        %v511 = vld [vmem:[%s3] sm:$0xff]
        %s512 = sld [smem:[#allocation3]]
        %v513 = vld [vmem:[%s491] sm:$0xff]
        %v514 = vstv %s512
        %v515 = vmul.f32 %v514, %v513
        %s516 = sld [smem:[#allocation3 + $0x1]]
        %s517 = scalar_lea.vmem %s491, 8
        %v518 = vld [vmem:[%s517] sm:$0xff]
        %v519 = vstv %s516
        %v520 = vmul.f32 %v519, %v518
        %v521 = vadd.f32 %v515, %v520
        %s522 = sld [smem:[#allocation3 + $0x2]]
        %s523 = scalar_lea.vmem %s491, 16
        %v524 = vld [vmem:[%s523] sm:$0xff]
        %v525 = vstv %s522
        %v526 = vmul.f32 %v525, %v524
        %v527 = vadd.f32 %v521, %v526
        %s528 = sld [smem:[#allocation3 + $0x3]]
        %s529 = scalar_lea.vmem %s491, 24
        %v530 = vld [vmem:[%s529] sm:$0xff]
        %v531 = vstv %s528
        %v532 = vmul.f32 %v531, %v530
        %v533 = vadd.f32 %v527, %v532
        %s534 = sld [smem:[#allocation5]]
        %v535 = vstv %s534
        %v536 = vadd.f32 %v533, %v535
        %vm537 = vcmask 64512
        %v539 = vsel %vm537, %v510, 0
        %541 = vmatprep.subr.mxu0 0.0
        %542 = vmatpush1.msra.mxu0 0.0
        %543 = vmatprep.subr.mxu0 0.0
        %544 = vmatpush1.msra.mxu0 0.0
        %545 = vmatprep.subr.mxu0 0.0
        %546 = vmatpush1.msra.mxu0 0.0
        %547 = vmatprep.subr.mxu0 0.0
        %548 = vmatpush1.msra.mxu0 0.0
        %549 = vmatprep.subr.mxu0 0.0
        %550 = vmatpush1.msra.mxu0 0.0
        %551 = vmatprep.subr.mxu0 0.0
        %552 = vmatpush1.msra.mxu0 0.0
        %553 = vmatprep.subr.mxu0 0.0
        %554 = vmatpush1.msra.mxu0 0.0
        %555 = vmatprep.subr.mxu0 0.0
        %556 = vmatpush1.msra.mxu0 0.0
        %557 = vmatprep.subr.mxu0 0.0
        %558 = vmatpush1.msra.mxu0 0.0
        %559 = vmatprep.subr.mxu0 0.0
        %560 = vmatpush1.msra.mxu0 0.0
        %561 = vmatprep.subr.mxu0 0.0
        %562 = vmatpush1.msra.mxu0 0.0
        %563 = vmatprep.subr.mxu0 0.0
        %564 = vmatpush1.msra.mxu0 0.0
        %565 = vmatprep.subr.mxu0 0.0
        %566 = vmatpush1.msra.mxu0 0.0
        %567 = vmatprep.subr.mxu0 0.0
        %568 = vmatpush1.msra.mxu0 0.0
        %569 = vmatprep.subr.mxu0 0.0
        %570 = vmatpush1.msra.mxu0 0.0
        %571 = vmatprep.subr.mxu0 0.0
        %572 = vmatpush1.msra.mxu0 %v536
        %573 = vmatprep.subr.mxu0 0.0
        %574 = vmatpush2.msra.mxu0 0.0
        %575 = vmatprep.subr.mxu0 0.0
        %576 = vmatpush2.msra.mxu0 0.0
        %577 = vmatprep.subr.mxu0 0.0
        %578 = vmatpush2.msra.mxu0 0.0
        %579 = vmatprep.subr.mxu0 0.0
        %580 = vmatpush2.msra.mxu0 0.0
        %581 = vmatprep.subr.mxu0 0.0
        %582 = vmatpush2.msra.mxu0 0.0
        %583 = vmatprep.subr.mxu0 0.0
        %584 = vmatpush2.msra.mxu0 0.0
        %585 = vmatprep.subr.mxu0 0.0
        %586 = vmatpush2.msra.mxu0 0.0
        %587 = vmatprep.subr.mxu0 0.0
        %588 = vmatpush2.msra.mxu0 0.0
        %589 = vmatprep.subr.mxu0 0.0
        %590 = vmatpush2.msra.mxu0 0.0
        %591 = vmatprep.subr.mxu0 0.0
        %592 = vmatpush2.msra.mxu0 0.0
        %593 = vmatprep.subr.mxu0 0.0
        %594 = vmatpush2.msra.mxu0 0.0
        %595 = vmatprep.subr.mxu0 0.0
        %596 = vmatpush2.msra.mxu0 0.0
        %597 = vmatprep.subr.mxu0 0.0
        %598 = vmatpush2.msra.mxu0 0.0
        %599 = vmatprep.subr.mxu0 0.0
        %600 = vmatpush2.msra.mxu0 0.0
        %601 = vmatprep.subr.mxu0 0.0
        %602 = vmatpush2.msra.mxu0 0.0
        %603 = vmatprep.subr.mxu0 0.0
        %604 = vmatpush2.msra.mxu0 0.0
        %605 = vmatprep.mubr.f32.mxu0 0.0
        %606 = vmatmul.mubr.f32.gmra.mxu0 %v539
        %v607 = vpop.f32.mrf.mxu0
        %v608 = vadd.f32 0.0, %v607
        %v609 = vpop.f32.mrf.mxu0
        %610 = vdwg.mxu0
        %v612 = vsel %vm537, %v608, 0
        %614 = vmatprep.subr.mxu0 0.0
        %615 = vmatpush1.msra.mxu0 0.0
        %616 = vmatprep.subr.mxu0 0.0
        %617 = vmatpush1.msra.mxu0 0.0
        %618 = vmatprep.subr.mxu0 0.0
        %619 = vmatpush1.msra.mxu0 0.0
        %620 = vmatprep.subr.mxu0 0.0
        %621 = vmatpush1.msra.mxu0 0.0
        %622 = vmatprep.subr.mxu0 0.0
        %623 = vmatpush1.msra.mxu0 0.0
        %624 = vmatprep.subr.mxu0 0.0
        %625 = vmatpush1.msra.mxu0 0.0
        %626 = vmatprep.subr.mxu0 0.0
        %627 = vmatpush1.msra.mxu0 0.0
        %628 = vmatprep.subr.mxu0 0.0
        %629 = vmatpush1.msra.mxu0 0.0
        %630 = vmatprep.subr.mxu0 0.0
        %631 = vmatpush1.msra.mxu0 0.0
        %632 = vmatprep.subr.mxu0 0.0
        %633 = vmatpush1.msra.mxu0 0.0
        %634 = vmatprep.subr.mxu0 0.0
        %635 = vmatpush1.msra.mxu0 0.0
        %636 = vmatprep.subr.mxu0 0.0
        %637 = vmatpush1.msra.mxu0 0.0
        %638 = vmatprep.subr.mxu0 0.0
        %639 = vmatpush1.msra.mxu0 0.0
        %640 = vmatprep.subr.mxu0 0.0
        %641 = vmatpush1.msra.mxu0 0.0
        %642 = vmatprep.subr.mxu0 0.0
        %643 = vmatpush1.msra.mxu0 0.0
        %644 = vmatprep.subr.mxu0 0.0
        %645 = vmatpush1.msra.mxu0 %v511
        %646 = vmatprep.subr.mxu0 0.0
        %647 = vmatpush2.msra.mxu0 0.0
        %648 = vmatprep.subr.mxu0 0.0
        %649 = vmatpush2.msra.mxu0 0.0
        %650 = vmatprep.subr.mxu0 0.0
        %651 = vmatpush2.msra.mxu0 0.0
        %652 = vmatprep.subr.mxu0 0.0
        %653 = vmatpush2.msra.mxu0 0.0
        %654 = vmatprep.subr.mxu0 0.0
        %655 = vmatpush2.msra.mxu0 0.0
        %656 = vmatprep.subr.mxu0 0.0
        %657 = vmatpush2.msra.mxu0 0.0
        %658 = vmatprep.subr.mxu0 0.0
        %659 = vmatpush2.msra.mxu0 0.0
        %660 = vmatprep.subr.mxu0 0.0
        %661 = vmatpush2.msra.mxu0 0.0
        %662 = vmatprep.subr.mxu0 0.0
        %663 = vmatpush2.msra.mxu0 0.0
        %664 = vmatprep.subr.mxu0 0.0
        %665 = vmatpush2.msra.mxu0 0.0
        %666 = vmatprep.subr.mxu0 0.0
        %667 = vmatpush2.msra.mxu0 0.0
        %668 = vmatprep.subr.mxu0 0.0
        %669 = vmatpush2.msra.mxu0 0.0
        %670 = vmatprep.subr.mxu0 0.0
        %671 = vmatpush2.msra.mxu0 0.0
        %672 = vmatprep.subr.mxu0 0.0
        %673 = vmatpush2.msra.mxu0 0.0
        %674 = vmatprep.subr.mxu0 0.0
        %675 = vmatpush2.msra.mxu0 0.0
        %676 = vmatprep.subr.mxu0 0.0
        %677 = vmatpush2.msra.mxu0 0.0
        %678 = vmatprep.mubr.f32.mxu0 0.0
        %679 = vmatmul.mubr.f32.gmra.mxu0 %v612
        %v680 = vpop.f32.mrf.mxu0
        %v681 = vadd.f32 0.0, %v680
        %v682 = vpop.f32.mrf.mxu0
        %683 = vdwg.mxu0
        %v684 = vmax.f32 %v681, 0.0
        %s685 = sld [smem:[#allocation3 + $0x80]]
        %v686 = vstv %s685
        %v687 = vmul.f32 %v686, %v513
        %s688 = sld [smem:[#allocation3 + $0x81]]
        %v689 = vstv %s688
        %v690 = vmul.f32 %v689, %v518
        %v691 = vadd.f32 %v687, %v690
        %s692 = sld [smem:[#allocation3 + $0x82]]
        %v693 = vstv %s692
        %v694 = vmul.f32 %v693, %v524
        %v695 = vadd.f32 %v691, %v694
        %s696 = sld [smem:[#allocation3 + $0x83]]
        %v697 = vstv %s696
        %v698 = vmul.f32 %v697, %v530
        %v699 = vadd.f32 %v695, %v698
        %s700 = sld [smem:[#allocation5 + $0x1]]
        %v701 = vstv %s700
        %v702 = vadd.f32 %v699, %v701
        %703 = vmatprep.subr.mxu0 0.0
        %704 = vmatpush1.msra.mxu0 0.0
        %705 = vmatprep.subr.mxu0 0.0
        %706 = vmatpush1.msra.mxu0 0.0
        %707 = vmatprep.subr.mxu0 0.0
        %708 = vmatpush1.msra.mxu0 0.0
        %709 = vmatprep.subr.mxu0 0.0
        %710 = vmatpush1.msra.mxu0 0.0
        %711 = vmatprep.subr.mxu0 0.0
        %712 = vmatpush1.msra.mxu0 0.0
        %713 = vmatprep.subr.mxu0 0.0
        %714 = vmatpush1.msra.mxu0 0.0
        %715 = vmatprep.subr.mxu0 0.0
        %716 = vmatpush1.msra.mxu0 0.0
        %717 = vmatprep.subr.mxu0 0.0
        %718 = vmatpush1.msra.mxu0 0.0
        %719 = vmatprep.subr.mxu0 0.0
        %720 = vmatpush1.msra.mxu0 0.0
        %721 = vmatprep.subr.mxu0 0.0
        %722 = vmatpush1.msra.mxu0 0.0
        %723 = vmatprep.subr.mxu0 0.0
        %724 = vmatpush1.msra.mxu0 0.0
        %725 = vmatprep.subr.mxu0 0.0
        %726 = vmatpush1.msra.mxu0 0.0
        %727 = vmatprep.subr.mxu0 0.0
        %728 = vmatpush1.msra.mxu0 0.0
        %729 = vmatprep.subr.mxu0 0.0
        %730 = vmatpush1.msra.mxu0 0.0
        %731 = vmatprep.subr.mxu0 0.0
        %732 = vmatpush1.msra.mxu0 0.0
        %733 = vmatprep.subr.mxu0 0.0
        %734 = vmatpush1.msra.mxu0 %v702
        %735 = vmatprep.subr.mxu0 0.0
        %736 = vmatpush2.msra.mxu0 0.0
        %737 = vmatprep.subr.mxu0 0.0
        %738 = vmatpush2.msra.mxu0 0.0
        %739 = vmatprep.subr.mxu0 0.0
        %740 = vmatpush2.msra.mxu0 0.0
        %741 = vmatprep.subr.mxu0 0.0
        %742 = vmatpush2.msra.mxu0 0.0
        %743 = vmatprep.subr.mxu0 0.0
        %744 = vmatpush2.msra.mxu0 0.0
        %745 = vmatprep.subr.mxu0 0.0
        %746 = vmatpush2.msra.mxu0 0.0
        %747 = vmatprep.subr.mxu0 0.0
        %748 = vmatpush2.msra.mxu0 0.0
        %749 = vmatprep.subr.mxu0 0.0
        %750 = vmatpush2.msra.mxu0 0.0
        %751 = vmatprep.subr.mxu0 0.0
        %752 = vmatpush2.msra.mxu0 0.0
        %753 = vmatprep.subr.mxu0 0.0
        %754 = vmatpush2.msra.mxu0 0.0
        %755 = vmatprep.subr.mxu0 0.0
        %756 = vmatpush2.msra.mxu0 0.0
        %757 = vmatprep.subr.mxu0 0.0
        %758 = vmatpush2.msra.mxu0 0.0
        %759 = vmatprep.subr.mxu0 0.0
        %760 = vmatpush2.msra.mxu0 0.0
        %761 = vmatprep.subr.mxu0 0.0
        %762 = vmatpush2.msra.mxu0 0.0
        %763 = vmatprep.subr.mxu0 0.0
        %764 = vmatpush2.msra.mxu0 0.0
        %765 = vmatprep.subr.mxu0 0.0
        %766 = vmatpush2.msra.mxu0 0.0
        %767 = vmatprep.mubr.f32.mxu0 0.0
        %768 = vmatmul.mubr.f32.gmra.mxu0 %v539
        %v769 = vpop.f32.mrf.mxu0
        %v770 = vadd.f32 0.0, %v769
        %v771 = vpop.f32.mrf.mxu0
        %772 = vdwg.mxu0
        %v774 = vsel %vm537, %v770, 0
        %776 = vmatprep.subr.mxu0 0.0
        %777 = vmatpush1.msra.mxu0 0.0
        %778 = vmatprep.subr.mxu0 0.0
        %779 = vmatpush1.msra.mxu0 0.0
        %780 = vmatprep.subr.mxu0 0.0
        %781 = vmatpush1.msra.mxu0 0.0
        %782 = vmatprep.subr.mxu0 0.0
        %783 = vmatpush1.msra.mxu0 0.0
        %784 = vmatprep.subr.mxu0 0.0
        %785 = vmatpush1.msra.mxu0 0.0
        %786 = vmatprep.subr.mxu0 0.0
        %787 = vmatpush1.msra.mxu0 0.0
        %788 = vmatprep.subr.mxu0 0.0
        %789 = vmatpush1.msra.mxu0 0.0
        %790 = vmatprep.subr.mxu0 0.0
        %791 = vmatpush1.msra.mxu0 0.0
        %792 = vmatprep.subr.mxu0 0.0
        %793 = vmatpush1.msra.mxu0 0.0
        %794 = vmatprep.subr.mxu0 0.0
        %795 = vmatpush1.msra.mxu0 0.0
        %796 = vmatprep.subr.mxu0 0.0
        %797 = vmatpush1.msra.mxu0 0.0
        %798 = vmatprep.subr.mxu0 0.0
        %799 = vmatpush1.msra.mxu0 0.0
        %800 = vmatprep.subr.mxu0 0.0
        %801 = vmatpush1.msra.mxu0 0.0
        %802 = vmatprep.subr.mxu0 0.0
        %803 = vmatpush1.msra.mxu0 0.0
        %804 = vmatprep.subr.mxu0 0.0
        %805 = vmatpush1.msra.mxu0 0.0
        %806 = vmatprep.subr.mxu0 0.0
        %807 = vmatpush1.msra.mxu0 %v511
        %808 = vmatprep.subr.mxu0 0.0
        %809 = vmatpush2.msra.mxu0 0.0
        %810 = vmatprep.subr.mxu0 0.0
        %811 = vmatpush2.msra.mxu0 0.0
        %812 = vmatprep.subr.mxu0 0.0
        %813 = vmatpush2.msra.mxu0 0.0
        %814 = vmatprep.subr.mxu0 0.0
        %815 = vmatpush2.msra.mxu0 0.0
        %816 = vmatprep.subr.mxu0 0.0
        %817 = vmatpush2.msra.mxu0 0.0
        %818 = vmatprep.subr.mxu0 0.0
        %819 = vmatpush2.msra.mxu0 0.0
        %820 = vmatprep.subr.mxu0 0.0
        %821 = vmatpush2.msra.mxu0 0.0
        %822 = vmatprep.subr.mxu0 0.0
        %823 = vmatpush2.msra.mxu0 0.0
        %824 = vmatprep.subr.mxu0 0.0
        %825 = vmatpush2.msra.mxu0 0.0
        %826 = vmatprep.subr.mxu0 0.0
        %827 = vmatpush2.msra.mxu0 0.0
        %828 = vmatprep.subr.mxu0 0.0
        %829 = vmatpush2.msra.mxu0 0.0
        %830 = vmatprep.subr.mxu0 0.0
        %831 = vmatpush2.msra.mxu0 0.0
        %832 = vmatprep.subr.mxu0 0.0
        %833 = vmatpush2.msra.mxu0 0.0
        %834 = vmatprep.subr.mxu0 0.0
        %835 = vmatpush2.msra.mxu0 0.0
        %836 = vmatprep.subr.mxu0 0.0
        %837 = vmatpush2.msra.mxu0 0.0
        %838 = vmatprep.subr.mxu0 0.0
        %839 = vmatpush2.msra.mxu0 0.0
        %840 = vmatprep.mubr.f32.mxu0 0.0
        %841 = vmatmul.mubr.f32.gmra.mxu0 %v774
        %v842 = vpop.f32.mrf.mxu0
        %v843 = vadd.f32 0.0, %v842
        %v844 = vpop.f32.mrf.mxu0
        %845 = vdwg.mxu0
        %v846 = vmax.f32 %v843, 0.0
        %s847 = sld [smem:[#allocation3 + $0x100]]
        %v848 = vstv %s847
        %v849 = vmul.f32 %v848, %v513
        %s850 = sld [smem:[#allocation3 + $0x101]]
        %v851 = vstv %s850
        %v852 = vmul.f32 %v851, %v518
        %v853 = vadd.f32 %v849, %v852
        %s854 = sld [smem:[#allocation3 + $0x102]]
        %v855 = vstv %s854
        %v856 = vmul.f32 %v855, %v524
        %v857 = vadd.f32 %v853, %v856
        %s858 = sld [smem:[#allocation3 + $0x103]]
        %v859 = vstv %s858
        %v860 = vmul.f32 %v859, %v530
        %v861 = vadd.f32 %v857, %v860
        %s862 = sld [smem:[#allocation5 + $0x2]]
        %v863 = vstv %s862
        %v864 = vadd.f32 %v861, %v863
        %865 = vmatprep.subr.mxu0 0.0
        %866 = vmatpush1.msra.mxu0 0.0
        %867 = vmatprep.subr.mxu0 0.0
        %868 = vmatpush1.msra.mxu0 0.0
        %869 = vmatprep.subr.mxu0 0.0
        %870 = vmatpush1.msra.mxu0 0.0
        %871 = vmatprep.subr.mxu0 0.0
        %872 = vmatpush1.msra.mxu0 0.0
        %873 = vmatprep.subr.mxu0 0.0
        %874 = vmatpush1.msra.mxu0 0.0
        %875 = vmatprep.subr.mxu0 0.0
        %876 = vmatpush1.msra.mxu0 0.0
        %877 = vmatprep.subr.mxu0 0.0
        %878 = vmatpush1.msra.mxu0 0.0
        %879 = vmatprep.subr.mxu0 0.0
        %880 = vmatpush1.msra.mxu0 0.0
        %881 = vmatprep.subr.mxu0 0.0
        %882 = vmatpush1.msra.mxu0 0.0
        %883 = vmatprep.subr.mxu0 0.0
        %884 = vmatpush1.msra.mxu0 0.0
        %885 = vmatprep.subr.mxu0 0.0
        %886 = vmatpush1.msra.mxu0 0.0
        %887 = vmatprep.subr.mxu0 0.0
        %888 = vmatpush1.msra.mxu0 0.0
        %889 = vmatprep.subr.mxu0 0.0
        %890 = vmatpush1.msra.mxu0 0.0
        %891 = vmatprep.subr.mxu0 0.0
        %892 = vmatpush1.msra.mxu0 0.0
        %893 = vmatprep.subr.mxu0 0.0
        %894 = vmatpush1.msra.mxu0 0.0
        %895 = vmatprep.subr.mxu0 0.0
        %896 = vmatpush1.msra.mxu0 %v864
        %897 = vmatprep.subr.mxu0 0.0
        %898 = vmatpush2.msra.mxu0 0.0
        %899 = vmatprep.subr.mxu0 0.0
        %900 = vmatpush2.msra.mxu0 0.0
        %901 = vmatprep.subr.mxu0 0.0
        %902 = vmatpush2.msra.mxu0 0.0
        %903 = vmatprep.subr.mxu0 0.0
        %904 = vmatpush2.msra.mxu0 0.0
        %905 = vmatprep.subr.mxu0 0.0
        %906 = vmatpush2.msra.mxu0 0.0
        %907 = vmatprep.subr.mxu0 0.0
        %908 = vmatpush2.msra.mxu0 0.0
        %909 = vmatprep.subr.mxu0 0.0
        %910 = vmatpush2.msra.mxu0 0.0
        %911 = vmatprep.subr.mxu0 0.0
        %912 = vmatpush2.msra.mxu0 0.0
        %913 = vmatprep.subr.mxu0 0.0
        %914 = vmatpush2.msra.mxu0 0.0
        %915 = vmatprep.subr.mxu0 0.0
        %916 = vmatpush2.msra.mxu0 0.0
        %917 = vmatprep.subr.mxu0 0.0
        %918 = vmatpush2.msra.mxu0 0.0
        %919 = vmatprep.subr.mxu0 0.0
        %920 = vmatpush2.msra.mxu0 0.0
        %921 = vmatprep.subr.mxu0 0.0
        %922 = vmatpush2.msra.mxu0 0.0
        %923 = vmatprep.subr.mxu0 0.0
        %924 = vmatpush2.msra.mxu0 0.0
        %925 = vmatprep.subr.mxu0 0.0
        %926 = vmatpush2.msra.mxu0 0.0
        %927 = vmatprep.subr.mxu0 0.0
        %928 = vmatpush2.msra.mxu0 0.0
        %929 = vmatprep.mubr.f32.mxu0 0.0
        %930 = vmatmul.mubr.f32.gmra.mxu0 %v539
        %v931 = vpop.f32.mrf.mxu0
        %v932 = vadd.f32 0.0, %v931
        %v933 = vpop.f32.mrf.mxu0
        %934 = vdwg.mxu0
        %v936 = vsel %vm537, %v932, 0
        %938 = vmatprep.subr.mxu0 0.0
        %939 = vmatpush1.msra.mxu0 0.0
        %940 = vmatprep.subr.mxu0 0.0
        %941 = vmatpush1.msra.mxu0 0.0
        %942 = vmatprep.subr.mxu0 0.0
        %943 = vmatpush1.msra.mxu0 0.0
        %944 = vmatprep.subr.mxu0 0.0
        %945 = vmatpush1.msra.mxu0 0.0
        %946 = vmatprep.subr.mxu0 0.0
        %947 = vmatpush1.msra.mxu0 0.0
        %948 = vmatprep.subr.mxu0 0.0
        %949 = vmatpush1.msra.mxu0 0.0
        %950 = vmatprep.subr.mxu0 0.0
        %951 = vmatpush1.msra.mxu0 0.0
        %952 = vmatprep.subr.mxu0 0.0
        %953 = vmatpush1.msra.mxu0 0.0
        %954 = vmatprep.subr.mxu0 0.0
        %955 = vmatpush1.msra.mxu0 0.0
        %956 = vmatprep.subr.mxu0 0.0
        %957 = vmatpush1.msra.mxu0 0.0
        %958 = vmatprep.subr.mxu0 0.0
        %959 = vmatpush1.msra.mxu0 0.0
        %960 = vmatprep.subr.mxu0 0.0
        %961 = vmatpush1.msra.mxu0 0.0
        %962 = vmatprep.subr.mxu0 0.0
        %963 = vmatpush1.msra.mxu0 0.0
        %964 = vmatprep.subr.mxu0 0.0
        %965 = vmatpush1.msra.mxu0 0.0
        %966 = vmatprep.subr.mxu0 0.0
        %967 = vmatpush1.msra.mxu0 0.0
        %968 = vmatprep.subr.mxu0 0.0
        %969 = vmatpush1.msra.mxu0 %v511
        %970 = vmatprep.subr.mxu0 0.0
        %971 = vmatpush2.msra.mxu0 0.0
        %972 = vmatprep.subr.mxu0 0.0
        %973 = vmatpush2.msra.mxu0 0.0
        %974 = vmatprep.subr.mxu0 0.0
        %975 = vmatpush2.msra.mxu0 0.0
        %976 = vmatprep.subr.mxu0 0.0
        %977 = vmatpush2.msra.mxu0 0.0
        %978 = vmatprep.subr.mxu0 0.0
        %979 = vmatpush2.msra.mxu0 0.0
        %980 = vmatprep.subr.mxu0 0.0
        %981 = vmatpush2.msra.mxu0 0.0
        %982 = vmatprep.subr.mxu0 0.0
        %983 = vmatpush2.msra.mxu0 0.0
        %984 = vmatprep.subr.mxu0 0.0
        %985 = vmatpush2.msra.mxu0 0.0
        %986 = vmatprep.subr.mxu0 0.0
        %987 = vmatpush2.msra.mxu0 0.0
        %988 = vmatprep.subr.mxu0 0.0
        %989 = vmatpush2.msra.mxu0 0.0
        %990 = vmatprep.subr.mxu0 0.0
        %991 = vmatpush2.msra.mxu0 0.0
        %992 = vmatprep.subr.mxu0 0.0
        %993 = vmatpush2.msra.mxu0 0.0
        %994 = vmatprep.subr.mxu0 0.0
        %995 = vmatpush2.msra.mxu0 0.0
        %996 = vmatprep.subr.mxu0 0.0
        %997 = vmatpush2.msra.mxu0 0.0
        %998 = vmatprep.subr.mxu0 0.0
        %999 = vmatpush2.msra.mxu0 0.0
        %1000 = vmatprep.subr.mxu0 0.0
        %1001 = vmatpush2.msra.mxu0 0.0
        %1002 = vmatprep.mubr.f32.mxu0 0.0
        %1003 = vmatmul.mubr.f32.gmra.mxu0 %v936
        %v1004 = vpop.f32.mrf.mxu0
        %v1005 = vadd.f32 0.0, %v1004
        %v1006 = vpop.f32.mrf.mxu0
        %1007 = vdwg.mxu0
        %v1008 = vmax.f32 %v1005, 0.0
        %s1009 = sld [smem:[#allocation3 + $0x180]]
        %v1010 = vstv %s1009
        %v1011 = vmul.f32 %v1010, %v513
        %s1012 = sld [smem:[#allocation3 + $0x181]]
        %v1013 = vstv %s1012
        %v1014 = vmul.f32 %v1013, %v518
        %v1015 = vadd.f32 %v1011, %v1014
        %s1016 = sld [smem:[#allocation3 + $0x182]]
        %v1017 = vstv %s1016
        %v1018 = vmul.f32 %v1017, %v524
        %v1019 = vadd.f32 %v1015, %v1018
        %s1020 = sld [smem:[#allocation3 + $0x183]]
        %v1021 = vstv %s1020
        %v1022 = vmul.f32 %v1021, %v530
        %v1023 = vadd.f32 %v1019, %v1022
        %s1024 = sld [smem:[#allocation5 + $0x3]]
        %v1025 = vstv %s1024
        %v1026 = vadd.f32 %v1023, %v1025
        %1027 = vmatprep.subr.mxu0 0.0
        %1028 = vmatpush1.msra.mxu0 0.0
        %1029 = vmatprep.subr.mxu0 0.0
        %1030 = vmatpush1.msra.mxu0 0.0
        %1031 = vmatprep.subr.mxu0 0.0
        %1032 = vmatpush1.msra.mxu0 0.0
        %1033 = vmatprep.subr.mxu0 0.0
        %1034 = vmatpush1.msra.mxu0 0.0
        %1035 = vmatprep.subr.mxu0 0.0
        %1036 = vmatpush1.msra.mxu0 0.0
        %1037 = vmatprep.subr.mxu0 0.0
        %1038 = vmatpush1.msra.mxu0 0.0
        %1039 = vmatprep.subr.mxu0 0.0
        %1040 = vmatpush1.msra.mxu0 0.0
        %1041 = vmatprep.subr.mxu0 0.0
        %1042 = vmatpush1.msra.mxu0 0.0
        %1043 = vmatprep.subr.mxu0 0.0
        %1044 = vmatpush1.msra.mxu0 0.0
        %1045 = vmatprep.subr.mxu0 0.0
        %1046 = vmatpush1.msra.mxu0 0.0
        %1047 = vmatprep.subr.mxu0 0.0
        %1048 = vmatpush1.msra.mxu0 0.0
        %1049 = vmatprep.subr.mxu0 0.0
        %1050 = vmatpush1.msra.mxu0 0.0
        %1051 = vmatprep.subr.mxu0 0.0
        %1052 = vmatpush1.msra.mxu0 0.0
        %1053 = vmatprep.subr.mxu0 0.0
        %1054 = vmatpush1.msra.mxu0 0.0
        %1055 = vmatprep.subr.mxu0 0.0
        %1056 = vmatpush1.msra.mxu0 0.0
        %1057 = vmatprep.subr.mxu0 0.0
        %1058 = vmatpush1.msra.mxu0 %v1026
        %1059 = vmatprep.subr.mxu0 0.0
        %1060 = vmatpush2.msra.mxu0 0.0
        %1061 = vmatprep.subr.mxu0 0.0
        %1062 = vmatpush2.msra.mxu0 0.0
        %1063 = vmatprep.subr.mxu0 0.0
        %1064 = vmatpush2.msra.mxu0 0.0
        %1065 = vmatprep.subr.mxu0 0.0
        %1066 = vmatpush2.msra.mxu0 0.0
        %1067 = vmatprep.subr.mxu0 0.0
        %1068 = vmatpush2.msra.mxu0 0.0
        %1069 = vmatprep.subr.mxu0 0.0
        %1070 = vmatpush2.msra.mxu0 0.0
        %1071 = vmatprep.subr.mxu0 0.0
        %1072 = vmatpush2.msra.mxu0 0.0
        %1073 = vmatprep.subr.mxu0 0.0
        %1074 = vmatpush2.msra.mxu0 0.0
        %1075 = vmatprep.subr.mxu0 0.0
        %1076 = vmatpush2.msra.mxu0 0.0
        %1077 = vmatprep.subr.mxu0 0.0
        %1078 = vmatpush2.msra.mxu0 0.0
        %1079 = vmatprep.subr.mxu0 0.0
        %1080 = vmatpush2.msra.mxu0 0.0
        %1081 = vmatprep.subr.mxu0 0.0
        %1082 = vmatpush2.msra.mxu0 0.0
        %1083 = vmatprep.subr.mxu0 0.0
        %1084 = vmatpush2.msra.mxu0 0.0
        %1085 = vmatprep.subr.mxu0 0.0
        %1086 = vmatpush2.msra.mxu0 0.0
        %1087 = vmatprep.subr.mxu0 0.0
        %1088 = vmatpush2.msra.mxu0 0.0
        %1089 = vmatprep.subr.mxu0 0.0
        %1090 = vmatpush2.msra.mxu0 0.0
        %1091 = vmatprep.mubr.f32.mxu0 0.0
        %1092 = vmatmul.mubr.f32.gmra.mxu0 %v539
        %v1093 = vpop.f32.mrf.mxu0
        %v1094 = vadd.f32 0.0, %v1093
        %v1095 = vpop.f32.mrf.mxu0
        %1096 = vdwg.mxu0
        %v1098 = vsel %vm537, %v1094, 0
        %1100 = vmatprep.subr.mxu0 0.0
        %1101 = vmatpush1.msra.mxu0 0.0
        %1102 = vmatprep.subr.mxu0 0.0
        %1103 = vmatpush1.msra.mxu0 0.0
        %1104 = vmatprep.subr.mxu0 0.0
        %1105 = vmatpush1.msra.mxu0 0.0
        %1106 = vmatprep.subr.mxu0 0.0
        %1107 = vmatpush1.msra.mxu0 0.0
        %1108 = vmatprep.subr.mxu0 0.0
        %1109 = vmatpush1.msra.mxu0 0.0
        %1110 = vmatprep.subr.mxu0 0.0
        %1111 = vmatpush1.msra.mxu0 0.0
        %1112 = vmatprep.subr.mxu0 0.0
        %1113 = vmatpush1.msra.mxu0 0.0
        %1114 = vmatprep.subr.mxu0 0.0
        %1115 = vmatpush1.msra.mxu0 0.0
        %1116 = vmatprep.subr.mxu0 0.0
        %1117 = vmatpush1.msra.mxu0 0.0
        %1118 = vmatprep.subr.mxu0 0.0
        %1119 = vmatpush1.msra.mxu0 0.0
        %1120 = vmatprep.subr.mxu0 0.0
        %1121 = vmatpush1.msra.mxu0 0.0
        %1122 = vmatprep.subr.mxu0 0.0
        %1123 = vmatpush1.msra.mxu0 0.0
        %1124 = vmatprep.subr.mxu0 0.0
        %1125 = vmatpush1.msra.mxu0 0.0
        %1126 = vmatprep.subr.mxu0 0.0
        %1127 = vmatpush1.msra.mxu0 0.0
        %1128 = vmatprep.subr.mxu0 0.0
        %1129 = vmatpush1.msra.mxu0 0.0
        %1130 = vmatprep.subr.mxu0 0.0
        %1131 = vmatpush1.msra.mxu0 %v511
        %1132 = vmatprep.subr.mxu0 0.0
        %1133 = vmatpush2.msra.mxu0 0.0
        %1134 = vmatprep.subr.mxu0 0.0
        %1135 = vmatpush2.msra.mxu0 0.0
        %1136 = vmatprep.subr.mxu0 0.0
        %1137 = vmatpush2.msra.mxu0 0.0
        %1138 = vmatprep.subr.mxu0 0.0
        %1139 = vmatpush2.msra.mxu0 0.0
        %1140 = vmatprep.subr.mxu0 0.0
        %1141 = vmatpush2.msra.mxu0 0.0
        %1142 = vmatprep.subr.mxu0 0.0
        %1143 = vmatpush2.msra.mxu0 0.0
        %1144 = vmatprep.subr.mxu0 0.0
        %1145 = vmatpush2.msra.mxu0 0.0
        %1146 = vmatprep.subr.mxu0 0.0
        %1147 = vmatpush2.msra.mxu0 0.0
        %1148 = vmatprep.subr.mxu0 0.0
        %1149 = vmatpush2.msra.mxu0 0.0
        %1150 = vmatprep.subr.mxu0 0.0
        %1151 = vmatpush2.msra.mxu0 0.0
        %1152 = vmatprep.subr.mxu0 0.0
        %1153 = vmatpush2.msra.mxu0 0.0
        %1154 = vmatprep.subr.mxu0 0.0
        %1155 = vmatpush2.msra.mxu0 0.0
        %1156 = vmatprep.subr.mxu0 0.0
        %1157 = vmatpush2.msra.mxu0 0.0
        %1158 = vmatprep.subr.mxu0 0.0
        %1159 = vmatpush2.msra.mxu0 0.0
        %1160 = vmatprep.subr.mxu0 0.0
        %1161 = vmatpush2.msra.mxu0 0.0
        %1162 = vmatprep.subr.mxu0 0.0
        %1163 = vmatpush2.msra.mxu0 0.0
        %1164 = vmatprep.mubr.f32.mxu0 0.0
        %1165 = vmatmul.mubr.f32.gmra.mxu0 %v1098
        %v1166 = vpop.f32.mrf.mxu0
        %v1167 = vadd.f32 0.0, %v1166
        %v1168 = vpop.f32.mrf.mxu0
        %1169 = vdwg.mxu0
        %v1170 = vmax.f32 %v1167, 0.0
        %s1171 = sld [smem:[#allocation7]]
        %v1172 = vld [vmem:[%s419] sm:$0xff]
        %v1173 = vstv %s1171
        %v1174 = vmul.f32 %v1173, %v1172
        %s1175 = sld [smem:[#allocation7 + $0x1]]
        %s1176 = scalar_lea.vmem %s419, 8 [#allocation2]
        %v1177 = vld [vmem:[%s1176] sm:$0xff]
        %v1178 = vstv %s1175
        %v1179 = vmul.f32 %v1178, %v1177
        %v1180 = vadd.f32 %v1174, %v1179
        %s1181 = sld [smem:[#allocation7 + $0x2]]
        %s1182 = scalar_lea.vmem %s419, 16 [#allocation2]
        %v1183 = vld [vmem:[%s1182] sm:$0xff]
        %v1184 = vstv %s1181
        %v1185 = vmul.f32 %v1184, %v1183
        %v1186 = vadd.f32 %v1180, %v1185
        %s1187 = sld [smem:[#allocation7 + $0x3]]
        %s1188 = scalar_lea.vmem %s419, 24 [#allocation2]
        %v1189 = vld [vmem:[%s1188] sm:$0xff]
        %v1190 = vstv %s1187
        %v1191 = vmul.f32 %v1190, %v1189
        %v1192 = vadd.f32 %v1186, %v1191
        %s1193 = sld [smem:[#allocation8]]
        %v1194 = vstv %s1193
        %v1195 = vadd.f32 %v1192, %v1194
        %v1196 = vmax.f32 %v1195, 0.0
        %s1197 = sld [smem:[#allocation7 + $0x80]]
        %v1198 = vstv %s1197
        %v1199 = vmul.f32 %v1198, %v1172
        %s1200 = sld [smem:[#allocation7 + $0x81]]
        %v1201 = vstv %s1200
        %v1202 = vmul.f32 %v1201, %v1177
        %v1203 = vadd.f32 %v1199, %v1202
        %s1204 = sld [smem:[#allocation7 + $0x82]]
        %v1205 = vstv %s1204
        %v1206 = vmul.f32 %v1205, %v1183
        %v1207 = vadd.f32 %v1203, %v1206
        %s1208 = sld [smem:[#allocation7 + $0x83]]
        %v1209 = vstv %s1208
        %v1210 = vmul.f32 %v1209, %v1189
        %v1211 = vadd.f32 %v1207, %v1210
        %s1212 = sld [smem:[#allocation8 + $0x1]]
        %v1213 = vstv %s1212
        %v1214 = vadd.f32 %v1211, %v1213
        %v1215 = vmax.f32 %v1214, 0.0
        %s1216 = sld [smem:[#allocation7 + $0x100]]
        %v1217 = vstv %s1216
        %v1218 = vmul.f32 %v1217, %v1172
        %s1219 = sld [smem:[#allocation7 + $0x101]]
        %v1220 = vstv %s1219
        %v1221 = vmul.f32 %v1220, %v1177
        %v1222 = vadd.f32 %v1218, %v1221
        %s1223 = sld [smem:[#allocation7 + $0x102]]
        %v1224 = vstv %s1223
        %v1225 = vmul.f32 %v1224, %v1183
        %v1226 = vadd.f32 %v1222, %v1225
        %s1227 = sld [smem:[#allocation7 + $0x103]]
        %v1228 = vstv %s1227
        %v1229 = vmul.f32 %v1228, %v1189
        %v1230 = vadd.f32 %v1226, %v1229
        %s1231 = sld [smem:[#allocation8 + $0x2]]
        %v1232 = vstv %s1231
        %v1233 = vadd.f32 %v1230, %v1232
        %v1234 = vmax.f32 %v1233, 0.0
        %s1235 = sld [smem:[#allocation7 + $0x180]]
        %v1236 = vstv %s1235
        %v1237 = vmul.f32 %v1236, %v1172
        %s1238 = sld [smem:[#allocation7 + $0x181]]
        %v1239 = vstv %s1238
        %v1240 = vmul.f32 %v1239, %v1177
        %v1241 = vadd.f32 %v1237, %v1240
        %s1242 = sld [smem:[#allocation7 + $0x182]]
        %v1243 = vstv %s1242
        %v1244 = vmul.f32 %v1243, %v1183
        %v1245 = vadd.f32 %v1241, %v1244
        %s1246 = sld [smem:[#allocation7 + $0x183]]
        %v1247 = vstv %s1246
        %v1248 = vmul.f32 %v1247, %v1189
        %v1249 = vadd.f32 %v1245, %v1248
        %s1250 = sld [smem:[#allocation8 + $0x3]]
        %v1251 = vstv %s1250
        %v1252 = vadd.f32 %v1249, %v1251
        %v1253 = vmax.f32 %v1252, 0.0
        %v1254 = vlaneseq
        %v1255 = vand.u32 %v1254, 127
        %vm1256 = vcmp.eq.s32.totalorder %v1255, 0
        %vm1257 = vcmask 130048
        %v1258 = vsel %vm1257, %v684, 0.0
        %1259 = vadd.xlane.f32.xlu0 %v1258
        %v1260 = vpop.xlane.xlu0 %1259
        %v1261 = vrot.slane %v1260, 4
        %v1262 = vadd.f32 %v1260, %v1261
        %v1263 = vrot.slane %v1262, 2
        %v1264 = vadd.f32 %v1262, %v1263
        %v1265 = vrot.slane %v1264, 1
        %v1266 = vadd.f32 %v1264, %v1265
        %s1267 = vtos %v1266
        %v1268 = vstv %s1267
        %v1269 = vsel %vm1256, %v1268, 0.0
        %v1270 = vadd.f32 %v1269, 0.0
        %v1271 = vmul.f32 %v684, %v684
        %v1272 = vsel %vm1257, %v1271, 0.0
        %1273 = vadd.xlane.f32.xlu0 %v1272
        %v1274 = vpop.xlane.xlu0 %1273
        %v1275 = vrot.slane %v1274, 4
        %v1276 = vadd.f32 %v1274, %v1275
        %v1277 = vrot.slane %v1276, 2
        %v1278 = vadd.f32 %v1276, %v1277
        %v1279 = vrot.slane %v1278, 1
        %v1280 = vadd.f32 %v1278, %v1279
        %s1281 = vtos %v1280
        %v1282 = vstv %s1281
        %v1283 = vsel %vm1256, %v1282, 0.0
        %v1284 = vadd.f32 %v1283, 0.0
        %vm1285 = vcmp.eq.s32.totalorder %v1255, 1
        %v1286 = vsel %vm1257, %v846, 0.0
        %1287 = vadd.xlane.f32.xlu0 %v1286
        %v1288 = vpop.xlane.xlu0 %1287
        %v1289 = vrot.slane %v1288, 4
        %v1290 = vadd.f32 %v1288, %v1289
        %v1291 = vrot.slane %v1290, 2
        %v1292 = vadd.f32 %v1290, %v1291
        %v1293 = vrot.slane %v1292, 1
        %v1294 = vadd.f32 %v1292, %v1293
        %s1295 = vtos %v1294
        %v1296 = vstv %s1295
        %v1297 = vsel %vm1285, %v1296, 0.0
        %v1298 = vadd.f32 %v1270, %v1297
        %v1299 = vmul.f32 %v846, %v846
        %v1300 = vsel %vm1257, %v1299, 0.0
        %1301 = vadd.xlane.f32.xlu0 %v1300
        %v1302 = vpop.xlane.xlu0 %1301
        %v1303 = vrot.slane %v1302, 4
        %v1304 = vadd.f32 %v1302, %v1303
        %v1305 = vrot.slane %v1304, 2
        %v1306 = vadd.f32 %v1304, %v1305
        %v1307 = vrot.slane %v1306, 1
        %v1308 = vadd.f32 %v1306, %v1307
        %s1309 = vtos %v1308
        %v1310 = vstv %s1309
        %v1311 = vsel %vm1285, %v1310, 0.0
        %v1312 = vadd.f32 %v1284, %v1311
        %vm1313 = vcmp.eq.s32.totalorder %v1255, 2
        %v1314 = vsel %vm1257, %v1008, 0.0
        %1315 = vadd.xlane.f32.xlu0 %v1314
        %v1316 = vpop.xlane.xlu0 %1315
        %v1317 = vrot.slane %v1316, 4
        %v1318 = vadd.f32 %v1316, %v1317
        %v1319 = vrot.slane %v1318, 2
        %v1320 = vadd.f32 %v1318, %v1319
        %v1321 = vrot.slane %v1320, 1
        %v1322 = vadd.f32 %v1320, %v1321
        %s1323 = vtos %v1322
        %v1324 = vstv %s1323
        %v1325 = vsel %vm1313, %v1324, 0.0
        %v1326 = vadd.f32 %v1298, %v1325
        %v1327 = vmul.f32 %v1008, %v1008
        %v1328 = vsel %vm1257, %v1327, 0.0
        %1329 = vadd.xlane.f32.xlu0 %v1328
        %v1330 = vpop.xlane.xlu0 %1329
        %v1331 = vrot.slane %v1330, 4
        %v1332 = vadd.f32 %v1330, %v1331
        %v1333 = vrot.slane %v1332, 2
        %v1334 = vadd.f32 %v1332, %v1333
        %v1335 = vrot.slane %v1334, 1
        %v1336 = vadd.f32 %v1334, %v1335
        %s1337 = vtos %v1336
        %v1338 = vstv %s1337
        %v1339 = vsel %vm1313, %v1338, 0.0
        %v1340 = vadd.f32 %v1312, %v1339
        %vm1341 = vcmp.eq.s32.totalorder %v1255, 3
        %v1342 = vsel %vm1257, %v1170, 0.0
        %1343 = vadd.xlane.f32.xlu0 %v1342
        %v1344 = vpop.xlane.xlu0 %1343
        %v1345 = vrot.slane %v1344, 4
        %v1346 = vadd.f32 %v1344, %v1345
        %v1347 = vrot.slane %v1346, 2
        %v1348 = vadd.f32 %v1346, %v1347
        %v1349 = vrot.slane %v1348, 1
        %v1350 = vadd.f32 %v1348, %v1349
        %s1351 = vtos %v1350
        %v1352 = vstv %s1351
        %v1353 = vsel %vm1341, %v1352, 0.0
        %v1354 = vadd.f32 %v1326, %v1353
        %v1355 = vmul.f32 %v1170, %v1170
        %v1356 = vsel %vm1257, %v1355, 0.0
        %1357 = vadd.xlane.f32.xlu0 %v1356
        %v1358 = vpop.xlane.xlu0 %1357
        %v1359 = vrot.slane %v1358, 4
        %v1360 = vadd.f32 %v1358, %v1359
        %v1361 = vrot.slane %v1360, 2
        %v1362 = vadd.f32 %v1360, %v1361
        %v1363 = vrot.slane %v1362, 1
        %v1364 = vadd.f32 %v1362, %v1363
        %s1365 = vtos %v1364
        %v1366 = vstv %s1365
        %v1367 = vsel %vm1341, %v1366, 0.0
        %v1368 = vadd.f32 %v1340, %v1367
        %vm1369 = vcmp.eq.s32.totalorder %v1255, 4
        %v1370 = vsel %vm1257, %v1196, 0.0
        %1371 = vadd.xlane.f32.xlu0 %v1370
        %v1372 = vpop.xlane.xlu0 %1371
        %v1373 = vrot.slane %v1372, 4
        %v1374 = vadd.f32 %v1372, %v1373
        %v1375 = vrot.slane %v1374, 2
        %v1376 = vadd.f32 %v1374, %v1375
        %v1377 = vrot.slane %v1376, 1
        %v1378 = vadd.f32 %v1376, %v1377
        %s1379 = vtos %v1378
        %v1380 = vstv %s1379
        %v1381 = vsel %vm1369, %v1380, 0.0
        %v1382 = vadd.f32 %v1354, %v1381
        %v1383 = vmul.f32 %v1196, %v1196
        %v1384 = vsel %vm1257, %v1383, 0.0
        %1385 = vadd.xlane.f32.xlu0 %v1384
        %v1386 = vpop.xlane.xlu0 %1385
        %v1387 = vrot.slane %v1386, 4
        %v1388 = vadd.f32 %v1386, %v1387
        %v1389 = vrot.slane %v1388, 2
        %v1390 = vadd.f32 %v1388, %v1389
        %v1391 = vrot.slane %v1390, 1
        %v1392 = vadd.f32 %v1390, %v1391
        %s1393 = vtos %v1392
        %v1394 = vstv %s1393
        %v1395 = vsel %vm1369, %v1394, 0.0
        %v1396 = vadd.f32 %v1368, %v1395
        %vm1397 = vcmp.eq.s32.totalorder %v1255, 5
        %v1398 = vsel %vm1257, %v1215, 0.0
        %1399 = vadd.xlane.f32.xlu0 %v1398
        %v1400 = vpop.xlane.xlu0 %1399
        %v1401 = vrot.slane %v1400, 4
        %v1402 = vadd.f32 %v1400, %v1401
        %v1403 = vrot.slane %v1402, 2
        %v1404 = vadd.f32 %v1402, %v1403
        %v1405 = vrot.slane %v1404, 1
        %v1406 = vadd.f32 %v1404, %v1405
        %s1407 = vtos %v1406
        %v1408 = vstv %s1407
        %v1409 = vsel %vm1397, %v1408, 0.0
        %v1410 = vadd.f32 %v1382, %v1409
        %v1411 = vmul.f32 %v1215, %v1215
        %v1412 = vsel %vm1257, %v1411, 0.0
        %1413 = vadd.xlane.f32.xlu0 %v1412
        %v1414 = vpop.xlane.xlu0 %1413
        %v1415 = vrot.slane %v1414, 4
        %v1416 = vadd.f32 %v1414, %v1415
        %v1417 = vrot.slane %v1416, 2
        %v1418 = vadd.f32 %v1416, %v1417
        %v1419 = vrot.slane %v1418, 1
        %v1420 = vadd.f32 %v1418, %v1419
        %s1421 = vtos %v1420
        %v1422 = vstv %s1421
        %v1423 = vsel %vm1397, %v1422, 0.0
        %v1424 = vadd.f32 %v1396, %v1423
        %vm1425 = vcmp.eq.s32.totalorder %v1255, 6
        %v1426 = vsel %vm1257, %v1234, 0.0
        %1427 = vadd.xlane.f32.xlu0 %v1426
        %v1428 = vpop.xlane.xlu0 %1427
        %v1429 = vrot.slane %v1428, 4
        %v1430 = vadd.f32 %v1428, %v1429
        %v1431 = vrot.slane %v1430, 2
        %v1432 = vadd.f32 %v1430, %v1431
        %v1433 = vrot.slane %v1432, 1
        %v1434 = vadd.f32 %v1432, %v1433
        %s1435 = vtos %v1434
        %v1436 = vstv %s1435
        %v1437 = vsel %vm1425, %v1436, 0.0
        %v1438 = vadd.f32 %v1410, %v1437
        %v1439 = vmul.f32 %v1234, %v1234
        %v1440 = vsel %vm1257, %v1439, 0.0
        %1441 = vadd.xlane.f32.xlu0 %v1440
        %v1442 = vpop.xlane.xlu0 %1441
        %v1443 = vrot.slane %v1442, 4
        %v1444 = vadd.f32 %v1442, %v1443
        %v1445 = vrot.slane %v1444, 2
        %v1446 = vadd.f32 %v1444, %v1445
        %v1447 = vrot.slane %v1446, 1
        %v1448 = vadd.f32 %v1446, %v1447
        %s1449 = vtos %v1448
        %v1450 = vstv %s1449
        %v1451 = vsel %vm1425, %v1450, 0.0
        %v1452 = vadd.f32 %v1424, %v1451
        %vm1453 = vcmp.eq.s32.totalorder %v1255, 7
        %v1454 = vsel %vm1257, %v1253, 0.0
        %1455 = vadd.xlane.f32.xlu0 %v1454
        %v1456 = vpop.xlane.xlu0 %1455
        %v1457 = vrot.slane %v1456, 4
        %v1458 = vadd.f32 %v1456, %v1457
        %v1459 = vrot.slane %v1458, 2
        %v1460 = vadd.f32 %v1458, %v1459
        %v1461 = vrot.slane %v1460, 1
        %v1462 = vadd.f32 %v1460, %v1461
        %s1463 = vtos %v1462
        %v1464 = vstv %s1463
        %v1465 = vsel %vm1453, %v1464, 0.0
        %v1466 = vadd.f32 %v1438, %v1465
        %v1467 = vmul.f32 %v1253, %v1253
        %v1468 = vsel %vm1257, %v1467, 0.0
        %1469 = vadd.xlane.f32.xlu0 %v1468
        %v1470 = vpop.xlane.xlu0 %1469
        %v1471 = vrot.slane %v1470, 4
        %v1472 = vadd.f32 %v1470, %v1471
        %v1473 = vrot.slane %v1472, 2
        %v1474 = vadd.f32 %v1472, %v1473
        %v1475 = vrot.slane %v1474, 1
        %v1476 = vadd.f32 %v1474, %v1475
        %s1477 = vtos %v1476
        %v1478 = vstv %s1477
        %v1479 = vsel %vm1453, %v1478, 0.0
        %v1480 = vadd.f32 %v1452, %v1479
        %vm1481 = vcmask 57344
        %1482 = vst.msk [vmem:[%s502] sm:$0x1] %vm1481, %v1466
        %1483 = vst.msk [vmem:[%s509] sm:$0x1] %vm1481, %v1480
        %p1484 = scmp.lt.s32.totalorder %s28, 1
        %s1485 = scalar_select %p1484, %s28, 1
        %p1486 = scmp.lt.s32.totalorder %s29, 1
        %s1487 = scalar_select %p1486, %s29, 1
        %s1488 = smul.addr %s1485, 2
        %s1489 = sadd.s32 %s1487, %s1488
        %s1490 = scalar_lea.vmem %s8, %s1489
        %p1491 = scmp.lt.s32.totalorder %s28, 1
        %s1492 = scalar_select %p1491, %s28, 1
        %p1493 = scmp.lt.s32.totalorder %s29, 1
        %s1494 = scalar_select %p1493, %s29, 1
        %s1495 = smul.addr %s1492, 2
        %s1496 = sadd.s32 %s1494, %s1495
        %s1497 = scalar_lea.vmem %s9, %s1496
        // Predicated region
        $region107: #{unet_block0_forward.2} parent=85 // pred_check
          %p1498 = pneg %p241
        $region108: #{unet_block0_forward.2} parent=85 // pred_check_branch
          %1500 = sbr.rel (%p1498) target = $region110
        $region109: #{unet_block0_forward.2} parent=85 // pred_region
          _
        $region110: #{unet_block0_forward.2} parent=85 // pred_fallthru
          _
        // Predicated region
        $region111: #{unet_block0_forward.2} parent=85 // pred_check
          %p1501 = pneg %p269
        $region112: #{unet_block0_forward.2} parent=85 // pred_check_branch
          %1503 = sbr.rel (%p1501) target = $region114
        $region113: #{unet_block0_forward.2} parent=85 // pred_region
          _
        $region114: #{unet_block0_forward.2} parent=85 // pred_fallthru
          _
      $region86: #{unet_block0_forward.2} parent=5 // pred_fallthru
        _
      %p1504 = scmp.le.s32.totalorder 2, %s19
      // Predicated region
      $region115: #{unet_block0_forward.2} parent=5 // pred_check
        %p1505 = pneg %p1504
      $region116: #{unet_block0_forward.2} parent=5 // pred_check_branch
        %1507 = sbr.rel (%p1505) target = $region118
      $region117: #{unet_block0_forward.2} parent=5 // pred_region
        %s1508 = ssub.s32 %s19, 2
        // Predicated region
        $region119: #{unet_block0_forward.2} parent=117 // pred_check
          %p1509 = pneg %p247
        $region120: #{unet_block0_forward.2} parent=117 // pred_check_branch
          %1511 = sbr.rel (%p1509) target = $region122
        $region121: #{unet_block0_forward.2} parent=117 // pred_region
          %p1512 = scmp.lt.s32.totalorder %s30, 1
          %s1513 = scalar_select %p1512, %s30, 1
          %p1514 = scmp.lt.s32.totalorder %s31, 1
          %s1515 = scalar_select %p1514, %s31, 1
          %s1516 = smul.addr %s1513, 2
          %s1517 = sadd.s32 %s1515, %s1516
          %s1518 = scalar_lea.vmem %s8, %s1517
        $region122: #{unet_block0_forward.2} parent=117 // pred_fallthru
          _
        // Predicated region
        $region123: #{unet_block0_forward.2} parent=117 // pred_check
          %p1519 = pneg %p275
        $region124: #{unet_block0_forward.2} parent=117 // pred_check_branch
          %1521 = sbr.rel (%p1519) target = $region126
        $region125: #{unet_block0_forward.2} parent=117 // pred_region
          %p1522 = scmp.lt.s32.totalorder %s30, 1
          %s1523 = scalar_select %p1522, %s30, 1
          %p1524 = scmp.lt.s32.totalorder %s31, 1
          %s1525 = scalar_select %p1524, %s31, 1
          %s1526 = smul.addr %s1523, 2
          %s1527 = sadd.s32 %s1525, %s1526
          %s1528 = scalar_lea.vmem %s9, %s1527
        $region126: #{unet_block0_forward.2} parent=117 // pred_fallthru
          _
      $region118: #{unet_block0_forward.2} parent=5 // pred_fallthru
        _
    $region6: #{unet_block0_forward.2} parent=1 // loop_footer
      %s23 = sadd.s32 1, %s19
    $region7: #{unet_block0_forward.2} parent=1 // loop_footer_branch
      %18 = sbr.rel target = $region3
    $region8: #{unet_block0_forward.2} parent=1 // loop_exit
      _
    %1529 = vsyncpa [#allocation4], 1
    %s1530 = scalar_lea.sflag [#allocation4], 1
    %1531 = vsyncpa %s1530, 1
    %1532 = vsyncpa [#allocation6], 1
    %1533 = vsyncpa [#allocation9], 1

</llo_original>
